<compile_context>
chip_gen: v6e
topology: v6e:2x2x1
jax: 0.10.0
libtpu: 0.0.40
codegen_flags: <defaults>
</compile_context>

<pallas_src>
import jax
import jax.numpy as jnp
from jax import lax
from jax.experimental import pallas as pl
from jax.experimental.pallas import tpu as pltpu


def h_swish(x):
    return x * jnp.clip(x + 3.0, 0.0, 6.0) / 6.0


def h_sigmoid(x):
    return jnp.clip(x + 3.0, 0.0, 6.0) / 6.0


# ----------------------------------------------------------------------------
# Pallas kernel: one batch element per grid step, full spatial tile in VMEM.
# ----------------------------------------------------------------------------
def _lff_kernel(x_ref, w1_ref, b1_ref, wdw_ref, b2_ref,
                sew1_ref, seb1_ref, sew2_ref, seb2_ref,
                w3_ref, b3_ref, o_ref):
    H, W, C = x_ref.shape
    hidden = w1_ref.shape[1]
    HW = H * W

    x = x_ref[...]                                    # (H, W, C)
    xf = x.reshape(HW, C).astype(jnp.float32)         # f32 copy kept for the residual

    # --- 1x1 conv (C -> hidden), BN scale pre-folded into w1, bf16 MXU ------
    y = jnp.dot(xf.astype(jnp.bfloat16), w1_ref[...],
                preferred_element_type=jnp.float32)
    y = h_swish(y + b1_ref[...])                      # (HW, hidden) f32

    # --- depthwise 3x3 (stride=1, pad=1), in-register via sublane rolls -----
    # flattened row index r = h*W + w; neighbor (h+dy, w+dx) lives at r + dy*W + dx.
    r_idx = lax.broadcasted_iota(jnp.int32, (HW, hidden), 0)
    if W & (W - 1) == 0:
        w_pos = r_idx & (W - 1)
    else:
        # TODO(synk): non-power-of-two W falls back to integer remainder.
        w_pos = r_idx % W
    h_lo = r_idx >= W              # valid rows for dy = -1
    h_hi = r_idx < (HW - W)        # valid rows for dy = +1
    w_lo = w_pos >= 1              # valid cols for dx = -1
    w_hi = w_pos < (W - 1)         # valid cols for dx = +1

    wdw = wdw_ref[...]                                # (9, hidden), BN scale folded in
    acc = y * wdw[4]                                  # center tap (dy=0, dx=0)
    for dy in (-1, 0, 1):
        for dx in (-1, 0, 1):
            if dy == 0 and dx == 0:
                continue
            shift = dy * W + dx
            # shifted[r] = y[r + shift]   (XLU sublane rotation; wrap is masked out)
            shifted = pltpu.roll(y, shift=(-shift) % HW, axis=0)
            mask = None
            if dy == 1:
                mask = h_hi
            elif dy == -1:
                mask = h_lo
            if dx == 1:
                mask = w_hi if mask is None else mask & w_hi
            elif dx == -1:
                mask = w_lo if mask is None else mask & w_lo
            tap = wdw[(dy + 1) * 3 + (dx + 1)]
            acc = acc + jnp.where(mask, shifted, 0.0) * tap
    y = h_swish(acc + b2_ref[...])                    # (HW, hidden) f32

    # --- SE block (tile already in vregs; keep f32) --------------------------
    pooled = jnp.mean(y, axis=0, keepdims=True)       # (1, hidden)
    z = jnp.dot(pooled, sew1_ref[...], preferred_element_type=jnp.float32) + seb1_ref[...]
    z = jnp.maximum(z, 0.0)
    z = jnp.dot(z, sew2_ref[...], preferred_element_type=jnp.float32) + seb2_ref[...]
    y = y * h_sigmoid(z)                              # broadcast over rows

    # --- 1x1 conv (hidden -> C), BN scale folded into w3, bf16 MXU, residual -
    out = jnp.dot(y.astype(jnp.bfloat16), w3_ref[...],
                  preferred_element_type=jnp.float32)
    out = xf + out + b3_ref[...]
    o_ref[...] = out.reshape(H, W, C).astype(o_ref.dtype)


# ----------------------------------------------------------------------------
# Wrappers
# ----------------------------------------------------------------------------
def fold_params(p):
    """Fold eval-mode BN scales into conv weights; return kernel-arg-ordered tuple."""
    w1 = (p["w1"] * p["s1"]).astype(jnp.bfloat16)                       # (C, hidden)
    wdw = (p["wdw"] * p["s2"].reshape(1, 1, -1)).reshape(9, -1)          # (9, hidden) f32
    w3 = (p["w3"] * p["s3"]).astype(jnp.bfloat16)                       # (hidden, C)
    return (w1, p["b1"], wdw.astype(jnp.float32), p["b2"],
            p["sew1"], p["seb1"], p["sew2"], p["seb2"],
            w3, p["b3"])


def _full_spec(a):
    nd = a.ndim
    return pl.BlockSpec(a.shape, lambda b, _nd=nd: (0,) * _nd)


def locality_feed_forward_nhwc(x_nhwc, folded_weights):
    """Preferred entry point: NHWC in / NHWC out (no transposes)."""
    B, H, W, C = x_nhwc.shape
    return pl.pallas_call(
        _lff_kernel,
        out_shape=jax.ShapeDtypeStruct((B, H, W, C), x_nhwc.dtype),
        grid_spec=pltpu.PrefetchScalarGridSpec(
            num_scalar_prefetch=0,
            grid=(B,),
            in_specs=[pl.BlockSpec((None, H, W, C), lambda b: (b, 0, 0, 0))]
                     + [_full_spec(w) for w in folded_weights],
            out_specs=pl.BlockSpec((None, H, W, C), lambda b: (b, 0, 0, 0)),
        ),
        compiler_params=pltpu.CompilerParams(
            dimension_semantics=("parallel",),       # batch elements are independent
            vmem_limit_bytes=32 * 1024 * 1024,
        ),
    )(x_nhwc, *folded_weights)


def locality_feed_forward(x_nchw, params):
    """NCHW wrapper matching the PyTorch module interface."""
    folded = fold_params(params)
    x = jnp.transpose(x_nchw, (0, 2, 3, 1))          # NCHW -> NHWC
    out = locality_feed_forward_nhwc(x, folded)
    return jnp.transpose(out, (0, 3, 1, 2))          # NHWC -> NCHW


# ----------------------------------------------------------------------------
# Deterministic parameter init (BN kept as per-channel scale / bias)
# ----------------------------------------------------------------------------
def init_params(key, dim, expand_ratio=4.0, reduction=4):
    hidden = int(dim * expand_ratio)
    hred = hidden // reduction
    ks = jax.random.split(key, 10)
    eps = 1e-5

    def bn(k, c):
        k1, k2, k3, k4 = jax.random.split(k, 4)
        gamma = 1.0 + 0.1 * jax.random.normal(k1, (c,), jnp.float32)
        beta = 0.1 * jax.random.normal(k2, (c,), jnp.float32)
        mean = 0.1 * jax.random.normal(k3, (c,), jnp.float32)
        var = jax.random.uniform(k4, (c,), jnp.float32, minval=0.5, maxval=1.5)
        scale = gamma / jnp.sqrt(var + eps)
        bias = beta - mean * scale
        return scale.reshape(1, c), bias.reshape(1, c)

    s1, b1 = bn(ks[1], hidden)
    s2, b2 = bn(ks[3], hidden)
    s3, b3 = bn(ks[9], dim)
    return {
        "w1": 0.2 * jax.random.normal(ks[0], (dim, hidden), jnp.float32),
        "s1": s1, "b1": b1,
        "wdw": 0.2 * jax.random.normal(ks[2], (3, 3, hidden), jnp.float32),
        "s2": s2, "b2": b2,
        "sew1": 0.2 * jax.random.normal(ks[4], (hidden, hred), jnp.float32),
        "seb1": 0.1 * jax.random.normal(ks[5], (1, hred), jnp.float32),
        "sew2": 0.2 * jax.random.normal(ks[6], (hred, hidden), jnp.float32),
        "seb2": 0.1 * jax.random.normal(ks[7], (1, hidden), jnp.float32),
        "w3": 0.2 * jax.random.normal(ks[8], (hidden, dim), jnp.float32),
        "s3": s3, "b3": b3,
    }


# ----------------------------------------------------------------------------
# Pure-JAX f32 reference (the spec) for correctness check
# ----------------------------------------------------------------------------
def reference(x_nchw, p):
    x = jnp.transpose(x_nchw, (0, 2, 3, 1))
    hidden = p["w1"].shape[1]

    y = jnp.einsum("bhwc,cd->bhwd", x, p["w1"])
    y = y * p["s1"][0] + p["b1"][0]
    y = h_swish(y)

    wdw = p["wdw"].reshape(3, 3, 1, hidden)           # HWIO, in-per-group = 1
    y = lax.conv_general_dilated(
        y, wdw, window_strides=(1, 1), padding="SAME",
        dimension_numbers=("NHWC", "HWIO", "NHWC"),
        feature_group_count=hidden)
    y = y * p["s2"][0] + p["b2"][0]
    y = h_swish(y)

    pooled = jnp.mean(y, axis=(1, 2))                 # (B, hidden)
    z = jnp.maximum(pooled @ p["sew1"] + p["seb1"], 0.0)
    z = h_sigmoid(z @ p["sew2"] + p["seb2"])
    y = y * z[:, None, None, :]

    out = jnp.einsum("bhwd,dc->bhwc", y, p["w3"]) * p["s3"][0] + p["b3"][0]
    out = x + out
    return jnp.transpose(out, (0, 3, 1, 2))


if __name__ == "__main__":
    key = jax.random.PRNGKey(0)
    kx, kp = jax.random.split(key)

    B, dim, H, W = 2, 8, 16, 16                       # hidden = 32, SE reduce = 8
    x = jax.random.normal(kx, (B, dim, H, W), jnp.float32)
    params = init_params(kp, dim, expand_ratio=4.0, reduction=4)

    out = locality_feed_forward(x, params)
    out = jax.block_until_ready(out)

    ref = reference(x, params)
    assert out.shape == x.shape
    # bf16 MXU matmuls -> compare against the f32 spec at 1e-2 tolerance.
    if not jnp.allclose(out, ref, atol=1e-2, rtol=1e-2):
        max_err = float(jnp.max(jnp.abs(out - ref)))
        raise AssertionError(f"Pallas kernel mismatch vs reference, max_err={max_err}")

    print("KERNEL_OK")
</pallas_src>

<mosaic_0001>
module attributes {stable_mosaic.version = 11 : i64} {
  func.func @_lff_kernel(%arg0: i32, %arg1: memref<1x16x16x8xf32, #tpu.memory_space<vmem>>, %arg2: memref<8x32xbf16, #tpu.memory_space<vmem>>, %arg3: memref<1x32xf32, #tpu.memory_space<vmem>>, %arg4: memref<9x32xf32, #tpu.memory_space<vmem>>, %arg5: memref<1x32xf32, #tpu.memory_space<vmem>>, %arg6: memref<32x8xf32, #tpu.memory_space<vmem>>, %arg7: memref<1x8xf32, #tpu.memory_space<vmem>>, %arg8: memref<8x32xf32, #tpu.memory_space<vmem>>, %arg9: memref<1x32xf32, #tpu.memory_space<vmem>>, %arg10: memref<32x8xbf16, #tpu.memory_space<vmem>>, %arg11: memref<1x8xf32, #tpu.memory_space<vmem>>, %arg12: memref<1x16x16x8xf32, #tpu.memory_space<vmem>>) attributes {dimension_semantics = [#tpu.dimension_semantics<parallel>], iteration_bounds = array<i64: 2>, scalar_prefetch = 0 : i64, scratch_operands = 0 : i64, tpu.core_type = #tpu.core_type<tc>, window_params = [{transform_indices = @transform_0, window_bounds = array<i64: 1, 16, 16, 8>}, {pipeline_mode = #tpu.pipeline_mode<synchronous>, transform_indices = @transform_1, window_bounds = array<i64: 8, 32>}, {pipeline_mode = #tpu.pipeline_mode<synchronous>, transform_indices = @transform_2, window_bounds = array<i64: 1, 32>}, {pipeline_mode = #tpu.pipeline_mode<synchronous>, transform_indices = @transform_3, window_bounds = array<i64: 9, 32>}, {pipeline_mode = #tpu.pipeline_mode<synchronous>, transform_indices = @transform_4, window_bounds = array<i64: 1, 32>}, {pipeline_mode = #tpu.pipeline_mode<synchronous>, transform_indices = @transform_5, window_bounds = array<i64: 32, 8>}, {pipeline_mode = #tpu.pipeline_mode<synchronous>, transform_indices = @transform_6, window_bounds = array<i64: 1, 8>}, {pipeline_mode = #tpu.pipeline_mode<synchronous>, transform_indices = @transform_7, window_bounds = array<i64: 8, 32>}, {pipeline_mode = #tpu.pipeline_mode<synchronous>, transform_indices = @transform_8, window_bounds = array<i64: 1, 32>}, {pipeline_mode = #tpu.pipeline_mode<synchronous>, transform_indices = @transform_9, window_bounds = array<i64: 32, 8>}, {pipeline_mode = #tpu.pipeline_mode<synchronous>, transform_indices = @transform_10, window_bounds = array<i64: 1, 8>}, {transform_indices = @transform_11, window_bounds = array<i64: 1, 16, 16, 8>}]} {
    %c0 = arith.constant 0 : index
    %c0_0 = arith.constant 0 : index
    %c0_1 = arith.constant 0 : index
    %c0_2 = arith.constant 0 : index
    %0 = vector.load %arg1[%c0, %c0_0, %c0_1, %c0_2] : memref<1x16x16x8xf32, #tpu.memory_space<vmem>>, vector<1x16x16x8xf32>
    %1 = vector.shape_cast %0 : vector<1x16x16x8xf32> to vector<16x16x8xf32>
    %2 = vector.shape_cast %1 : vector<16x16x8xf32> to vector<256x8xf32>
    %3 = arith.truncf %2 : vector<256x8xf32> to vector<256x8xbf16>
    %c0_3 = arith.constant 0 : index
    %c0_4 = arith.constant 0 : index
    %4 = vector.load %arg2[%c0_3, %c0_4] : memref<8x32xbf16, #tpu.memory_space<vmem>>, vector<8x32xbf16>
    %cst = arith.constant dense<0.000000e+00> : vector<256x32xf32>
    %5 = tpu.matmul %3, %4, %cst {dimension_numbers = #tpu.dot_dimension_numbers<[1], [0], [0], [1], [0, 0, 1, 1], [], []>} : vector<256x8xbf16>, vector<8x32xbf16>, vector<256x32xf32> -> vector<256x32xf32>
    %c0_5 = arith.constant 0 : index
    %c0_6 = arith.constant 0 : index
    %6 = vector.load %arg3[%c0_5, %c0_6] : memref<1x32xf32, #tpu.memory_space<vmem>>, vector<1x32xf32>
    %7 = vector.broadcast %6 : vector<1x32xf32> to vector<256x32xf32>
    %8 = arith.addf %5, %7 : vector<256x32xf32>
    %cst_7 = arith.constant 3.000000e+00 : f32
    %9 = vector.broadcast %cst_7 : f32 to vector<256x32xf32>
    %10 = arith.addf %8, %9 : vector<256x32xf32>
    %cst_8 = arith.constant 0.000000e+00 : f32
    %cst_9 = arith.constant 6.000000e+00 : f32
    %11 = vector.broadcast %cst_8 : f32 to vector<256x32xf32>
    %12 = arith.maximumf %11, %10 : vector<256x32xf32>
    %13 = vector.broadcast %cst_9 : f32 to vector<256x32xf32>
    %14 = arith.minimumf %13, %12 : vector<256x32xf32>
    %15 = arith.mulf %8, %14 : vector<256x32xf32>
    %cst_10 = arith.constant 6.000000e+00 : f32
    %16 = vector.broadcast %cst_10 : f32 to vector<256x32xf32>
    %17 = arith.divf %15, %16 : vector<256x32xf32>
    %18 = tpu.iota {dimensions = array<i32: 0>} : vector<256x32xi32>
    %c15_i32 = arith.constant 15 : i32
    %19 = vector.broadcast %c15_i32 : i32 to vector<256x32xi32>
    %20 = arith.andi %18, %19 : vector<256x32xi32>
    %c16_i32 = arith.constant 16 : i32
    %21 = vector.broadcast %c16_i32 : i32 to vector<256x32xi32>
    %22 = arith.cmpi sge, %18, %21 : vector<256x32xi32>
    %c240_i32 = arith.constant 240 : i32
    %23 = vector.broadcast %c240_i32 : i32 to vector<256x32xi32>
    %24 = arith.cmpi slt, %18, %23 : vector<256x32xi32>
    %c1_i32 = arith.constant 1 : i32
    %25 = vector.broadcast %c1_i32 : i32 to vector<256x32xi32>
    %26 = arith.cmpi sge, %20, %25 : vector<256x32xi32>
    %c15_i32_11 = arith.constant 15 : i32
    %27 = vector.broadcast %c15_i32_11 : i32 to vector<256x32xi32>
    %28 = arith.cmpi slt, %20, %27 : vector<256x32xi32>
    %c0_12 = arith.constant 0 : index
    %c0_13 = arith.constant 0 : index
    %29 = vector.load %arg4[%c0_12, %c0_13] : memref<9x32xf32, #tpu.memory_space<vmem>>, vector<9x32xf32>
    %30 = vector.extract_strided_slice %29 {offsets = [4, 0], sizes = [1, 32], strides = [1, 1]} : vector<9x32xf32> to vector<1x32xf32>
    %31 = vector.shape_cast %30 : vector<1x32xf32> to vector<32xf32>
    %32 = vector.shape_cast %31 : vector<32xf32> to vector<1x32xf32>
    %33 = vector.broadcast %32 : vector<1x32xf32> to vector<256x32xf32>
    %34 = arith.mulf %17, %33 : vector<256x32xf32>
    %c17_i32 = arith.constant 17 : i32
    %35 = tpu.dynamic_rotate %17 by %c17_i32 dim 0 : vector<256x32xf32>, i32 -> vector<256x32xf32>
    %36 = arith.andi %22, %26 : vector<256x32xi1>
    %37 = vector.extract_strided_slice %29 {offsets = [0, 0], sizes = [1, 32], strides = [1, 1]} : vector<9x32xf32> to vector<1x32xf32>
    %38 = vector.shape_cast %37 : vector<1x32xf32> to vector<32xf32>
    %cst_14 = arith.constant 0.000000e+00 : f32
    %39 = vector.broadcast %cst_14 : f32 to vector<256x32xf32>
    %40 = arith.select %36, %35, %39 : vector<256x32xi1>, vector<256x32xf32>
    %41 = vector.shape_cast %38 : vector<32xf32> to vector<1x32xf32>
    %42 = vector.broadcast %41 : vector<1x32xf32> to vector<256x32xf32>
    %43 = arith.mulf %40, %42 : vector<256x32xf32>
    %44 = arith.addf %34, %43 : vector<256x32xf32>
    %c16_i32_15 = arith.constant 16 : i32
    %45 = tpu.dynamic_rotate %17 by %c16_i32_15 dim 0 : vector<256x32xf32>, i32 -> vector<256x32xf32>
    %46 = vector.extract_strided_slice %29 {offsets = [1, 0], sizes = [1, 32], strides = [1, 1]} : vector<9x32xf32> to vector<1x32xf32>
    %47 = vector.shape_cast %46 : vector<1x32xf32> to vector<32xf32>
    %cst_16 = arith.constant 0.000000e+00 : f32
    %48 = vector.broadcast %cst_16 : f32 to vector<256x32xf32>
    %49 = arith.select %22, %45, %48 : vector<256x32xi1>, vector<256x32xf32>
    %50 = vector.shape_cast %47 : vector<32xf32> to vector<1x32xf32>
    %51 = vector.broadcast %50 : vector<1x32xf32> to vector<256x32xf32>
    %52 = arith.mulf %49, %51 : vector<256x32xf32>
    %53 = arith.addf %44, %52 : vector<256x32xf32>
    %c15_i32_17 = arith.constant 15 : i32
    %54 = tpu.dynamic_rotate %17 by %c15_i32_17 dim 0 : vector<256x32xf32>, i32 -> vector<256x32xf32>
    %55 = arith.andi %22, %28 : vector<256x32xi1>
    %56 = vector.extract_strided_slice %29 {offsets = [2, 0], sizes = [1, 32], strides = [1, 1]} : vector<9x32xf32> to vector<1x32xf32>
    %57 = vector.shape_cast %56 : vector<1x32xf32> to vector<32xf32>
    %cst_18 = arith.constant 0.000000e+00 : f32
    %58 = vector.broadcast %cst_18 : f32 to vector<256x32xf32>
    %59 = arith.select %55, %54, %58 : vector<256x32xi1>, vector<256x32xf32>
    %60 = vector.shape_cast %57 : vector<32xf32> to vector<1x32xf32>
    %61 = vector.broadcast %60 : vector<1x32xf32> to vector<256x32xf32>
    %62 = arith.mulf %59, %61 : vector<256x32xf32>
    %63 = arith.addf %53, %62 : vector<256x32xf32>
    %c1_i32_19 = arith.constant 1 : i32
    %64 = tpu.dynamic_rotate %17 by %c1_i32_19 dim 0 : vector<256x32xf32>, i32 -> vector<256x32xf32>
    %65 = vector.extract_strided_slice %29 {offsets = [3, 0], sizes = [1, 32], strides = [1, 1]} : vector<9x32xf32> to vector<1x32xf32>
    %66 = vector.shape_cast %65 : vector<1x32xf32> to vector<32xf32>
    %cst_20 = arith.constant 0.000000e+00 : f32
    %67 = vector.broadcast %cst_20 : f32 to vector<256x32xf32>
    %68 = arith.select %26, %64, %67 : vector<256x32xi1>, vector<256x32xf32>
    %69 = vector.shape_cast %66 : vector<32xf32> to vector<1x32xf32>
    %70 = vector.broadcast %69 : vector<1x32xf32> to vector<256x32xf32>
    %71 = arith.mulf %68, %70 : vector<256x32xf32>
    %72 = arith.addf %63, %71 : vector<256x32xf32>
    %c255_i32 = arith.constant 255 : i32
    %73 = tpu.dynamic_rotate %17 by %c255_i32 dim 0 : vector<256x32xf32>, i32 -> vector<256x32xf32>
    %74 = vector.extract_strided_slice %29 {offsets = [5, 0], sizes = [1, 32], strides = [1, 1]} : vector<9x32xf32> to vector<1x32xf32>
    %75 = vector.shape_cast %74 : vector<1x32xf32> to vector<32xf32>
    %cst_21 = arith.constant 0.000000e+00 : f32
    %76 = vector.broadcast %cst_21 : f32 to vector<256x32xf32>
    %77 = arith.select %28, %73, %76 : vector<256x32xi1>, vector<256x32xf32>
    %78 = vector.shape_cast %75 : vector<32xf32> to vector<1x32xf32>
    %79 = vector.broadcast %78 : vector<1x32xf32> to vector<256x32xf32>
    %80 = arith.mulf %77, %79 : vector<256x32xf32>
    %81 = arith.addf %72, %80 : vector<256x32xf32>
    %c241_i32 = arith.constant 241 : i32
    %82 = tpu.dynamic_rotate %17 by %c241_i32 dim 0 : vector<256x32xf32>, i32 -> vector<256x32xf32>
    %83 = arith.andi %24, %26 : vector<256x32xi1>
    %84 = vector.extract_strided_slice %29 {offsets = [6, 0], sizes = [1, 32], strides = [1, 1]} : vector<9x32xf32> to vector<1x32xf32>
    %85 = vector.shape_cast %84 : vector<1x32xf32> to vector<32xf32>
    %cst_22 = arith.constant 0.000000e+00 : f32
    %86 = vector.broadcast %cst_22 : f32 to vector<256x32xf32>
    %87 = arith.select %83, %82, %86 : vector<256x32xi1>, vector<256x32xf32>
    %88 = vector.shape_cast %85 : vector<32xf32> to vector<1x32xf32>
    %89 = vector.broadcast %88 : vector<1x32xf32> to vector<256x32xf32>
    %90 = arith.mulf %87, %89 : vector<256x32xf32>
    %91 = arith.addf %81, %90 : vector<256x32xf32>
    %c240_i32_23 = arith.constant 240 : i32
    %92 = tpu.dynamic_rotate %17 by %c240_i32_23 dim 0 : vector<256x32xf32>, i32 -> vector<256x32xf32>
    %93 = vector.extract_strided_slice %29 {offsets = [7, 0], sizes = [1, 32], strides = [1, 1]} : vector<9x32xf32> to vector<1x32xf32>
    %94 = vector.shape_cast %93 : vector<1x32xf32> to vector<32xf32>
    %cst_24 = arith.constant 0.000000e+00 : f32
    %95 = vector.broadcast %cst_24 : f32 to vector<256x32xf32>
    %96 = arith.select %24, %92, %95 : vector<256x32xi1>, vector<256x32xf32>
    %97 = vector.shape_cast %94 : vector<32xf32> to vector<1x32xf32>
    %98 = vector.broadcast %97 : vector<1x32xf32> to vector<256x32xf32>
    %99 = arith.mulf %96, %98 : vector<256x32xf32>
    %100 = arith.addf %91, %99 : vector<256x32xf32>
    %c239_i32 = arith.constant 239 : i32
    %101 = tpu.dynamic_rotate %17 by %c239_i32 dim 0 : vector<256x32xf32>, i32 -> vector<256x32xf32>
    %102 = arith.andi %24, %28 : vector<256x32xi1>
    %103 = vector.extract_strided_slice %29 {offsets = [8, 0], sizes = [1, 32], strides = [1, 1]} : vector<9x32xf32> to vector<1x32xf32>
    %104 = vector.shape_cast %103 : vector<1x32xf32> to vector<32xf32>
    %cst_25 = arith.constant 0.000000e+00 : f32
    %105 = vector.broadcast %cst_25 : f32 to vector<256x32xf32>
    %106 = arith.select %102, %101, %105 : vector<256x32xi1>, vector<256x32xf32>
    %107 = vector.shape_cast %104 : vector<32xf32> to vector<1x32xf32>
    %108 = vector.broadcast %107 : vector<1x32xf32> to vector<256x32xf32>
    %109 = arith.mulf %106, %108 : vector<256x32xf32>
    %110 = arith.addf %100, %109 : vector<256x32xf32>
    %c0_26 = arith.constant 0 : index
    %c0_27 = arith.constant 0 : index
    %111 = vector.load %arg5[%c0_26, %c0_27] : memref<1x32xf32, #tpu.memory_space<vmem>>, vector<1x32xf32>
    %112 = vector.broadcast %111 : vector<1x32xf32> to vector<256x32xf32>
    %113 = arith.addf %110, %112 : vector<256x32xf32>
    %cst_28 = arith.constant 3.000000e+00 : f32
    %114 = vector.broadcast %cst_28 : f32 to vector<256x32xf32>
    %115 = arith.addf %113, %114 : vector<256x32xf32>
    %cst_29 = arith.constant 0.000000e+00 : f32
    %cst_30 = arith.constant 6.000000e+00 : f32
    %116 = vector.broadcast %cst_29 : f32 to vector<256x32xf32>
    %117 = arith.maximumf %116, %115 : vector<256x32xf32>
    %118 = vector.broadcast %cst_30 : f32 to vector<256x32xf32>
    %119 = arith.minimumf %118, %117 : vector<256x32xf32>
    %120 = arith.mulf %113, %119 : vector<256x32xf32>
    %cst_31 = arith.constant 6.000000e+00 : f32
    %121 = vector.broadcast %cst_31 : f32 to vector<256x32xf32>
    %122 = arith.divf %120, %121 : vector<256x32xf32>
    %cst_32 = arith.constant dense<0.000000e+00> : vector<32xf32>
    %123 = vector.multi_reduction <add>, %122, %cst_32 [0] : vector<256x32xf32> to vector<32xf32>
    %124 = vector.shape_cast %123 : vector<32xf32> to vector<1x32xf32>
    %cst_33 = arith.constant 2.560000e+02 : f32
    %125 = vector.broadcast %cst_33 : f32 to vector<1x32xf32>
    %126 = arith.divf %124, %125 : vector<1x32xf32>
    %c0_34 = arith.constant 0 : index
    %c0_35 = arith.constant 0 : index
    %127 = vector.load %arg6[%c0_34, %c0_35] : memref<32x8xf32, #tpu.memory_space<vmem>>, vector<32x8xf32>
    %cst_36 = arith.constant dense<0.000000e+00> : vector<1x8xf32>
    %128 = tpu.matmul %126, %127, %cst_36 {dimension_numbers = #tpu.dot_dimension_numbers<[1], [0], [0], [1], [0, 0, 1, 1], [], []>} : vector<1x32xf32>, vector<32x8xf32>, vector<1x8xf32> -> vector<1x8xf32>
    %c0_37 = arith.constant 0 : index
    %c0_38 = arith.constant 0 : index
    %129 = vector.load %arg7[%c0_37, %c0_38] : memref<1x8xf32, #tpu.memory_space<vmem>>, vector<1x8xf32>
    %130 = arith.addf %128, %129 : vector<1x8xf32>
    %cst_39 = arith.constant 0.000000e+00 : f32
    %131 = vector.broadcast %cst_39 : f32 to vector<1x8xf32>
    %132 = arith.maximumf %130, %131 : vector<1x8xf32>
    %c0_40 = arith.constant 0 : index
    %c0_41 = arith.constant 0 : index
    %133 = vector.load %arg8[%c0_40, %c0_41] : memref<8x32xf32, #tpu.memory_space<vmem>>, vector<8x32xf32>
    %cst_42 = arith.constant dense<0.000000e+00> : vector<1x32xf32>
    %134 = tpu.matmul %132, %133, %cst_42 {dimension_numbers = #tpu.dot_dimension_numbers<[1], [0], [0], [1], [0, 0, 1, 1], [], []>} : vector<1x8xf32>, vector<8x32xf32>, vector<1x32xf32> -> vector<1x32xf32>
    %c0_43 = arith.constant 0 : index
    %c0_44 = arith.constant 0 : index
    %135 = vector.load %arg9[%c0_43, %c0_44] : memref<1x32xf32, #tpu.memory_space<vmem>>, vector<1x32xf32>
    %136 = arith.addf %134, %135 : vector<1x32xf32>
    %cst_45 = arith.constant 3.000000e+00 : f32
    %137 = vector.broadcast %cst_45 : f32 to vector<1x32xf32>
    %138 = arith.addf %136, %137 : vector<1x32xf32>
    %cst_46 = arith.constant 0.000000e+00 : f32
    %cst_47 = arith.constant 6.000000e+00 : f32
    %139 = vector.broadcast %cst_46 : f32 to vector<1x32xf32>
    %140 = arith.maximumf %139, %138 : vector<1x32xf32>
    %141 = vector.broadcast %cst_47 : f32 to vector<1x32xf32>
    %142 = arith.minimumf %141, %140 : vector<1x32xf32>
    %cst_48 = arith.constant 6.000000e+00 : f32
    %143 = vector.broadcast %cst_48 : f32 to vector<1x32xf32>
    %144 = arith.divf %142, %143 : vector<1x32xf32>
    %145 = vector.broadcast %144 : vector<1x32xf32> to vector<256x32xf32>
    %146 = arith.mulf %122, %145 : vector<256x32xf32>
    %147 = arith.truncf %146 : vector<256x32xf32> to vector<256x32xbf16>
    %c0_49 = arith.constant 0 : index
    %c0_50 = arith.constant 0 : index
    %148 = vector.load %arg10[%c0_49, %c0_50] : memref<32x8xbf16, #tpu.memory_space<vmem>>, vector<32x8xbf16>
    %cst_51 = arith.constant dense<0.000000e+00> : vector<256x8xf32>
    %149 = tpu.matmul %147, %148, %cst_51 {dimension_numbers = #tpu.dot_dimension_numbers<[1], [0], [0], [1], [0, 0, 1, 1], [], []>} : vector<256x32xbf16>, vector<32x8xbf16>, vector<256x8xf32> -> vector<256x8xf32>
    %150 = arith.addf %2, %149 : vector<256x8xf32>
    %c0_52 = arith.constant 0 : index
    %c0_53 = arith.constant 0 : index
    %151 = vector.load %arg11[%c0_52, %c0_53] : memref<1x8xf32, #tpu.memory_space<vmem>>, vector<1x8xf32>
    %152 = vector.broadcast %151 : vector<1x8xf32> to vector<256x8xf32>
    %153 = arith.addf %150, %152 : vector<256x8xf32>
    %154 = vector.shape_cast %153 : vector<256x8xf32> to vector<16x16x8xf32>
    %c0_54 = arith.constant 0 : index
    %c0_55 = arith.constant 0 : index
    %c0_56 = arith.constant 0 : index
    %c0_57 = arith.constant 0 : index
    %155 = vector.load %arg12[%c0_54, %c0_55, %c0_56, %c0_57] : memref<1x16x16x8xf32, #tpu.memory_space<vmem>>, vector<1x16x16x8xf32>
    %156 = vector.shape_cast %155 : vector<1x16x16x8xf32> to vector<16x16x8xf32>
    %157 = vector.shape_cast %154 : vector<16x16x8xf32> to vector<1x16x16x8xf32>
    tpu.vector_store %arg12[%c0_54, %c0_55, %c0_56, %c0_57], %157 {strides = array<i32>} : memref<1x16x16x8xf32, #tpu.memory_space<vmem>>, vector<1x16x16x8xf32>,
    return
  }
  func.func @transform_0(%arg0: i32) -> (i32, i32, i32, i32) {
    %c0_i32 = arith.constant 0 : i32
    %c0_i32_0 = arith.constant 0 : i32
    %c0_i32_1 = arith.constant 0 : i32
    %c0_i32_2 = arith.constant 0 : i32
    return %arg0, %c0_i32, %c0_i32_0, %c0_i32_1 : i32, i32, i32, i32
  }
  func.func @transform_1(%arg0: i32) -> (i32, i32) {
    %c0_i32 = arith.constant 0 : i32
    %c0_i32_0 = arith.constant 0 : i32
    %c0_i32_1 = arith.constant 0 : i32
    return %c0_i32, %c0_i32_0 : i32, i32
  }
  func.func @transform_2(%arg0: i32) -> (i32, i32) {
    %c0_i32 = arith.constant 0 : i32
    %c0_i32_0 = arith.constant 0 : i32
    %c0_i32_1 = arith.constant 0 : i32
    return %c0_i32, %c0_i32_0 : i32, i32
  }
  func.func @transform_3(%arg0: i32) -> (i32, i32) {
    %c0_i32 = arith.constant 0 : i32
    %c0_i32_0 = arith.constant 0 : i32
    %c0_i32_1 = arith.constant 0 : i32
    return %c0_i32, %c0_i32_0 : i32, i32
  }
  func.func @transform_4(%arg0: i32) -> (i32, i32) {
    %c0_i32 = arith.constant 0 : i32
    %c0_i32_0 = arith.constant 0 : i32
    %c0_i32_1 = arith.constant 0 : i32
    return %c0_i32, %c0_i32_0 : i32, i32
  }
  func.func @transform_5(%arg0: i32) -> (i32, i32) {
    %c0_i32 = arith.constant 0 : i32
    %c0_i32_0 = arith.constant 0 : i32
    %c0_i32_1 = arith.constant 0 : i32
    return %c0_i32, %c0_i32_0 : i32, i32
  }
  func.func @transform_6(%arg0: i32) -> (i32, i32) {
    %c0_i32 = arith.constant 0 : i32
    %c0_i32_0 = arith.constant 0 : i32
    %c0_i32_1 = arith.constant 0 : i32
    return %c0_i32, %c0_i32_0 : i32, i32
  }
  func.func @transform_7(%arg0: i32) -> (i32, i32) {
    %c0_i32 = arith.constant 0 : i32
    %c0_i32_0 = arith.constant 0 : i32
    %c0_i32_1 = arith.constant 0 : i32
    return %c0_i32, %c0_i32_0 : i32, i32
  }
  func.func @transform_8(%arg0: i32) -> (i32, i32) {
    %c0_i32 = arith.constant 0 : i32
    %c0_i32_0 = arith.constant 0 : i32
    %c0_i32_1 = arith.constant 0 : i32
    return %c0_i32, %c0_i32_0 : i32, i32
  }
  func.func @transform_9(%arg0: i32) -> (i32, i32) {
    %c0_i32 = arith.constant 0 : i32
    %c0_i32_0 = arith.constant 0 : i32
    %c0_i32_1 = arith.constant 0 : i32
    return %c0_i32, %c0_i32_0 : i32, i32
  }
  func.func @transform_10(%arg0: i32) -> (i32, i32) {
    %c0_i32 = arith.constant 0 : i32
    %c0_i32_0 = arith.constant 0 : i32
    %c0_i32_1 = arith.constant 0 : i32
    return %c0_i32, %c0_i32_0 : i32, i32
  }
  func.func @transform_11(%arg0: i32) -> (i32, i32, i32, i32) {
    %c0_i32 = arith.constant 0 : i32
    %c0_i32_0 = arith.constant 0 : i32
    %c0_i32_1 = arith.constant 0 : i32
    %c0_i32_2 = arith.constant 0 : i32
    return %arg0, %c0_i32, %c0_i32_0, %c0_i32_1 : i32, i32, i32, i32
  }
}

</mosaic_0001>

<llo_original>
// kernel: tpu_custom_call.1
$region0: #{tpu_custom_call.1}
  #allocation0 [shape = 'u32[]', space=smem, size = 0x4, offset = 0x4, fixed_abs, tag = 'smem constant byte address 0x4 - core index']
  #allocation1 [shape = 'u32[144,128]{1,0:T(1,128)}', space=vmem, size = 0x12000, scoped, tag = 'internal scratch']
  %s0 = inlined_call_operand.vmem [shape: f32[2,16,16,8], index: 0, kind: input, shape index: {}]
  %s1 = inlined_call_operand.vmem [shape: bf16[8,32], index: 1, kind: input, shape index: {}]
  %s2 = inlined_call_operand.vmem [shape: f32[1,32], index: 2, kind: input, shape index: {}]
  %s3 = inlined_call_operand.vmem [shape: f32[9,32], index: 3, kind: input, shape index: {}]
  %s4 = inlined_call_operand.vmem [shape: f32[1,32], index: 4, kind: input, shape index: {}]
  %s5 = inlined_call_operand.vmem [shape: f32[32,8], index: 5, kind: input, shape index: {}]
  %s6 = inlined_call_operand.vmem [shape: f32[1,8], index: 6, kind: input, shape index: {}]
  %s7 = inlined_call_operand.vmem [shape: f32[8,32], index: 7, kind: input, shape index: {}]
  %s8 = inlined_call_operand.vmem [shape: f32[1,32], index: 8, kind: input, shape index: {}]
  %s9 = inlined_call_operand.vmem [shape: bf16[32,8], index: 9, kind: input, shape index: {}]
  %s10 = inlined_call_operand.vmem [shape: f32[1,8], index: 10, kind: input, shape index: {}]
  %s11 = inlined_call_operand.vmem [shape: f32[2,16,16,8], index: 11, kind: output, shape index: {}]
  %s12 = sld [smem:[#allocation0]]
  $region77: #{tpu_custom_call.1} parent=0
    _
  %s14 = ssub.s32 1, %s12
  %s15 = scalar_select 0, %s14, %s12
  loop: start=0, step=1, limit=4
  $region2: #{tpu_custom_call.1} parent=0 // loop_pre_header
    _
  $region3: #{tpu_custom_call.1} parent=0 // loop_header
    %s17 = sphi 0, %s21
    %p18 = scmp.ge.s32.totalorder %s17, 4
    %s27 = sphi 0, %s29
    %s30 = sphi 0, %s27
    %s31 = sphi 0, %s30
    %s47 = sphi 0, %s31
    %s51 = sphi 0, %s51
    %s53 = sphi 0, %s51
    %s54 = sphi 0, %s53
    %s68 = sphi 0, %s54
    %s72 = sphi 0, %s72
    %s74 = sphi 0, %s72
    %s75 = sphi 0, %s74
    %s89 = sphi 0, %s75
    %s93 = sphi 0, %s93
    %s95 = sphi 0, %s93
    %s96 = sphi 0, %s95
    %s110 = sphi 0, %s96
    %s114 = sphi 0, %s114
    %s116 = sphi 0, %s114
    %s117 = sphi 0, %s116
    %s131 = sphi 0, %s117
    %s135 = sphi 0, %s135
    %s137 = sphi 0, %s135
    %s138 = sphi 0, %s137
    %s152 = sphi 0, %s138
    %s156 = sphi 0, %s156
    %s158 = sphi 0, %s156
    %s159 = sphi 0, %s158
    %s173 = sphi 0, %s159
    %s177 = sphi 0, %s177
    %s179 = sphi 0, %s177
    %s180 = sphi 0, %s179
    %s194 = sphi 0, %s180
    %s198 = sphi 0, %s198
    %s200 = sphi 0, %s198
    %s201 = sphi 0, %s200
    %s215 = sphi 0, %s201
    %s219 = sphi 0, %s219
    %s221 = sphi 0, %s219
    %s222 = sphi 0, %s221
    %s236 = sphi 0, %s222
    %s240 = sphi 0, %s240
    %s242 = sphi 0, %s240
    %s243 = sphi 0, %s242
    %s257 = sphi 0, %s243
    %s263 = sphi 0, %s265
    %s266 = sphi 0, %s263
    %s267 = sphi 0, %s266
    %s283 = sphi 0, %s267
  $region4: #{tpu_custom_call.1} parent=0 // loop_header_branch
    %20 = sbr.rel (%p18) target = $region8
  $region5: #{tpu_custom_call.1} parent=0 // loop_body
    %s22 = ssub.s32 %s17, 1
    %s23 = ssub.s32 %s17, 2
    %s24 = sadd.s32 %s17, 1
    %s25 = ssub.s32 %s17, %s24
    %p26 = scmp.eq.s32.totalorder %s25, 0
    %s28 = sadd.s32 %s27, 1
    %s29 = scalar_select %p26, %s27, %s28
    %p32 = pneg %p26
    %p33 = scmp.eq.s32.totalorder %s17, 1
    %p34 = por %p32, %p33
    %p35 = scmp.ne.s32.totalorder %s27, %s30
    %p36 = scmp.eq.s32.totalorder %s17, 0
    %p37 = por %p35, %p36
    %p38 = scmp.ne.s32.totalorder %s27, %s30
    %p39 = scmp.eq.s32.totalorder %s22, 1
    %p40 = por %p38, %p39
    %p41 = scmp.ne.s32.totalorder %s30, %s31
    %p42 = scmp.eq.s32.totalorder %s22, 0
    %p43 = por %p41, %p42
    %p44 = scmp.ne.s32.totalorder %s30, %s31
    %p45 = scmp.eq.s32.totalorder %s23, 1
    %p46 = por %p44, %p45
    %p48 = scmp.ne.s32.totalorder %s31, %s47
    %p49 = scmp.eq.s32.totalorder %s23, 0
    %p50 = por %p48, %p49
    %s52 = sadd.s32 %s51, 1
    %p55 = scmp.eq.s32.totalorder %s17, 1
    %p56 = scmp.ne.s32.totalorder %s51, %s53
    %p57 = scmp.eq.s32.totalorder %s17, 0
    %p58 = por %p56, %p57
    %p59 = scmp.ne.s32.totalorder %s51, %s53
    %p60 = scmp.eq.s32.totalorder %s22, 1
    %p61 = por %p59, %p60
    %p62 = scmp.ne.s32.totalorder %s53, %s54
    %p63 = scmp.eq.s32.totalorder %s22, 0
    %p64 = por %p62, %p63
    %p65 = scmp.ne.s32.totalorder %s53, %s54
    %p66 = scmp.eq.s32.totalorder %s23, 1
    %p67 = por %p65, %p66
    %p69 = scmp.ne.s32.totalorder %s54, %s68
    %p70 = scmp.eq.s32.totalorder %s23, 0
    %p71 = por %p69, %p70
    %s73 = sadd.s32 %s72, 1
    %p76 = scmp.eq.s32.totalorder %s17, 1
    %p77 = scmp.ne.s32.totalorder %s72, %s74
    %p78 = scmp.eq.s32.totalorder %s17, 0
    %p79 = por %p77, %p78
    %p80 = scmp.ne.s32.totalorder %s72, %s74
    %p81 = scmp.eq.s32.totalorder %s22, 1
    %p82 = por %p80, %p81
    %p83 = scmp.ne.s32.totalorder %s74, %s75
    %p84 = scmp.eq.s32.totalorder %s22, 0
    %p85 = por %p83, %p84
    %p86 = scmp.ne.s32.totalorder %s74, %s75
    %p87 = scmp.eq.s32.totalorder %s23, 1
    %p88 = por %p86, %p87
    %p90 = scmp.ne.s32.totalorder %s75, %s89
    %p91 = scmp.eq.s32.totalorder %s23, 0
    %p92 = por %p90, %p91
    %s94 = sadd.s32 %s93, 1
    %p97 = scmp.eq.s32.totalorder %s17, 1
    %p98 = scmp.ne.s32.totalorder %s93, %s95
    %p99 = scmp.eq.s32.totalorder %s17, 0
    %p100 = por %p98, %p99
    %p101 = scmp.ne.s32.totalorder %s93, %s95
    %p102 = scmp.eq.s32.totalorder %s22, 1
    %p103 = por %p101, %p102
    %p104 = scmp.ne.s32.totalorder %s95, %s96
    %p105 = scmp.eq.s32.totalorder %s22, 0
    %p106 = por %p104, %p105
    %p107 = scmp.ne.s32.totalorder %s95, %s96
    %p108 = scmp.eq.s32.totalorder %s23, 1
    %p109 = por %p107, %p108
    %p111 = scmp.ne.s32.totalorder %s96, %s110
    %p112 = scmp.eq.s32.totalorder %s23, 0
    %p113 = por %p111, %p112
    %s115 = sadd.s32 %s114, 1
    %p118 = scmp.eq.s32.totalorder %s17, 1
    %p119 = scmp.ne.s32.totalorder %s114, %s116
    %p120 = scmp.eq.s32.totalorder %s17, 0
    %p121 = por %p119, %p120
    %p122 = scmp.ne.s32.totalorder %s114, %s116
    %p123 = scmp.eq.s32.totalorder %s22, 1
    %p124 = por %p122, %p123
    %p125 = scmp.ne.s32.totalorder %s116, %s117
    %p126 = scmp.eq.s32.totalorder %s22, 0
    %p127 = por %p125, %p126
    %p128 = scmp.ne.s32.totalorder %s116, %s117
    %p129 = scmp.eq.s32.totalorder %s23, 1
    %p130 = por %p128, %p129
    %p132 = scmp.ne.s32.totalorder %s117, %s131
    %p133 = scmp.eq.s32.totalorder %s23, 0
    %p134 = por %p132, %p133
    %s136 = sadd.s32 %s135, 1
    %p139 = scmp.eq.s32.totalorder %s17, 1
    %p140 = scmp.ne.s32.totalorder %s135, %s137
    %p141 = scmp.eq.s32.totalorder %s17, 0
    %p142 = por %p140, %p141
    %p143 = scmp.ne.s32.totalorder %s135, %s137
    %p144 = scmp.eq.s32.totalorder %s22, 1
    %p145 = por %p143, %p144
    %p146 = scmp.ne.s32.totalorder %s137, %s138
    %p147 = scmp.eq.s32.totalorder %s22, 0
    %p148 = por %p146, %p147
    %p149 = scmp.ne.s32.totalorder %s137, %s138
    %p150 = scmp.eq.s32.totalorder %s23, 1
    %p151 = por %p149, %p150
    %p153 = scmp.ne.s32.totalorder %s138, %s152
    %p154 = scmp.eq.s32.totalorder %s23, 0
    %p155 = por %p153, %p154
    %s157 = sadd.s32 %s156, 1
    %p160 = scmp.eq.s32.totalorder %s17, 1
    %p161 = scmp.ne.s32.totalorder %s156, %s158
    %p162 = scmp.eq.s32.totalorder %s17, 0
    %p163 = por %p161, %p162
    %p164 = scmp.ne.s32.totalorder %s156, %s158
    %p165 = scmp.eq.s32.totalorder %s22, 1
    %p166 = por %p164, %p165
    %p167 = scmp.ne.s32.totalorder %s158, %s159
    %p168 = scmp.eq.s32.totalorder %s22, 0
    %p169 = por %p167, %p168
    %p170 = scmp.ne.s32.totalorder %s158, %s159
    %p171 = scmp.eq.s32.totalorder %s23, 1
    %p172 = por %p170, %p171
    %p174 = scmp.ne.s32.totalorder %s159, %s173
    %p175 = scmp.eq.s32.totalorder %s23, 0
    %p176 = por %p174, %p175
    %s178 = sadd.s32 %s177, 1
    %p181 = scmp.eq.s32.totalorder %s17, 1
    %p182 = scmp.ne.s32.totalorder %s177, %s179
    %p183 = scmp.eq.s32.totalorder %s17, 0
    %p184 = por %p182, %p183
    %p185 = scmp.ne.s32.totalorder %s177, %s179
    %p186 = scmp.eq.s32.totalorder %s22, 1
    %p187 = por %p185, %p186
    %p188 = scmp.ne.s32.totalorder %s179, %s180
    %p189 = scmp.eq.s32.totalorder %s22, 0
    %p190 = por %p188, %p189
    %p191 = scmp.ne.s32.totalorder %s179, %s180
    %p192 = scmp.eq.s32.totalorder %s23, 1
    %p193 = por %p191, %p192
    %p195 = scmp.ne.s32.totalorder %s180, %s194
    %p196 = scmp.eq.s32.totalorder %s23, 0
    %p197 = por %p195, %p196
    %s199 = sadd.s32 %s198, 1
    %p202 = scmp.eq.s32.totalorder %s17, 1
    %p203 = scmp.ne.s32.totalorder %s198, %s200
    %p204 = scmp.eq.s32.totalorder %s17, 0
    %p205 = por %p203, %p204
    %p206 = scmp.ne.s32.totalorder %s198, %s200
    %p207 = scmp.eq.s32.totalorder %s22, 1
    %p208 = por %p206, %p207
    %p209 = scmp.ne.s32.totalorder %s200, %s201
    %p210 = scmp.eq.s32.totalorder %s22, 0
    %p211 = por %p209, %p210
    %p212 = scmp.ne.s32.totalorder %s200, %s201
    %p213 = scmp.eq.s32.totalorder %s23, 1
    %p214 = por %p212, %p213
    %p216 = scmp.ne.s32.totalorder %s201, %s215
    %p217 = scmp.eq.s32.totalorder %s23, 0
    %p218 = por %p216, %p217
    %s220 = sadd.s32 %s219, 1
    %p223 = scmp.eq.s32.totalorder %s17, 1
    %p224 = scmp.ne.s32.totalorder %s219, %s221
    %p225 = scmp.eq.s32.totalorder %s17, 0
    %p226 = por %p224, %p225
    %p227 = scmp.ne.s32.totalorder %s219, %s221
    %p228 = scmp.eq.s32.totalorder %s22, 1
    %p229 = por %p227, %p228
    %p230 = scmp.ne.s32.totalorder %s221, %s222
    %p231 = scmp.eq.s32.totalorder %s22, 0
    %p232 = por %p230, %p231
    %p233 = scmp.ne.s32.totalorder %s221, %s222
    %p234 = scmp.eq.s32.totalorder %s23, 1
    %p235 = por %p233, %p234
    %p237 = scmp.ne.s32.totalorder %s222, %s236
    %p238 = scmp.eq.s32.totalorder %s23, 0
    %p239 = por %p237, %p238
    %s241 = sadd.s32 %s240, 1
    %p244 = scmp.eq.s32.totalorder %s17, 1
    %p245 = scmp.ne.s32.totalorder %s240, %s242
    %p246 = scmp.eq.s32.totalorder %s17, 0
    %p247 = por %p245, %p246
    %p248 = scmp.ne.s32.totalorder %s240, %s242
    %p249 = scmp.eq.s32.totalorder %s22, 1
    %p250 = por %p248, %p249
    %p251 = scmp.ne.s32.totalorder %s242, %s243
    %p252 = scmp.eq.s32.totalorder %s22, 0
    %p253 = por %p251, %p252
    %p254 = scmp.ne.s32.totalorder %s242, %s243
    %p255 = scmp.eq.s32.totalorder %s23, 1
    %p256 = por %p254, %p255
    %p258 = scmp.ne.s32.totalorder %s243, %s257
    %p259 = scmp.eq.s32.totalorder %s23, 0
    %p260 = por %p258, %p259
    %s261 = ssub.s32 %s17, %s24
    %p262 = scmp.eq.s32.totalorder %s261, 0
    %s264 = sadd.s32 %s263, 1
    %s265 = scalar_select %p262, %s263, %s264
    %p268 = pneg %p262
    %p269 = scmp.eq.s32.totalorder %s17, 1
    %p270 = por %p268, %p269
    %p271 = scmp.ne.s32.totalorder %s263, %s266
    %p272 = scmp.eq.s32.totalorder %s17, 0
    %p273 = por %p271, %p272
    %p274 = scmp.ne.s32.totalorder %s263, %s266
    %p275 = scmp.eq.s32.totalorder %s22, 1
    %p276 = por %p274, %p275
    %p277 = scmp.ne.s32.totalorder %s266, %s267
    %p278 = scmp.eq.s32.totalorder %s22, 0
    %p279 = por %p277, %p278
    %p280 = scmp.ne.s32.totalorder %s266, %s267
    %p281 = scmp.eq.s32.totalorder %s23, 1
    %p282 = por %p280, %p281
    %p284 = scmp.ne.s32.totalorder %s267, %s283
    %p285 = scmp.eq.s32.totalorder %s23, 0
    %p286 = por %p284, %p285
    %p287 = scmp.le.s32.totalorder 1, %s17
    %p288 = scmp.lt.s32.totalorder %s17, 3
    %p289 = pnand %p287, %p288
    %p290 = pneg %p289
    // Predicated region
    $region9: #{tpu_custom_call.1} parent=5 // pred_check
      _
    $region10: #{tpu_custom_call.1} parent=5 // pred_check_branch
      %292 = sbr.rel (%p289) target = $region12
    $region11: #{tpu_custom_call.1} parent=5 // pred_region
      %s293 = ssub.s32 %s17, 1
      // Predicated region
      $region13: #{tpu_custom_call.1} parent=11 // pred_check
        %p294 = pneg %p64
      $region14: #{tpu_custom_call.1} parent=11 // pred_check_branch
        %296 = sbr.rel (%p294) target = $region16
      $region15: #{tpu_custom_call.1} parent=11 // pred_region
        _
      $region16: #{tpu_custom_call.1} parent=11 // pred_fallthru
        _
      // Predicated region
      $region17: #{tpu_custom_call.1} parent=11 // pred_check
        %p297 = pneg %p85
      $region18: #{tpu_custom_call.1} parent=11 // pred_check_branch
        %299 = sbr.rel (%p297) target = $region20
      $region19: #{tpu_custom_call.1} parent=11 // pred_region
        _
      $region20: #{tpu_custom_call.1} parent=11 // pred_fallthru
        _
      // Predicated region
      $region21: #{tpu_custom_call.1} parent=11 // pred_check
        %p300 = pneg %p106
      $region22: #{tpu_custom_call.1} parent=11 // pred_check_branch
        %302 = sbr.rel (%p300) target = $region24
      $region23: #{tpu_custom_call.1} parent=11 // pred_region
        _
      $region24: #{tpu_custom_call.1} parent=11 // pred_fallthru
        _
      // Predicated region
      $region25: #{tpu_custom_call.1} parent=11 // pred_check
        %p303 = pneg %p127
      $region26: #{tpu_custom_call.1} parent=11 // pred_check_branch
        %305 = sbr.rel (%p303) target = $region28
      $region27: #{tpu_custom_call.1} parent=11 // pred_region
        _
      $region28: #{tpu_custom_call.1} parent=11 // pred_fallthru
        _
      // Predicated region
      $region29: #{tpu_custom_call.1} parent=11 // pred_check
        %p306 = pneg %p148
      $region30: #{tpu_custom_call.1} parent=11 // pred_check_branch
        %308 = sbr.rel (%p306) target = $region32
      $region31: #{tpu_custom_call.1} parent=11 // pred_region
        _
      $region32: #{tpu_custom_call.1} parent=11 // pred_fallthru
        _
      // Predicated region
      $region33: #{tpu_custom_call.1} parent=11 // pred_check
        %p309 = pneg %p169
      $region34: #{tpu_custom_call.1} parent=11 // pred_check_branch
        %311 = sbr.rel (%p309) target = $region36
      $region35: #{tpu_custom_call.1} parent=11 // pred_region
        _
      $region36: #{tpu_custom_call.1} parent=11 // pred_fallthru
        _
      // Predicated region
      $region37: #{tpu_custom_call.1} parent=11 // pred_check
        %p312 = pneg %p190
      $region38: #{tpu_custom_call.1} parent=11 // pred_check_branch
        %314 = sbr.rel (%p312) target = $region40
      $region39: #{tpu_custom_call.1} parent=11 // pred_region
        _
      $region40: #{tpu_custom_call.1} parent=11 // pred_fallthru
        _
      // Predicated region
      $region41: #{tpu_custom_call.1} parent=11 // pred_check
        %p315 = pneg %p211
      $region42: #{tpu_custom_call.1} parent=11 // pred_check_branch
        %317 = sbr.rel (%p315) target = $region44
      $region43: #{tpu_custom_call.1} parent=11 // pred_region
        _
      $region44: #{tpu_custom_call.1} parent=11 // pred_fallthru
        _
      // Predicated region
      $region45: #{tpu_custom_call.1} parent=11 // pred_check
        %p318 = pneg %p232
      $region46: #{tpu_custom_call.1} parent=11 // pred_check_branch
        %320 = sbr.rel (%p318) target = $region48
      $region47: #{tpu_custom_call.1} parent=11 // pred_region
        _
      $region48: #{tpu_custom_call.1} parent=11 // pred_fallthru
        _
      // Predicated region
      $region49: #{tpu_custom_call.1} parent=11 // pred_check
        %p321 = pneg %p253
      $region50: #{tpu_custom_call.1} parent=11 // pred_check_branch
        %323 = sbr.rel (%p321) target = $region52
      $region51: #{tpu_custom_call.1} parent=11 // pred_region
        _
      $region52: #{tpu_custom_call.1} parent=11 // pred_fallthru
        _
    $region12: #{tpu_custom_call.1} parent=5 // pred_fallthru
      _
    %p324 = scmp.lt.s32.totalorder %s17, 2
    // Predicated region
    $region53: #{tpu_custom_call.1} parent=5 // pred_check
      %p325 = pneg %p324
    $region54: #{tpu_custom_call.1} parent=5 // pred_check_branch
      %327 = sbr.rel (%p325) target = $region56
    $region55: #{tpu_custom_call.1} parent=5 // pred_region
      // Predicated region
      $region57: #{tpu_custom_call.1} parent=55 // pred_check
        %p328 = pneg %p37
      $region58: #{tpu_custom_call.1} parent=55 // pred_check_branch
        %330 = sbr.rel (%p328) target = $region60
      $region59: #{tpu_custom_call.1} parent=55 // pred_region
        %p331 = scmp.lt.s32.totalorder %s17, 1
        %s332 = scalar_select %p331, %s17, 1
        %s333 = smul.addr %s332, 32
        %s334 = smul.addr %s333, 8
        %s335 = scalar_lea.vmem %s0, %s334
      $region60: #{tpu_custom_call.1} parent=55 // pred_fallthru
        _
    $region56: #{tpu_custom_call.1} parent=5 // pred_fallthru
      _
    %p336 = scmp.le.s32.totalorder 1, %s17
    %p337 = scmp.lt.s32.totalorder %s17, 3
    %p338 = pnand %p336, %p337
    %p339 = pneg %p338
    // Predicated region
    $region61: #{tpu_custom_call.1} parent=5 // pred_check
      _
    $region62: #{tpu_custom_call.1} parent=5 // pred_check_branch
      %341 = sbr.rel (%p338) target = $region64
    $region63: #{tpu_custom_call.1} parent=5 // pred_region
      %s342 = ssub.s32 %s17, 1
      %p343 = scmp.lt.s32.totalorder %s22, 1
      %s344 = scalar_select %p343, %s22, 1
      %s345 = smul.addr %s344, 32
      %s346 = smul.addr %s345, 8
      %s347 = scalar_lea.vmem %s0, %s346
      %p348 = pneg %p43
      %p349 = pneg %p40
      %p350 = pneg %p64
      %p351 = pneg %p61
      %p352 = pneg %p85
      %p353 = pneg %p82
      %p354 = pneg %p106
      %p355 = pneg %p103
      %p356 = pneg %p127
      %p357 = pneg %p124
      %p358 = pneg %p148
      %p359 = pneg %p145
      %p360 = pneg %p169
      %p361 = pneg %p166
      %p362 = pneg %p190
      %p363 = pneg %p187
      %p364 = pneg %p211
      %p365 = pneg %p208
      %p366 = pneg %p232
      %p367 = pneg %p229
      %p368 = pneg %p253
      %p369 = pneg %p250
      %p370 = pneg %p279
      %p371 = pneg %p276
      %p372 = scmp.lt.s32.totalorder %s22, 1
      %s373 = scalar_select %p372, %s22, 1
      %s374 = smul.addr %s373, 32
      %s375 = smul.addr %s374, 8
      %s376 = scalar_lea.vmem %s11, %s375
      %p377 = scmp.lt.s32.totalorder %s22, 1
      %s378 = scalar_select %p377, %s22, 1
      %s379 = smul.addr %s378, 32
      %s380 = smul.addr %s379, 8
      %s381 = scalar_lea.vmem %s0, %s380
      %p382 = scmp.lt.s32.totalorder %s22, 1
      %s383 = scalar_select %p382, %s22, 1
      %s384 = smul.addr %s383, 32
      %s385 = smul.addr %s384, 8
      %s386 = scalar_lea.vmem %s11, %s385
      %v388 = vld [vmem:[%s381] sm:$0xff]
      %v389 = vld [vmem:[%s381 + $0x8] sm:$0xff]
      %v390 = vld [vmem:[%s381 + $0x10] sm:$0xff]
      %v391 = vld [vmem:[%s381 + $0x18] sm:$0xff]
      %v392 = vld [vmem:[%s381 + $0x20] sm:$0xff]
      %v393 = vld [vmem:[%s381 + $0x28] sm:$0xff]
      %v394 = vld [vmem:[%s381 + $0x30] sm:$0xff]
      %v395 = vld [vmem:[%s381 + $0x38] sm:$0xff]
      %v396 = vld [vmem:[%s381 + $0x40] sm:$0xff]
      %v397 = vld [vmem:[%s381 + $0x48] sm:$0xff]
      %v398 = vld [vmem:[%s381 + $0x50] sm:$0xff]
      %v399 = vld [vmem:[%s381 + $0x58] sm:$0xff]
      %v400 = vld [vmem:[%s381 + $0x60] sm:$0xff]
      %v401 = vld [vmem:[%s381 + $0x68] sm:$0xff]
      %v402 = vld [vmem:[%s381 + $0x70] sm:$0xff]
      %v403 = vld [vmem:[%s381 + $0x78] sm:$0xff]
      %v404 = vld [vmem:[%s381 + $0x80] sm:$0xff]
      %v405 = vld [vmem:[%s381 + $0x88] sm:$0xff]
      %v406 = vld [vmem:[%s381 + $0x90] sm:$0xff]
      %v407 = vld [vmem:[%s381 + $0x98] sm:$0xff]
      %v408 = vld [vmem:[%s381 + $0xa0] sm:$0xff]
      %v409 = vld [vmem:[%s381 + $0xa8] sm:$0xff]
      %v410 = vld [vmem:[%s381 + $0xb0] sm:$0xff]
      %v411 = vld [vmem:[%s381 + $0xb8] sm:$0xff]
      %v412 = vld [vmem:[%s381 + $0xc0] sm:$0xff]
      %v413 = vld [vmem:[%s381 + $0xc8] sm:$0xff]
      %v414 = vld [vmem:[%s381 + $0xd0] sm:$0xff]
      %v415 = vld [vmem:[%s381 + $0xd8] sm:$0xff]
      %v416 = vld [vmem:[%s381 + $0xe0] sm:$0xff]
      %v417 = vld [vmem:[%s381 + $0xe8] sm:$0xff]
      %v418 = vld [vmem:[%s381 + $0xf0] sm:$0xff]
      %v419 = vld [vmem:[%s381 + $0xf8] sm:$0xff]
      %v420 = vpack.c.bf16 %v389, %v388
      %v421 = vpack.c.bf16 %v391, %v390
      %v422 = vpack.c.bf16 %v393, %v392
      %v423 = vpack.c.bf16 %v395, %v394
      %v424 = vpack.c.bf16 %v397, %v396
      %v425 = vpack.c.bf16 %v399, %v398
      %v426 = vpack.c.bf16 %v401, %v400
      %v427 = vpack.c.bf16 %v403, %v402
      %v428 = vpack.c.bf16 %v405, %v404
      %v429 = vpack.c.bf16 %v407, %v406
      %v430 = vpack.c.bf16 %v409, %v408
      %v431 = vpack.c.bf16 %v411, %v410
      %v432 = vpack.c.bf16 %v413, %v412
      %v433 = vpack.c.bf16 %v415, %v414
      %v434 = vpack.c.bf16 %v417, %v416
      %v435 = vpack.c.bf16 %v419, %v418
      %v436 = vld [vmem:[%s1] sm:$0xf]
      %v437 = vld [vmem:[%s2] sm:$0x1]
      %v439 = vlaneseq
      %v440 = vshrl.u32 %v439, 7
      %v441 = vsub.s32 0, %v440
      %v442 = vrot.slane %v437, %v441
      %vm444 = vcmask 64512
      %v446 = vsel %vm444, %v420, 0
      %v449 = vsel %vm444, %v421, 0
      %v452 = vsel %vm444, %v422, 0
      %v455 = vsel %vm444, %v423, 0
      %v458 = vsel %vm444, %v424, 0
      %v461 = vsel %vm444, %v425, 0
      %v464 = vsel %vm444, %v426, 0
      %v467 = vsel %vm444, %v427, 0
      %v470 = vsel %vm444, %v428, 0
      %v473 = vsel %vm444, %v429, 0
      %v476 = vsel %vm444, %v430, 0
      %v479 = vsel %vm444, %v431, 0
      %v482 = vsel %vm444, %v432, 0
      %v485 = vsel %vm444, %v433, 0
      %v488 = vsel %vm444, %v434, 0
      %v491 = vsel %vm444, %v435, 0
      %vm493 = vcmask 1043456
      %v495 = vsel %vm493, %v436, 0
      %497 = vmatprep.subr.bf16.mxu0 0
      %498 = vmatpush1.bf16.msra.mxu0 0
      %499 = vmatprep.subr.bf16.mxu0 0
      %500 = vmatpush1.bf16.msra.mxu0 0
      %501 = vmatprep.subr.bf16.mxu0 0
      %502 = vmatpush1.bf16.msra.mxu0 0
      %503 = vmatprep.subr.bf16.mxu0 0
      %504 = vmatpush1.bf16.msra.mxu0 0
      %505 = vmatprep.subr.bf16.mxu0 0
      %506 = vmatpush1.bf16.msra.mxu0 0
      %507 = vmatprep.subr.bf16.mxu0 0
      %508 = vmatpush1.bf16.msra.mxu0 0
      %509 = vmatprep.subr.bf16.mxu0 0
      %510 = vmatpush1.bf16.msra.mxu0 0
      %511 = vmatprep.subr.bf16.mxu0 0
      %512 = vmatpush1.bf16.msra.mxu0 %v495
      %513 = vmatprep.subr.bf16.mxu0 0
      %514 = vmatpush2.bf16.msra.mxu0 0
      %515 = vmatprep.subr.bf16.mxu0 0
      %516 = vmatpush2.bf16.msra.mxu0 0
      %517 = vmatprep.subr.bf16.mxu0 0
      %518 = vmatpush2.bf16.msra.mxu0 0
      %519 = vmatprep.subr.bf16.mxu0 0
      %520 = vmatpush2.bf16.msra.mxu0 0
      %521 = vmatprep.subr.bf16.mxu0 0
      %522 = vmatpush2.bf16.msra.mxu0 0
      %523 = vmatprep.subr.bf16.mxu0 0
      %524 = vmatpush2.bf16.msra.mxu0 0
      %525 = vmatprep.subr.bf16.mxu0 0
      %526 = vmatpush2.bf16.msra.mxu0 0
      %527 = vmatprep.subr.bf16.mxu0 0
      %528 = vmatpush2.bf16.msra.mxu0 0
      %529 = vmatprep.mubr.bf16.mxu0 0
      %530 = vmatmul.mubr.bf16.gmra.mxu0 %v446
      %v531 = vpop.f32.mrf.mxu0
      %v532 = vadd.f32 %v442, %v531
      %v533 = vpop.f32.mrf.mxu0
      %v534 = vpop.f32.mrf.mxu0
      %v535 = vadd.f32 %v442, %v534
      %v536 = vpop.f32.mrf.mxu0
      %537 = vmatprep.mubr.bf16.mxu0 0
      %538 = vmatmul.mubr.bf16.gmra.mxu0 %v449
      %v539 = vpop.f32.mrf.mxu0
      %v540 = vadd.f32 %v442, %v539
      %v541 = vpop.f32.mrf.mxu0
      %v542 = vpop.f32.mrf.mxu0
      %v543 = vadd.f32 %v442, %v542
      %v544 = vpop.f32.mrf.mxu0
      %545 = vmatprep.mubr.bf16.mxu0 0
      %546 = vmatmul.mubr.bf16.gmra.mxu0 %v452
      %v547 = vpop.f32.mrf.mxu0
      %v548 = vadd.f32 %v442, %v547
      %v549 = vpop.f32.mrf.mxu0
      %v550 = vpop.f32.mrf.mxu0
      %v551 = vadd.f32 %v442, %v550
      %v552 = vpop.f32.mrf.mxu0
      %553 = vmatprep.mubr.bf16.mxu0 0
      %554 = vmatmul.mubr.bf16.gmra.mxu0 %v455
      %v555 = vpop.f32.mrf.mxu0
      %v556 = vadd.f32 %v442, %v555
      %v557 = vpop.f32.mrf.mxu0
      %v558 = vpop.f32.mrf.mxu0
      %v559 = vadd.f32 %v442, %v558
      %v560 = vpop.f32.mrf.mxu0
      %561 = vmatprep.mubr.bf16.mxu0 0
      %562 = vmatmul.mubr.bf16.gmra.mxu0 %v458
      %v563 = vpop.f32.mrf.mxu0
      %v564 = vadd.f32 %v442, %v563
      %v565 = vpop.f32.mrf.mxu0
      %v566 = vpop.f32.mrf.mxu0
      %v567 = vadd.f32 %v442, %v566
      %v568 = vpop.f32.mrf.mxu0
      %569 = vmatprep.mubr.bf16.mxu0 0
      %570 = vmatmul.mubr.bf16.gmra.mxu0 %v461
      %v571 = vpop.f32.mrf.mxu0
      %v572 = vadd.f32 %v442, %v571
      %v573 = vpop.f32.mrf.mxu0
      %v574 = vpop.f32.mrf.mxu0
      %v575 = vadd.f32 %v442, %v574
      %v576 = vpop.f32.mrf.mxu0
      %577 = vmatprep.mubr.bf16.mxu0 0
      %578 = vmatmul.mubr.bf16.gmra.mxu0 %v464
      %v579 = vpop.f32.mrf.mxu0
      %v580 = vadd.f32 %v442, %v579
      %v581 = vpop.f32.mrf.mxu0
      %v582 = vpop.f32.mrf.mxu0
      %v583 = vadd.f32 %v442, %v582
      %v584 = vpop.f32.mrf.mxu0
      %585 = vmatprep.mubr.bf16.mxu0 0
      %586 = vmatmul.mubr.bf16.gmra.mxu0 %v467
      %v587 = vpop.f32.mrf.mxu0
      %v588 = vadd.f32 %v442, %v587
      %v589 = vpop.f32.mrf.mxu0
      %v590 = vpop.f32.mrf.mxu0
      %v591 = vadd.f32 %v442, %v590
      %v592 = vpop.f32.mrf.mxu0
      %593 = vmatprep.mubr.bf16.mxu0 0
      %594 = vmatmul.mubr.bf16.gmra.mxu0 %v470
      %v595 = vpop.f32.mrf.mxu0
      %v596 = vadd.f32 %v442, %v595
      %v597 = vpop.f32.mrf.mxu0
      %v598 = vpop.f32.mrf.mxu0
      %v599 = vadd.f32 %v442, %v598
      %v600 = vpop.f32.mrf.mxu0
      %601 = vmatprep.mubr.bf16.mxu0 0
      %602 = vmatmul.mubr.bf16.gmra.mxu0 %v473
      %v603 = vpop.f32.mrf.mxu0
      %v604 = vadd.f32 %v442, %v603
      %v605 = vpop.f32.mrf.mxu0
      %v606 = vpop.f32.mrf.mxu0
      %v607 = vadd.f32 %v442, %v606
      %v608 = vpop.f32.mrf.mxu0
      %609 = vmatprep.mubr.bf16.mxu0 0
      %610 = vmatmul.mubr.bf16.gmra.mxu0 %v476
      %v611 = vpop.f32.mrf.mxu0
      %v612 = vadd.f32 %v442, %v611
      %v613 = vpop.f32.mrf.mxu0
      %v614 = vpop.f32.mrf.mxu0
      %v615 = vadd.f32 %v442, %v614
      %v616 = vpop.f32.mrf.mxu0
      %617 = vmatprep.mubr.bf16.mxu0 0
      %618 = vmatmul.mubr.bf16.gmra.mxu0 %v479
      %v619 = vpop.f32.mrf.mxu0
      %v620 = vadd.f32 %v442, %v619
      %v621 = vpop.f32.mrf.mxu0
      %v622 = vpop.f32.mrf.mxu0
      %v623 = vadd.f32 %v442, %v622
      %v624 = vpop.f32.mrf.mxu0
      %625 = vmatprep.mubr.bf16.mxu0 0
      %626 = vmatmul.mubr.bf16.gmra.mxu0 %v482
      %v627 = vpop.f32.mrf.mxu0
      %v628 = vadd.f32 %v442, %v627
      %v629 = vpop.f32.mrf.mxu0
      %v630 = vpop.f32.mrf.mxu0
      %v631 = vadd.f32 %v442, %v630
      %v632 = vpop.f32.mrf.mxu0
      %633 = vmatprep.mubr.bf16.mxu0 0
      %634 = vmatmul.mubr.bf16.gmra.mxu0 %v485
      %v635 = vpop.f32.mrf.mxu0
      %v636 = vadd.f32 %v442, %v635
      %v637 = vpop.f32.mrf.mxu0
      %v638 = vpop.f32.mrf.mxu0
      %v639 = vadd.f32 %v442, %v638
      %v640 = vpop.f32.mrf.mxu0
      %641 = vmatprep.mubr.bf16.mxu0 0
      %642 = vmatmul.mubr.bf16.gmra.mxu0 %v488
      %v643 = vpop.f32.mrf.mxu0
      %v644 = vadd.f32 %v442, %v643
      %v645 = vpop.f32.mrf.mxu0
      %v646 = vpop.f32.mrf.mxu0
      %v647 = vadd.f32 %v442, %v646
      %v648 = vpop.f32.mrf.mxu0
      %649 = vmatprep.mubr.bf16.mxu0 0
      %650 = vmatmul.mubr.bf16.gmra.mxu0 %v491
      %v651 = vpop.f32.mrf.mxu0
      %v652 = vadd.f32 %v442, %v651
      %v653 = vpop.f32.mrf.mxu0
      %v654 = vpop.f32.mrf.mxu0
      %v655 = vadd.f32 %v442, %v654
      %v656 = vpop.f32.mrf.mxu0
      %657 = vdwg.mxu0
      %v658 = vadd.f32 %v532, 3.0
      %v659 = vadd.f32 %v535, 3.0
      %v660 = vadd.f32 %v540, 3.0
      %v661 = vadd.f32 %v543, 3.0
      %v662 = vadd.f32 %v548, 3.0
      %v663 = vadd.f32 %v551, 3.0
      %v664 = vadd.f32 %v556, 3.0
      %v665 = vadd.f32 %v559, 3.0
      %v666 = vadd.f32 %v564, 3.0
      %v667 = vadd.f32 %v567, 3.0
      %v668 = vadd.f32 %v572, 3.0
      %v669 = vadd.f32 %v575, 3.0
      %v670 = vadd.f32 %v580, 3.0
      %v671 = vadd.f32 %v583, 3.0
      %v672 = vadd.f32 %v588, 3.0
      %v673 = vadd.f32 %v591, 3.0
      %v674 = vadd.f32 %v596, 3.0
      %v675 = vadd.f32 %v599, 3.0
      %v676 = vadd.f32 %v604, 3.0
      %v677 = vadd.f32 %v607, 3.0
      %v678 = vadd.f32 %v612, 3.0
      %v679 = vadd.f32 %v615, 3.0
      %v680 = vadd.f32 %v620, 3.0
      %v681 = vadd.f32 %v623, 3.0
      %v682 = vadd.f32 %v628, 3.0
      %v683 = vadd.f32 %v631, 3.0
      %v684 = vadd.f32 %v636, 3.0
      %v685 = vadd.f32 %v639, 3.0
      %v686 = vadd.f32 %v644, 3.0
      %v687 = vadd.f32 %v647, 3.0
      %v688 = vadd.f32 %v652, 3.0
      %v689 = vadd.f32 %v655, 3.0
      %v690 = vmax.f32 %v658, 0.0
      %v691 = vmax.f32 %v659, 0.0
      %v692 = vmax.f32 %v660, 0.0
      %v693 = vmax.f32 %v661, 0.0
      %v694 = vmax.f32 %v662, 0.0
      %v695 = vmax.f32 %v663, 0.0
      %v696 = vmax.f32 %v664, 0.0
      %v697 = vmax.f32 %v665, 0.0
      %v698 = vmax.f32 %v666, 0.0
      %v699 = vmax.f32 %v667, 0.0
      %v700 = vmax.f32 %v668, 0.0
      %v701 = vmax.f32 %v669, 0.0
      %v702 = vmax.f32 %v670, 0.0
      %v703 = vmax.f32 %v671, 0.0
      %v704 = vmax.f32 %v672, 0.0
      %v705 = vmax.f32 %v673, 0.0
      %v706 = vmax.f32 %v674, 0.0
      %v707 = vmax.f32 %v675, 0.0
      %v708 = vmax.f32 %v676, 0.0
      %v709 = vmax.f32 %v677, 0.0
      %v710 = vmax.f32 %v678, 0.0
      %v711 = vmax.f32 %v679, 0.0
      %v712 = vmax.f32 %v680, 0.0
      %v713 = vmax.f32 %v681, 0.0
      %v714 = vmax.f32 %v682, 0.0
      %v715 = vmax.f32 %v683, 0.0
      %v716 = vmax.f32 %v684, 0.0
      %v717 = vmax.f32 %v685, 0.0
      %v718 = vmax.f32 %v686, 0.0
      %v719 = vmax.f32 %v687, 0.0
      %v720 = vmax.f32 %v688, 0.0
      %v721 = vmax.f32 %v689, 0.0
      %v722 = vmin.f32 %v690, 6.0
      %v723 = vmin.f32 %v691, 6.0
      %v724 = vmin.f32 %v692, 6.0
      %v725 = vmin.f32 %v693, 6.0
      %v726 = vmin.f32 %v694, 6.0
      %v727 = vmin.f32 %v695, 6.0
      %v728 = vmin.f32 %v696, 6.0
      %v729 = vmin.f32 %v697, 6.0
      %v730 = vmin.f32 %v698, 6.0
      %v731 = vmin.f32 %v699, 6.0
      %v732 = vmin.f32 %v700, 6.0
      %v733 = vmin.f32 %v701, 6.0
      %v734 = vmin.f32 %v702, 6.0
      %v735 = vmin.f32 %v703, 6.0
      %v736 = vmin.f32 %v704, 6.0
      %v737 = vmin.f32 %v705, 6.0
      %v738 = vmin.f32 %v706, 6.0
      %v739 = vmin.f32 %v707, 6.0
      %v740 = vmin.f32 %v708, 6.0
      %v741 = vmin.f32 %v709, 6.0
      %v742 = vmin.f32 %v710, 6.0
      %v743 = vmin.f32 %v711, 6.0
      %v744 = vmin.f32 %v712, 6.0
      %v745 = vmin.f32 %v713, 6.0
      %v746 = vmin.f32 %v714, 6.0
      %v747 = vmin.f32 %v715, 6.0
      %v748 = vmin.f32 %v716, 6.0
      %v749 = vmin.f32 %v717, 6.0
      %v750 = vmin.f32 %v718, 6.0
      %v751 = vmin.f32 %v719, 6.0
      %v752 = vmin.f32 %v720, 6.0
      %v753 = vmin.f32 %v721, 6.0
      %v754 = vmul.f32 %v532, %v722
      %v755 = vmul.f32 %v535, %v723
      %v756 = vmul.f32 %v540, %v724
      %v757 = vmul.f32 %v543, %v725
      %v758 = vmul.f32 %v548, %v726
      %v759 = vmul.f32 %v551, %v727
      %v760 = vmul.f32 %v556, %v728
      %v761 = vmul.f32 %v559, %v729
      %v762 = vmul.f32 %v564, %v730
      %v763 = vmul.f32 %v567, %v731
      %v764 = vmul.f32 %v572, %v732
      %v765 = vmul.f32 %v575, %v733
      %v766 = vmul.f32 %v580, %v734
      %v767 = vmul.f32 %v583, %v735
      %v768 = vmul.f32 %v588, %v736
      %v769 = vmul.f32 %v591, %v737
      %v770 = vmul.f32 %v596, %v738
      %v771 = vmul.f32 %v599, %v739
      %v772 = vmul.f32 %v604, %v740
      %v773 = vmul.f32 %v607, %v741
      %v774 = vmul.f32 %v612, %v742
      %v775 = vmul.f32 %v615, %v743
      %v776 = vmul.f32 %v620, %v744
      %v777 = vmul.f32 %v623, %v745
      %v778 = vmul.f32 %v628, %v746
      %v779 = vmul.f32 %v631, %v747
      %v780 = vmul.f32 %v636, %v748
      %v781 = vmul.f32 %v639, %v749
      %v782 = vmul.f32 %v644, %v750
      %v783 = vmul.f32 %v647, %v751
      %v784 = vmul.f32 %v652, %v752
      %v785 = vmul.f32 %v655, %v753
      %v786 = vrcp.pop 6.0
      %v787 = vmul.f32 %v754, %v786
      %v788 = vmul.f32 %v755, %v786
      %v789 = vmul.f32 %v756, %v786
      %v790 = vmul.f32 %v757, %v786
      %v791 = vmul.f32 %v758, %v786
      %v792 = vmul.f32 %v759, %v786
      %v793 = vmul.f32 %v760, %v786
      %v794 = vmul.f32 %v761, %v786
      %v795 = vmul.f32 %v762, %v786
      %v796 = vmul.f32 %v763, %v786
      %v797 = vmul.f32 %v764, %v786
      %v798 = vmul.f32 %v765, %v786
      %v799 = vmul.f32 %v766, %v786
      %v800 = vmul.f32 %v767, %v786
      %v801 = vmul.f32 %v768, %v786
      %v802 = vmul.f32 %v769, %v786
      %v803 = vmul.f32 %v770, %v786
      %v804 = vmul.f32 %v771, %v786
      %v805 = vmul.f32 %v772, %v786
      %v806 = vmul.f32 %v773, %v786
      %v807 = vmul.f32 %v774, %v786
      %v808 = vmul.f32 %v775, %v786
      %v809 = vmul.f32 %v776, %v786
      %v810 = vmul.f32 %v777, %v786
      %v811 = vmul.f32 %v778, %v786
      %v812 = vmul.f32 %v779, %v786
      %v813 = vmul.f32 %v780, %v786
      %v814 = vmul.f32 %v781, %v786
      %v815 = vmul.f32 %v782, %v786
      %v816 = vmul.f32 %v783, %v786
      %v817 = vmul.f32 %v784, %v786
      %v818 = vmul.f32 %v785, %v786
      %v819 = vlaneseq
      %v820 = vshrl.u32 %v819, 7
      %v821 = vadd.s32 %v820, 8
      %v822 = vadd.s32 %v820, 16
      %v823 = vadd.s32 %v820, 24
      %v824 = vadd.s32 %v820, 32
      %v825 = vadd.s32 %v820, 40
      %v826 = vadd.s32 %v820, 48
      %v827 = vadd.s32 %v820, 56
      %v828 = vadd.s32 %v820, 64
      %v829 = vadd.s32 %v820, 72
      %v830 = vadd.s32 %v820, 80
      %v831 = vadd.s32 %v820, 88
      %v832 = vadd.s32 %v820, 96
      %v833 = vadd.s32 %v820, 104
      %v834 = vadd.s32 %v820, 112
      %v835 = vadd.s32 %v820, 120
      %v836 = vadd.s32 %v820, 128
      %v837 = vadd.s32 %v820, 136
      %v838 = vadd.s32 %v820, 144
      %v839 = vadd.s32 %v820, 152
      %v840 = vadd.s32 %v820, 160
      %v841 = vadd.s32 %v820, 168
      %v842 = vadd.s32 %v820, 176
      %v843 = vadd.s32 %v820, 184
      %v844 = vadd.s32 %v820, 192
      %v845 = vadd.s32 %v820, 200
      %v846 = vadd.s32 %v820, 208
      %v847 = vadd.s32 %v820, 216
      %v848 = vadd.s32 %v820, 224
      %v849 = vadd.s32 %v820, 232
      %v850 = vadd.s32 %v820, 240
      %v851 = vadd.s32 %v820, 248
      %v852 = vand.u32 %v820, 15
      %v853 = vand.u32 %v821, 15
      %v854 = vand.u32 %v822, 15
      %v855 = vand.u32 %v823, 15
      %v856 = vand.u32 %v824, 15
      %v857 = vand.u32 %v825, 15
      %v858 = vand.u32 %v826, 15
      %v859 = vand.u32 %v827, 15
      %v860 = vand.u32 %v828, 15
      %v861 = vand.u32 %v829, 15
      %v862 = vand.u32 %v830, 15
      %v863 = vand.u32 %v831, 15
      %v864 = vand.u32 %v832, 15
      %v865 = vand.u32 %v833, 15
      %v866 = vand.u32 %v834, 15
      %v867 = vand.u32 %v835, 15
      %v868 = vand.u32 %v836, 15
      %v869 = vand.u32 %v837, 15
      %v870 = vand.u32 %v838, 15
      %v871 = vand.u32 %v839, 15
      %v872 = vand.u32 %v840, 15
      %v873 = vand.u32 %v841, 15
      %v874 = vand.u32 %v842, 15
      %v875 = vand.u32 %v843, 15
      %v876 = vand.u32 %v844, 15
      %v877 = vand.u32 %v845, 15
      %v878 = vand.u32 %v846, 15
      %v879 = vand.u32 %v847, 15
      %v880 = vand.u32 %v848, 15
      %v881 = vand.u32 %v849, 15
      %v882 = vand.u32 %v850, 15
      %v883 = vand.u32 %v851, 15
      %vm884 = vcmp.ge.s32.totalorder %v820, 16
      %vm885 = vcmp.ge.s32.totalorder %v821, 16
      %vm886 = vcmp.ge.s32.totalorder %v822, 16
      %vm887 = vcmp.ge.s32.totalorder %v823, 16
      %vm888 = vcmp.ge.s32.totalorder %v824, 16
      %vm889 = vcmp.ge.s32.totalorder %v825, 16
      %vm890 = vcmp.ge.s32.totalorder %v826, 16
      %vm891 = vcmp.ge.s32.totalorder %v827, 16
      %vm892 = vcmp.ge.s32.totalorder %v828, 16
      %vm893 = vcmp.ge.s32.totalorder %v829, 16
      %vm894 = vcmp.ge.s32.totalorder %v830, 16
      %vm895 = vcmp.ge.s32.totalorder %v831, 16
      %vm896 = vcmp.ge.s32.totalorder %v832, 16
      %vm897 = vcmp.ge.s32.totalorder %v833, 16
      %vm898 = vcmp.ge.s32.totalorder %v834, 16
      %vm899 = vcmp.ge.s32.totalorder %v835, 16
      %vm900 = vcmp.ge.s32.totalorder %v836, 16
      %vm901 = vcmp.ge.s32.totalorder %v837, 16
      %vm902 = vcmp.ge.s32.totalorder %v838, 16
      %vm903 = vcmp.ge.s32.totalorder %v839, 16
      %vm904 = vcmp.ge.s32.totalorder %v840, 16
      %vm905 = vcmp.ge.s32.totalorder %v841, 16
      %vm906 = vcmp.ge.s32.totalorder %v842, 16
      %vm907 = vcmp.ge.s32.totalorder %v843, 16
      %vm908 = vcmp.ge.s32.totalorder %v844, 16
      %vm909 = vcmp.ge.s32.totalorder %v845, 16
      %vm910 = vcmp.ge.s32.totalorder %v846, 16
      %vm911 = vcmp.ge.s32.totalorder %v847, 16
      %vm912 = vcmp.ge.s32.totalorder %v848, 16
      %vm913 = vcmp.ge.s32.totalorder %v849, 16
      %vm914 = vcmp.ge.s32.totalorder %v850, 16
      %vm915 = vcmp.ge.s32.totalorder %v851, 16
      %vm916 = vcmp.lt.s32.totalorder %v820, 240
      %vm917 = vcmp.lt.s32.totalorder %v821, 240
      %vm918 = vcmp.lt.s32.totalorder %v822, 240
      %vm919 = vcmp.lt.s32.totalorder %v823, 240
      %vm920 = vcmp.lt.s32.totalorder %v824, 240
      %vm921 = vcmp.lt.s32.totalorder %v825, 240
      %vm922 = vcmp.lt.s32.totalorder %v826, 240
      %vm923 = vcmp.lt.s32.totalorder %v827, 240
      %vm924 = vcmp.lt.s32.totalorder %v828, 240
      %vm925 = vcmp.lt.s32.totalorder %v829, 240
      %vm926 = vcmp.lt.s32.totalorder %v830, 240
      %vm927 = vcmp.lt.s32.totalorder %v831, 240
      %vm928 = vcmp.lt.s32.totalorder %v832, 240
      %vm929 = vcmp.lt.s32.totalorder %v833, 240
      %vm930 = vcmp.lt.s32.totalorder %v834, 240
      %vm931 = vcmp.lt.s32.totalorder %v835, 240
      %vm932 = vcmp.lt.s32.totalorder %v836, 240
      %vm933 = vcmp.lt.s32.totalorder %v837, 240
      %vm934 = vcmp.lt.s32.totalorder %v838, 240
      %vm935 = vcmp.lt.s32.totalorder %v839, 240
      %vm936 = vcmp.lt.s32.totalorder %v840, 240
      %vm937 = vcmp.lt.s32.totalorder %v841, 240
      %vm938 = vcmp.lt.s32.totalorder %v842, 240
      %vm939 = vcmp.lt.s32.totalorder %v843, 240
      %vm940 = vcmp.lt.s32.totalorder %v844, 240
      %vm941 = vcmp.lt.s32.totalorder %v845, 240
      %vm942 = vcmp.lt.s32.totalorder %v846, 240
      %vm943 = vcmp.lt.s32.totalorder %v847, 240
      %vm944 = vcmp.lt.s32.totalorder %v848, 240
      %vm945 = vcmp.lt.s32.totalorder %v849, 240
      %vm946 = vcmp.lt.s32.totalorder %v850, 240
      %vm947 = vcmp.lt.s32.totalorder %v851, 240
      %vm948 = vcmp.ge.s32.totalorder %v852, 1
      %vm949 = vcmp.ge.s32.totalorder %v853, 1
      %vm950 = vcmp.ge.s32.totalorder %v854, 1
      %vm951 = vcmp.ge.s32.totalorder %v855, 1
      %vm952 = vcmp.ge.s32.totalorder %v856, 1
      %vm953 = vcmp.ge.s32.totalorder %v857, 1
      %vm954 = vcmp.ge.s32.totalorder %v858, 1
      %vm955 = vcmp.ge.s32.totalorder %v859, 1
      %vm956 = vcmp.ge.s32.totalorder %v860, 1
      %vm957 = vcmp.ge.s32.totalorder %v861, 1
      %vm958 = vcmp.ge.s32.totalorder %v862, 1
      %vm959 = vcmp.ge.s32.totalorder %v863, 1
      %vm960 = vcmp.ge.s32.totalorder %v864, 1
      %vm961 = vcmp.ge.s32.totalorder %v865, 1
      %vm962 = vcmp.ge.s32.totalorder %v866, 1
      %vm963 = vcmp.ge.s32.totalorder %v867, 1
      %vm964 = vcmp.ge.s32.totalorder %v868, 1
      %vm965 = vcmp.ge.s32.totalorder %v869, 1
      %vm966 = vcmp.ge.s32.totalorder %v870, 1
      %vm967 = vcmp.ge.s32.totalorder %v871, 1
      %vm968 = vcmp.ge.s32.totalorder %v872, 1
      %vm969 = vcmp.ge.s32.totalorder %v873, 1
      %vm970 = vcmp.ge.s32.totalorder %v874, 1
      %vm971 = vcmp.ge.s32.totalorder %v875, 1
      %vm972 = vcmp.ge.s32.totalorder %v876, 1
      %vm973 = vcmp.ge.s32.totalorder %v877, 1
      %vm974 = vcmp.ge.s32.totalorder %v878, 1
      %vm975 = vcmp.ge.s32.totalorder %v879, 1
      %vm976 = vcmp.ge.s32.totalorder %v880, 1
      %vm977 = vcmp.ge.s32.totalorder %v881, 1
      %vm978 = vcmp.ge.s32.totalorder %v882, 1
      %vm979 = vcmp.ge.s32.totalorder %v883, 1
      %vm980 = vcmp.lt.s32.totalorder %v852, 15
      %vm981 = vcmp.lt.s32.totalorder %v853, 15
      %vm982 = vcmp.lt.s32.totalorder %v854, 15
      %vm983 = vcmp.lt.s32.totalorder %v855, 15
      %vm984 = vcmp.lt.s32.totalorder %v856, 15
      %vm985 = vcmp.lt.s32.totalorder %v857, 15
      %vm986 = vcmp.lt.s32.totalorder %v858, 15
      %vm987 = vcmp.lt.s32.totalorder %v859, 15
      %vm988 = vcmp.lt.s32.totalorder %v860, 15
      %vm989 = vcmp.lt.s32.totalorder %v861, 15
      %vm990 = vcmp.lt.s32.totalorder %v862, 15
      %vm991 = vcmp.lt.s32.totalorder %v863, 15
      %vm992 = vcmp.lt.s32.totalorder %v864, 15
      %vm993 = vcmp.lt.s32.totalorder %v865, 15
      %vm994 = vcmp.lt.s32.totalorder %v866, 15
      %vm995 = vcmp.lt.s32.totalorder %v867, 15
      %vm996 = vcmp.lt.s32.totalorder %v868, 15
      %vm997 = vcmp.lt.s32.totalorder %v869, 15
      %vm998 = vcmp.lt.s32.totalorder %v870, 15
      %vm999 = vcmp.lt.s32.totalorder %v871, 15
      %vm1000 = vcmp.lt.s32.totalorder %v872, 15
      %vm1001 = vcmp.lt.s32.totalorder %v873, 15
      %vm1002 = vcmp.lt.s32.totalorder %v874, 15
      %vm1003 = vcmp.lt.s32.totalorder %v875, 15
      %vm1004 = vcmp.lt.s32.totalorder %v876, 15
      %vm1005 = vcmp.lt.s32.totalorder %v877, 15
      %vm1006 = vcmp.lt.s32.totalorder %v878, 15
      %vm1007 = vcmp.lt.s32.totalorder %v879, 15
      %vm1008 = vcmp.lt.s32.totalorder %v880, 15
      %vm1009 = vcmp.lt.s32.totalorder %v881, 15
      %vm1010 = vcmp.lt.s32.totalorder %v882, 15
      %vm1011 = vcmp.lt.s32.totalorder %v883, 15
      %v1012 = vld [vmem:[%s3] sm:$0xff]
      %v1013 = vld [vmem:[%s3 + $0x8] sm:$0x1]
      %v1014 = vlaneseq
      %v1015 = vshrl.u32 %v1014, 7
      %v1016 = vsub.s32 4, %v1015
      %v1017 = vrot.slane %v1012, %v1016
      %v1018 = vmul.f32 %v787, %v1017
      %v1019 = vmul.f32 %v788, %v1017
      %v1020 = vmul.f32 %v789, %v1017
      %v1021 = vmul.f32 %v790, %v1017
      %v1022 = vmul.f32 %v791, %v1017
      %v1023 = vmul.f32 %v792, %v1017
      %v1024 = vmul.f32 %v793, %v1017
      %v1025 = vmul.f32 %v794, %v1017
      %v1026 = vmul.f32 %v795, %v1017
      %v1027 = vmul.f32 %v796, %v1017
      %v1028 = vmul.f32 %v797, %v1017
      %v1029 = vmul.f32 %v798, %v1017
      %v1030 = vmul.f32 %v799, %v1017
      %v1031 = vmul.f32 %v800, %v1017
      %v1032 = vmul.f32 %v801, %v1017
      %v1033 = vmul.f32 %v802, %v1017
      %v1034 = vmul.f32 %v803, %v1017
      %v1035 = vmul.f32 %v804, %v1017
      %v1036 = vmul.f32 %v805, %v1017
      %v1037 = vmul.f32 %v806, %v1017
      %v1038 = vmul.f32 %v807, %v1017
      %v1039 = vmul.f32 %v808, %v1017
      %v1040 = vmul.f32 %v809, %v1017
      %v1041 = vmul.f32 %v810, %v1017
      %v1042 = vmul.f32 %v811, %v1017
      %v1043 = vmul.f32 %v812, %v1017
      %v1044 = vmul.f32 %v813, %v1017
      %v1045 = vmul.f32 %v814, %v1017
      %v1046 = vmul.f32 %v815, %v1017
      %v1047 = vmul.f32 %v816, %v1017
      %v1048 = vmul.f32 %v817, %v1017
      %v1049 = vmul.f32 %v818, %v1017
      %v1050 = vrot.slane %v787, 7
      %v1051 = vrot.slane %v788, 7
      %v1052 = vrot.slane %v789, 7
      %v1053 = vrot.slane %v790, 7
      %v1054 = vrot.slane %v791, 7
      %v1055 = vrot.slane %v792, 7
      %v1056 = vrot.slane %v793, 7
      %v1057 = vrot.slane %v794, 7
      %v1058 = vrot.slane %v795, 7
      %v1059 = vrot.slane %v796, 7
      %v1060 = vrot.slane %v797, 7
      %v1061 = vrot.slane %v798, 7
      %v1062 = vrot.slane %v799, 7
      %v1063 = vrot.slane %v800, 7
      %v1064 = vrot.slane %v801, 7
      %v1065 = vrot.slane %v802, 7
      %v1066 = vrot.slane %v803, 7
      %v1067 = vrot.slane %v804, 7
      %v1068 = vrot.slane %v805, 7
      %v1069 = vrot.slane %v806, 7
      %v1070 = vrot.slane %v807, 7
      %v1071 = vrot.slane %v808, 7
      %v1072 = vrot.slane %v809, 7
      %v1073 = vrot.slane %v810, 7
      %v1074 = vrot.slane %v811, 7
      %v1075 = vrot.slane %v812, 7
      %v1076 = vrot.slane %v813, 7
      %v1077 = vrot.slane %v814, 7
      %v1078 = vrot.slane %v815, 7
      %v1079 = vrot.slane %v816, 7
      %v1080 = vrot.slane %v817, 7
      %v1081 = vrot.slane %v818, 7
      %vm1082 = vcmp.lt.s32.totalorder %v820, 1
      %v1083 = vsel %vm1082, %v1080, %v1081
      %v1084 = vsel %vm1082, %v1079, %v1080
      %v1085 = vsel %vm1082, %v1078, %v1079
      %v1086 = vsel %vm1082, %v1077, %v1078
      %v1087 = vsel %vm1082, %v1076, %v1077
      %v1088 = vsel %vm1082, %v1075, %v1076
      %v1089 = vsel %vm1082, %v1074, %v1075
      %v1090 = vsel %vm1082, %v1073, %v1074
      %v1091 = vsel %vm1082, %v1072, %v1073
      %v1092 = vsel %vm1082, %v1071, %v1072
      %v1093 = vsel %vm1082, %v1070, %v1071
      %v1094 = vsel %vm1082, %v1069, %v1070
      %v1095 = vsel %vm1082, %v1068, %v1069
      %v1096 = vsel %vm1082, %v1067, %v1068
      %v1097 = vsel %vm1082, %v1066, %v1067
      %v1098 = vsel %vm1082, %v1065, %v1066
      %v1099 = vsel %vm1082, %v1064, %v1065
      %v1100 = vsel %vm1082, %v1063, %v1064
      %v1101 = vsel %vm1082, %v1062, %v1063
      %v1102 = vsel %vm1082, %v1061, %v1062
      %v1103 = vsel %vm1082, %v1060, %v1061
      %v1104 = vsel %vm1082, %v1059, %v1060
      %v1105 = vsel %vm1082, %v1058, %v1059
      %v1106 = vsel %vm1082, %v1057, %v1058
      %v1107 = vsel %vm1082, %v1056, %v1057
      %v1108 = vsel %vm1082, %v1055, %v1056
      %v1109 = vsel %vm1082, %v1054, %v1055
      %v1110 = vsel %vm1082, %v1053, %v1054
      %v1111 = vsel %vm1082, %v1052, %v1053
      %v1112 = vsel %vm1082, %v1051, %v1052
      %v1113 = vsel %vm1082, %v1050, %v1051
      %v1114 = vsel %vm1082, %v1081, %v1050
      %vm1115 = vmand %vm884, %vm948
      %vm1116 = vmand %vm885, %vm949
      %vm1117 = vmand %vm886, %vm950
      %vm1118 = vmand %vm887, %vm951
      %vm1119 = vmand %vm888, %vm952
      %vm1120 = vmand %vm889, %vm953
      %vm1121 = vmand %vm890, %vm954
      %vm1122 = vmand %vm891, %vm955
      %vm1123 = vmand %vm892, %vm956
      %vm1124 = vmand %vm893, %vm957
      %vm1125 = vmand %vm894, %vm958
      %vm1126 = vmand %vm895, %vm959
      %vm1127 = vmand %vm896, %vm960
      %vm1128 = vmand %vm897, %vm961
      %vm1129 = vmand %vm898, %vm962
      %vm1130 = vmand %vm899, %vm963
      %vm1131 = vmand %vm900, %vm964
      %vm1132 = vmand %vm901, %vm965
      %vm1133 = vmand %vm902, %vm966
      %vm1134 = vmand %vm903, %vm967
      %vm1135 = vmand %vm904, %vm968
      %vm1136 = vmand %vm905, %vm969
      %vm1137 = vmand %vm906, %vm970
      %vm1138 = vmand %vm907, %vm971
      %vm1139 = vmand %vm908, %vm972
      %vm1140 = vmand %vm909, %vm973
      %vm1141 = vmand %vm910, %vm974
      %vm1142 = vmand %vm911, %vm975
      %vm1143 = vmand %vm912, %vm976
      %vm1144 = vmand %vm913, %vm977
      %vm1145 = vmand %vm914, %vm978
      %vm1146 = vmand %vm915, %vm979
      %v1147 = vsel %vm1115, %v1084, 0.0
      %v1148 = vsel %vm1116, %v1083, 0.0
      %v1149 = vsel %vm1117, %v1114, 0.0
      %v1150 = vsel %vm1118, %v1113, 0.0
      %v1151 = vsel %vm1119, %v1112, 0.0
      %v1152 = vsel %vm1120, %v1111, 0.0
      %v1153 = vsel %vm1121, %v1110, 0.0
      %v1154 = vsel %vm1122, %v1109, 0.0
      %v1155 = vsel %vm1123, %v1108, 0.0
      %v1156 = vsel %vm1124, %v1107, 0.0
      %v1157 = vsel %vm1125, %v1106, 0.0
      %v1158 = vsel %vm1126, %v1105, 0.0
      %v1159 = vsel %vm1127, %v1104, 0.0
      %v1160 = vsel %vm1128, %v1103, 0.0
      %v1161 = vsel %vm1129, %v1102, 0.0
      %v1162 = vsel %vm1130, %v1101, 0.0
      %v1163 = vsel %vm1131, %v1100, 0.0
      %v1164 = vsel %vm1132, %v1099, 0.0
      %v1165 = vsel %vm1133, %v1098, 0.0
      %v1166 = vsel %vm1134, %v1097, 0.0
      %v1167 = vsel %vm1135, %v1096, 0.0
      %v1168 = vsel %vm1136, %v1095, 0.0
      %v1169 = vsel %vm1137, %v1094, 0.0
      %v1170 = vsel %vm1138, %v1093, 0.0
      %v1171 = vsel %vm1139, %v1092, 0.0
      %v1172 = vsel %vm1140, %v1091, 0.0
      %v1173 = vsel %vm1141, %v1090, 0.0
      %v1174 = vsel %vm1142, %v1089, 0.0
      %v1175 = vsel %vm1143, %v1088, 0.0
      %v1176 = vsel %vm1144, %v1087, 0.0
      %v1177 = vsel %vm1145, %v1086, 0.0
      %v1178 = vsel %vm1146, %v1085, 0.0
      %v1179 = vlaneseq
      %v1180 = vshrl.u32 %v1179, 7
      %v1181 = vsub.s32 0, %v1180
      %v1182 = vrot.slane %v1012, %v1181
      %v1183 = vmul.f32 %v1147, %v1182
      %v1184 = vmul.f32 %v1148, %v1182
      %v1185 = vmul.f32 %v1149, %v1182
      %v1186 = vmul.f32 %v1150, %v1182
      %v1187 = vmul.f32 %v1151, %v1182
      %v1188 = vmul.f32 %v1152, %v1182
      %v1189 = vmul.f32 %v1153, %v1182
      %v1190 = vmul.f32 %v1154, %v1182
      %v1191 = vmul.f32 %v1155, %v1182
      %v1192 = vmul.f32 %v1156, %v1182
      %v1193 = vmul.f32 %v1157, %v1182
      %v1194 = vmul.f32 %v1158, %v1182
      %v1195 = vmul.f32 %v1159, %v1182
      %v1196 = vmul.f32 %v1160, %v1182
      %v1197 = vmul.f32 %v1161, %v1182
      %v1198 = vmul.f32 %v1162, %v1182
      %v1199 = vmul.f32 %v1163, %v1182
      %v1200 = vmul.f32 %v1164, %v1182
      %v1201 = vmul.f32 %v1165, %v1182
      %v1202 = vmul.f32 %v1166, %v1182
      %v1203 = vmul.f32 %v1167, %v1182
      %v1204 = vmul.f32 %v1168, %v1182
      %v1205 = vmul.f32 %v1169, %v1182
      %v1206 = vmul.f32 %v1170, %v1182
      %v1207 = vmul.f32 %v1171, %v1182
      %v1208 = vmul.f32 %v1172, %v1182
      %v1209 = vmul.f32 %v1173, %v1182
      %v1210 = vmul.f32 %v1174, %v1182
      %v1211 = vmul.f32 %v1175, %v1182
      %v1212 = vmul.f32 %v1176, %v1182
      %v1213 = vmul.f32 %v1177, %v1182
      %v1214 = vmul.f32 %v1178, %v1182
      %v1215 = vadd.f32 %v1018, %v1183
      %v1216 = vadd.f32 %v1019, %v1184
      %v1217 = vadd.f32 %v1020, %v1185
      %v1218 = vadd.f32 %v1021, %v1186
      %v1219 = vadd.f32 %v1022, %v1187
      %v1220 = vadd.f32 %v1023, %v1188
      %v1221 = vadd.f32 %v1024, %v1189
      %v1222 = vadd.f32 %v1025, %v1190
      %v1223 = vadd.f32 %v1026, %v1191
      %v1224 = vadd.f32 %v1027, %v1192
      %v1225 = vadd.f32 %v1028, %v1193
      %v1226 = vadd.f32 %v1029, %v1194
      %v1227 = vadd.f32 %v1030, %v1195
      %v1228 = vadd.f32 %v1031, %v1196
      %v1229 = vadd.f32 %v1032, %v1197
      %v1230 = vadd.f32 %v1033, %v1198
      %v1231 = vadd.f32 %v1034, %v1199
      %v1232 = vadd.f32 %v1035, %v1200
      %v1233 = vadd.f32 %v1036, %v1201
      %v1234 = vadd.f32 %v1037, %v1202
      %v1235 = vadd.f32 %v1038, %v1203
      %v1236 = vadd.f32 %v1039, %v1204
      %v1237 = vadd.f32 %v1040, %v1205
      %v1238 = vadd.f32 %v1041, %v1206
      %v1239 = vadd.f32 %v1042, %v1207
      %v1240 = vadd.f32 %v1043, %v1208
      %v1241 = vadd.f32 %v1044, %v1209
      %v1242 = vadd.f32 %v1045, %v1210
      %v1243 = vadd.f32 %v1046, %v1211
      %v1244 = vadd.f32 %v1047, %v1212
      %v1245 = vadd.f32 %v1048, %v1213
      %v1246 = vadd.f32 %v1049, %v1214
      %v1247 = vsel %vm884, %v817, 0.0
      %v1248 = vsel %vm885, %v818, 0.0
      %v1249 = vsel %vm886, %v787, 0.0
      %v1250 = vsel %vm887, %v788, 0.0
      %v1251 = vsel %vm888, %v789, 0.0
      %v1252 = vsel %vm889, %v790, 0.0
      %v1253 = vsel %vm890, %v791, 0.0
      %v1254 = vsel %vm891, %v792, 0.0
      %v1255 = vsel %vm892, %v793, 0.0
      %v1256 = vsel %vm893, %v794, 0.0
      %v1257 = vsel %vm894, %v795, 0.0
      %v1258 = vsel %vm895, %v796, 0.0
      %v1259 = vsel %vm896, %v797, 0.0
      %v1260 = vsel %vm897, %v798, 0.0
      %v1261 = vsel %vm898, %v799, 0.0
      %v1262 = vsel %vm899, %v800, 0.0
      %v1263 = vsel %vm900, %v801, 0.0
      %v1264 = vsel %vm901, %v802, 0.0
      %v1265 = vsel %vm902, %v803, 0.0
      %v1266 = vsel %vm903, %v804, 0.0
      %v1267 = vsel %vm904, %v805, 0.0
      %v1268 = vsel %vm905, %v806, 0.0
      %v1269 = vsel %vm906, %v807, 0.0
      %v1270 = vsel %vm907, %v808, 0.0
      %v1271 = vsel %vm908, %v809, 0.0
      %v1272 = vsel %vm909, %v810, 0.0
      %v1273 = vsel %vm910, %v811, 0.0
      %v1274 = vsel %vm911, %v812, 0.0
      %v1275 = vsel %vm912, %v813, 0.0
      %v1276 = vsel %vm913, %v814, 0.0
      %v1277 = vsel %vm914, %v815, 0.0
      %v1278 = vsel %vm915, %v816, 0.0
      %v1279 = vlaneseq
      %v1280 = vshrl.u32 %v1279, 7
      %v1281 = vsub.s32 1, %v1280
      %v1282 = vrot.slane %v1012, %v1281
      %v1283 = vmul.f32 %v1247, %v1282
      %v1284 = vmul.f32 %v1248, %v1282
      %v1285 = vmul.f32 %v1249, %v1282
      %v1286 = vmul.f32 %v1250, %v1282
      %v1287 = vmul.f32 %v1251, %v1282
      %v1288 = vmul.f32 %v1252, %v1282
      %v1289 = vmul.f32 %v1253, %v1282
      %v1290 = vmul.f32 %v1254, %v1282
      %v1291 = vmul.f32 %v1255, %v1282
      %v1292 = vmul.f32 %v1256, %v1282
      %v1293 = vmul.f32 %v1257, %v1282
      %v1294 = vmul.f32 %v1258, %v1282
      %v1295 = vmul.f32 %v1259, %v1282
      %v1296 = vmul.f32 %v1260, %v1282
      %v1297 = vmul.f32 %v1261, %v1282
      %v1298 = vmul.f32 %v1262, %v1282
      %v1299 = vmul.f32 %v1263, %v1282
      %v1300 = vmul.f32 %v1264, %v1282
      %v1301 = vmul.f32 %v1265, %v1282
      %v1302 = vmul.f32 %v1266, %v1282
      %v1303 = vmul.f32 %v1267, %v1282
      %v1304 = vmul.f32 %v1268, %v1282
      %v1305 = vmul.f32 %v1269, %v1282
      %v1306 = vmul.f32 %v1270, %v1282
      %v1307 = vmul.f32 %v1271, %v1282
      %v1308 = vmul.f32 %v1272, %v1282
      %v1309 = vmul.f32 %v1273, %v1282
      %v1310 = vmul.f32 %v1274, %v1282
      %v1311 = vmul.f32 %v1275, %v1282
      %v1312 = vmul.f32 %v1276, %v1282
      %v1313 = vmul.f32 %v1277, %v1282
      %v1314 = vmul.f32 %v1278, %v1282
      %v1315 = vadd.f32 %v1215, %v1283
      %v1316 = vadd.f32 %v1216, %v1284
      %v1317 = vadd.f32 %v1217, %v1285
      %v1318 = vadd.f32 %v1218, %v1286
      %v1319 = vadd.f32 %v1219, %v1287
      %v1320 = vadd.f32 %v1220, %v1288
      %v1321 = vadd.f32 %v1221, %v1289
      %v1322 = vadd.f32 %v1222, %v1290
      %v1323 = vadd.f32 %v1223, %v1291
      %v1324 = vadd.f32 %v1224, %v1292
      %v1325 = vadd.f32 %v1225, %v1293
      %v1326 = vadd.f32 %v1226, %v1294
      %v1327 = vadd.f32 %v1227, %v1295
      %v1328 = vadd.f32 %v1228, %v1296
      %v1329 = vadd.f32 %v1229, %v1297
      %v1330 = vadd.f32 %v1230, %v1298
      %v1331 = vadd.f32 %v1231, %v1299
      %v1332 = vadd.f32 %v1232, %v1300
      %v1333 = vadd.f32 %v1233, %v1301
      %v1334 = vadd.f32 %v1234, %v1302
      %v1335 = vadd.f32 %v1235, %v1303
      %v1336 = vadd.f32 %v1236, %v1304
      %v1337 = vadd.f32 %v1237, %v1305
      %v1338 = vadd.f32 %v1238, %v1306
      %v1339 = vadd.f32 %v1239, %v1307
      %v1340 = vadd.f32 %v1240, %v1308
      %v1341 = vadd.f32 %v1241, %v1309
      %v1342 = vadd.f32 %v1242, %v1310
      %v1343 = vadd.f32 %v1243, %v1311
      %v1344 = vadd.f32 %v1244, %v1312
      %v1345 = vadd.f32 %v1245, %v1313
      %v1346 = vadd.f32 %v1246, %v1314
      %v1347 = vrot.slane %v787, 1
      %v1348 = vrot.slane %v788, 1
      %v1349 = vrot.slane %v789, 1
      %v1350 = vrot.slane %v790, 1
      %v1351 = vrot.slane %v791, 1
      %v1352 = vrot.slane %v792, 1
      %v1353 = vrot.slane %v793, 1
      %v1354 = vrot.slane %v794, 1
      %v1355 = vrot.slane %v795, 1
      %v1356 = vrot.slane %v796, 1
      %v1357 = vrot.slane %v797, 1
      %v1358 = vrot.slane %v798, 1
      %v1359 = vrot.slane %v799, 1
      %v1360 = vrot.slane %v800, 1
      %v1361 = vrot.slane %v801, 1
      %v1362 = vrot.slane %v802, 1
      %v1363 = vrot.slane %v803, 1
      %v1364 = vrot.slane %v804, 1
      %v1365 = vrot.slane %v805, 1
      %v1366 = vrot.slane %v806, 1
      %v1367 = vrot.slane %v807, 1
      %v1368 = vrot.slane %v808, 1
      %v1369 = vrot.slane %v809, 1
      %v1370 = vrot.slane %v810, 1
      %v1371 = vrot.slane %v811, 1
      %v1372 = vrot.slane %v812, 1
      %v1373 = vrot.slane %v813, 1
      %v1374 = vrot.slane %v814, 1
      %v1375 = vrot.slane %v815, 1
      %v1376 = vrot.slane %v816, 1
      %v1377 = vrot.slane %v817, 1
      %v1378 = vrot.slane %v818, 1
      %vm1379 = vcmp.lt.s32.totalorder %v820, 7
      %v1380 = vsel %vm1379, %v1377, %v1378
      %v1381 = vsel %vm1379, %v1376, %v1377
      %v1382 = vsel %vm1379, %v1375, %v1376
      %v1383 = vsel %vm1379, %v1374, %v1375
      %v1384 = vsel %vm1379, %v1373, %v1374
      %v1385 = vsel %vm1379, %v1372, %v1373
      %v1386 = vsel %vm1379, %v1371, %v1372
      %v1387 = vsel %vm1379, %v1370, %v1371
      %v1388 = vsel %vm1379, %v1369, %v1370
      %v1389 = vsel %vm1379, %v1368, %v1369
      %v1390 = vsel %vm1379, %v1367, %v1368
      %v1391 = vsel %vm1379, %v1366, %v1367
      %v1392 = vsel %vm1379, %v1365, %v1366
      %v1393 = vsel %vm1379, %v1364, %v1365
      %v1394 = vsel %vm1379, %v1363, %v1364
      %v1395 = vsel %vm1379, %v1362, %v1363
      %v1396 = vsel %vm1379, %v1361, %v1362
      %v1397 = vsel %vm1379, %v1360, %v1361
      %v1398 = vsel %vm1379, %v1359, %v1360
      %v1399 = vsel %vm1379, %v1358, %v1359
      %v1400 = vsel %vm1379, %v1357, %v1358
      %v1401 = vsel %vm1379, %v1356, %v1357
      %v1402 = vsel %vm1379, %v1355, %v1356
      %v1403 = vsel %vm1379, %v1354, %v1355
      %v1404 = vsel %vm1379, %v1353, %v1354
      %v1405 = vsel %vm1379, %v1352, %v1353
      %v1406 = vsel %vm1379, %v1351, %v1352
      %v1407 = vsel %vm1379, %v1350, %v1351
      %v1408 = vsel %vm1379, %v1349, %v1350
      %v1409 = vsel %vm1379, %v1348, %v1349
      %v1410 = vsel %vm1379, %v1347, %v1348
      %v1411 = vsel %vm1379, %v1378, %v1347
      %vm1412 = vmand %vm884, %vm980
      %vm1413 = vmand %vm885, %vm981
      %vm1414 = vmand %vm886, %vm982
      %vm1415 = vmand %vm887, %vm983
      %vm1416 = vmand %vm888, %vm984
      %vm1417 = vmand %vm889, %vm985
      %vm1418 = vmand %vm890, %vm986
      %vm1419 = vmand %vm891, %vm987
      %vm1420 = vmand %vm892, %vm988
      %vm1421 = vmand %vm893, %vm989
      %vm1422 = vmand %vm894, %vm990
      %vm1423 = vmand %vm895, %vm991
      %vm1424 = vmand %vm896, %vm992
      %vm1425 = vmand %vm897, %vm993
      %vm1426 = vmand %vm898, %vm994
      %vm1427 = vmand %vm899, %vm995
      %vm1428 = vmand %vm900, %vm996
      %vm1429 = vmand %vm901, %vm997
      %vm1430 = vmand %vm902, %vm998
      %vm1431 = vmand %vm903, %vm999
      %vm1432 = vmand %vm904, %vm1000
      %vm1433 = vmand %vm905, %vm1001
      %vm1434 = vmand %vm906, %vm1002
      %vm1435 = vmand %vm907, %vm1003
      %vm1436 = vmand %vm908, %vm1004
      %vm1437 = vmand %vm909, %vm1005
      %vm1438 = vmand %vm910, %vm1006
      %vm1439 = vmand %vm911, %vm1007
      %vm1440 = vmand %vm912, %vm1008
      %vm1441 = vmand %vm913, %vm1009
      %vm1442 = vmand %vm914, %vm1010
      %vm1443 = vmand %vm915, %vm1011
      %v1444 = vsel %vm1412, %v1380, 0.0
      %v1445 = vsel %vm1413, %v1411, 0.0
      %v1446 = vsel %vm1414, %v1410, 0.0
      %v1447 = vsel %vm1415, %v1409, 0.0
      %v1448 = vsel %vm1416, %v1408, 0.0
      %v1449 = vsel %vm1417, %v1407, 0.0
      %v1450 = vsel %vm1418, %v1406, 0.0
      %v1451 = vsel %vm1419, %v1405, 0.0
      %v1452 = vsel %vm1420, %v1404, 0.0
      %v1453 = vsel %vm1421, %v1403, 0.0
      %v1454 = vsel %vm1422, %v1402, 0.0
      %v1455 = vsel %vm1423, %v1401, 0.0
      %v1456 = vsel %vm1424, %v1400, 0.0
      %v1457 = vsel %vm1425, %v1399, 0.0
      %v1458 = vsel %vm1426, %v1398, 0.0
      %v1459 = vsel %vm1427, %v1397, 0.0
      %v1460 = vsel %vm1428, %v1396, 0.0
      %v1461 = vsel %vm1429, %v1395, 0.0
      %v1462 = vsel %vm1430, %v1394, 0.0
      %v1463 = vsel %vm1431, %v1393, 0.0
      %v1464 = vsel %vm1432, %v1392, 0.0
      %v1465 = vsel %vm1433, %v1391, 0.0
      %v1466 = vsel %vm1434, %v1390, 0.0
      %v1467 = vsel %vm1435, %v1389, 0.0
      %v1468 = vsel %vm1436, %v1388, 0.0
      %v1469 = vsel %vm1437, %v1387, 0.0
      %v1470 = vsel %vm1438, %v1386, 0.0
      %v1471 = vsel %vm1439, %v1385, 0.0
      %v1472 = vsel %vm1440, %v1384, 0.0
      %v1473 = vsel %vm1441, %v1383, 0.0
      %v1474 = vsel %vm1442, %v1382, 0.0
      %v1475 = vsel %vm1443, %v1381, 0.0
      %v1476 = vlaneseq
      %v1477 = vshrl.u32 %v1476, 7
      %v1478 = vsub.s32 2, %v1477
      %v1479 = vrot.slane %v1012, %v1478
      %v1480 = vmul.f32 %v1444, %v1479
      %v1481 = vmul.f32 %v1445, %v1479
      %v1482 = vmul.f32 %v1446, %v1479
      %v1483 = vmul.f32 %v1447, %v1479
      %v1484 = vmul.f32 %v1448, %v1479
      %v1485 = vmul.f32 %v1449, %v1479
      %v1486 = vmul.f32 %v1450, %v1479
      %v1487 = vmul.f32 %v1451, %v1479
      %v1488 = vmul.f32 %v1452, %v1479
      %v1489 = vmul.f32 %v1453, %v1479
      %v1490 = vmul.f32 %v1454, %v1479
      %v1491 = vmul.f32 %v1455, %v1479
      %v1492 = vmul.f32 %v1456, %v1479
      %v1493 = vmul.f32 %v1457, %v1479
      %v1494 = vmul.f32 %v1458, %v1479
      %v1495 = vmul.f32 %v1459, %v1479
      %v1496 = vmul.f32 %v1460, %v1479
      %v1497 = vmul.f32 %v1461, %v1479
      %v1498 = vmul.f32 %v1462, %v1479
      %v1499 = vmul.f32 %v1463, %v1479
      %v1500 = vmul.f32 %v1464, %v1479
      %v1501 = vmul.f32 %v1465, %v1479
      %v1502 = vmul.f32 %v1466, %v1479
      %v1503 = vmul.f32 %v1467, %v1479
      %v1504 = vmul.f32 %v1468, %v1479
      %v1505 = vmul.f32 %v1469, %v1479
      %v1506 = vmul.f32 %v1470, %v1479
      %v1507 = vmul.f32 %v1471, %v1479
      %v1508 = vmul.f32 %v1472, %v1479
      %v1509 = vmul.f32 %v1473, %v1479
      %v1510 = vmul.f32 %v1474, %v1479
      %v1511 = vmul.f32 %v1475, %v1479
      %v1512 = vadd.f32 %v1315, %v1480
      %v1513 = vadd.f32 %v1316, %v1481
      %v1514 = vadd.f32 %v1317, %v1482
      %v1515 = vadd.f32 %v1318, %v1483
      %v1516 = vadd.f32 %v1319, %v1484
      %v1517 = vadd.f32 %v1320, %v1485
      %v1518 = vadd.f32 %v1321, %v1486
      %v1519 = vadd.f32 %v1322, %v1487
      %v1520 = vadd.f32 %v1323, %v1488
      %v1521 = vadd.f32 %v1324, %v1489
      %v1522 = vadd.f32 %v1325, %v1490
      %v1523 = vadd.f32 %v1326, %v1491
      %v1524 = vadd.f32 %v1327, %v1492
      %v1525 = vadd.f32 %v1328, %v1493
      %v1526 = vadd.f32 %v1329, %v1494
      %v1527 = vadd.f32 %v1330, %v1495
      %v1528 = vadd.f32 %v1331, %v1496
      %v1529 = vadd.f32 %v1332, %v1497
      %v1530 = vadd.f32 %v1333, %v1498
      %v1531 = vadd.f32 %v1334, %v1499
      %v1532 = vadd.f32 %v1335, %v1500
      %v1533 = vadd.f32 %v1336, %v1501
      %v1534 = vadd.f32 %v1337, %v1502
      %v1535 = vadd.f32 %v1338, %v1503
      %v1536 = vadd.f32 %v1339, %v1504
      %v1537 = vadd.f32 %v1340, %v1505
      %v1538 = vadd.f32 %v1341, %v1506
      %v1539 = vadd.f32 %v1342, %v1507
      %v1540 = vadd.f32 %v1343, %v1508
      %v1541 = vadd.f32 %v1344, %v1509
      %v1542 = vadd.f32 %v1345, %v1510
      %v1543 = vadd.f32 %v1346, %v1511
      %v1544 = vsel %vm948, %v1114, 0.0
      %v1545 = vsel %vm949, %v1113, 0.0
      %v1546 = vsel %vm950, %v1112, 0.0
      %v1547 = vsel %vm951, %v1111, 0.0
      %v1548 = vsel %vm952, %v1110, 0.0
      %v1549 = vsel %vm953, %v1109, 0.0
      %v1550 = vsel %vm954, %v1108, 0.0
      %v1551 = vsel %vm955, %v1107, 0.0
      %v1552 = vsel %vm956, %v1106, 0.0
      %v1553 = vsel %vm957, %v1105, 0.0
      %v1554 = vsel %vm958, %v1104, 0.0
      %v1555 = vsel %vm959, %v1103, 0.0
      %v1556 = vsel %vm960, %v1102, 0.0
      %v1557 = vsel %vm961, %v1101, 0.0
      %v1558 = vsel %vm962, %v1100, 0.0
      %v1559 = vsel %vm963, %v1099, 0.0
      %v1560 = vsel %vm964, %v1098, 0.0
      %v1561 = vsel %vm965, %v1097, 0.0
      %v1562 = vsel %vm966, %v1096, 0.0
      %v1563 = vsel %vm967, %v1095, 0.0
      %v1564 = vsel %vm968, %v1094, 0.0
      %v1565 = vsel %vm969, %v1093, 0.0
      %v1566 = vsel %vm970, %v1092, 0.0
      %v1567 = vsel %vm971, %v1091, 0.0
      %v1568 = vsel %vm972, %v1090, 0.0
      %v1569 = vsel %vm973, %v1089, 0.0
      %v1570 = vsel %vm974, %v1088, 0.0
      %v1571 = vsel %vm975, %v1087, 0.0
      %v1572 = vsel %vm976, %v1086, 0.0
      %v1573 = vsel %vm977, %v1085, 0.0
      %v1574 = vsel %vm978, %v1084, 0.0
      %v1575 = vsel %vm979, %v1083, 0.0
      %v1576 = vlaneseq
      %v1577 = vshrl.u32 %v1576, 7
      %v1578 = vsub.s32 3, %v1577
      %v1579 = vrot.slane %v1012, %v1578
      %v1580 = vmul.f32 %v1544, %v1579
      %v1581 = vmul.f32 %v1545, %v1579
      %v1582 = vmul.f32 %v1546, %v1579
      %v1583 = vmul.f32 %v1547, %v1579
      %v1584 = vmul.f32 %v1548, %v1579
      %v1585 = vmul.f32 %v1549, %v1579
      %v1586 = vmul.f32 %v1550, %v1579
      %v1587 = vmul.f32 %v1551, %v1579
      %v1588 = vmul.f32 %v1552, %v1579
      %v1589 = vmul.f32 %v1553, %v1579
      %v1590 = vmul.f32 %v1554, %v1579
      %v1591 = vmul.f32 %v1555, %v1579
      %v1592 = vmul.f32 %v1556, %v1579
      %v1593 = vmul.f32 %v1557, %v1579
      %v1594 = vmul.f32 %v1558, %v1579
      %v1595 = vmul.f32 %v1559, %v1579
      %v1596 = vmul.f32 %v1560, %v1579
      %v1597 = vmul.f32 %v1561, %v1579
      %v1598 = vmul.f32 %v1562, %v1579
      %v1599 = vmul.f32 %v1563, %v1579
      %v1600 = vmul.f32 %v1564, %v1579
      %v1601 = vmul.f32 %v1565, %v1579
      %v1602 = vmul.f32 %v1566, %v1579
      %v1603 = vmul.f32 %v1567, %v1579
      %v1604 = vmul.f32 %v1568, %v1579
      %v1605 = vmul.f32 %v1569, %v1579
      %v1606 = vmul.f32 %v1570, %v1579
      %v1607 = vmul.f32 %v1571, %v1579
      %v1608 = vmul.f32 %v1572, %v1579
      %v1609 = vmul.f32 %v1573, %v1579
      %v1610 = vmul.f32 %v1574, %v1579
      %v1611 = vmul.f32 %v1575, %v1579
      %v1612 = vadd.f32 %v1512, %v1580
      %v1613 = vadd.f32 %v1513, %v1581
      %v1614 = vadd.f32 %v1514, %v1582
      %v1615 = vadd.f32 %v1515, %v1583
      %v1616 = vadd.f32 %v1516, %v1584
      %v1617 = vadd.f32 %v1517, %v1585
      %v1618 = vadd.f32 %v1518, %v1586
      %v1619 = vadd.f32 %v1519, %v1587
      %v1620 = vadd.f32 %v1520, %v1588
      %v1621 = vadd.f32 %v1521, %v1589
      %v1622 = vadd.f32 %v1522, %v1590
      %v1623 = vadd.f32 %v1523, %v1591
      %v1624 = vadd.f32 %v1524, %v1592
      %v1625 = vadd.f32 %v1525, %v1593
      %v1626 = vadd.f32 %v1526, %v1594
      %v1627 = vadd.f32 %v1527, %v1595
      %v1628 = vadd.f32 %v1528, %v1596
      %v1629 = vadd.f32 %v1529, %v1597
      %v1630 = vadd.f32 %v1530, %v1598
      %v1631 = vadd.f32 %v1531, %v1599
      %v1632 = vadd.f32 %v1532, %v1600
      %v1633 = vadd.f32 %v1533, %v1601
      %v1634 = vadd.f32 %v1534, %v1602
      %v1635 = vadd.f32 %v1535, %v1603
      %v1636 = vadd.f32 %v1536, %v1604
      %v1637 = vadd.f32 %v1537, %v1605
      %v1638 = vadd.f32 %v1538, %v1606
      %v1639 = vadd.f32 %v1539, %v1607
      %v1640 = vadd.f32 %v1540, %v1608
      %v1641 = vadd.f32 %v1541, %v1609
      %v1642 = vadd.f32 %v1542, %v1610
      %v1643 = vadd.f32 %v1543, %v1611
      %v1644 = vsel %vm980, %v1410, 0.0
      %v1645 = vsel %vm981, %v1409, 0.0
      %v1646 = vsel %vm982, %v1408, 0.0
      %v1647 = vsel %vm983, %v1407, 0.0
      %v1648 = vsel %vm984, %v1406, 0.0
      %v1649 = vsel %vm985, %v1405, 0.0
      %v1650 = vsel %vm986, %v1404, 0.0
      %v1651 = vsel %vm987, %v1403, 0.0
      %v1652 = vsel %vm988, %v1402, 0.0
      %v1653 = vsel %vm989, %v1401, 0.0
      %v1654 = vsel %vm990, %v1400, 0.0
      %v1655 = vsel %vm991, %v1399, 0.0
      %v1656 = vsel %vm992, %v1398, 0.0
      %v1657 = vsel %vm993, %v1397, 0.0
      %v1658 = vsel %vm994, %v1396, 0.0
      %v1659 = vsel %vm995, %v1395, 0.0
      %v1660 = vsel %vm996, %v1394, 0.0
      %v1661 = vsel %vm997, %v1393, 0.0
      %v1662 = vsel %vm998, %v1392, 0.0
      %v1663 = vsel %vm999, %v1391, 0.0
      %v1664 = vsel %vm1000, %v1390, 0.0
      %v1665 = vsel %vm1001, %v1389, 0.0
      %v1666 = vsel %vm1002, %v1388, 0.0
      %v1667 = vsel %vm1003, %v1387, 0.0
      %v1668 = vsel %vm1004, %v1386, 0.0
      %v1669 = vsel %vm1005, %v1385, 0.0
      %v1670 = vsel %vm1006, %v1384, 0.0
      %v1671 = vsel %vm1007, %v1383, 0.0
      %v1672 = vsel %vm1008, %v1382, 0.0
      %v1673 = vsel %vm1009, %v1381, 0.0
      %v1674 = vsel %vm1010, %v1380, 0.0
      %v1675 = vsel %vm1011, %v1411, 0.0
      %v1676 = vlaneseq
      %v1677 = vshrl.u32 %v1676, 7
      %v1678 = vsub.s32 5, %v1677
      %v1679 = vrot.slane %v1012, %v1678
      %v1680 = vmul.f32 %v1644, %v1679
      %v1681 = vmul.f32 %v1645, %v1679
      %v1682 = vmul.f32 %v1646, %v1679
      %v1683 = vmul.f32 %v1647, %v1679
      %v1684 = vmul.f32 %v1648, %v1679
      %v1685 = vmul.f32 %v1649, %v1679
      %v1686 = vmul.f32 %v1650, %v1679
      %v1687 = vmul.f32 %v1651, %v1679
      %v1688 = vmul.f32 %v1652, %v1679
      %v1689 = vmul.f32 %v1653, %v1679
      %v1690 = vmul.f32 %v1654, %v1679
      %v1691 = vmul.f32 %v1655, %v1679
      %v1692 = vmul.f32 %v1656, %v1679
      %v1693 = vmul.f32 %v1657, %v1679
      %v1694 = vmul.f32 %v1658, %v1679
      %v1695 = vmul.f32 %v1659, %v1679
      %v1696 = vmul.f32 %v1660, %v1679
      %v1697 = vmul.f32 %v1661, %v1679
      %v1698 = vmul.f32 %v1662, %v1679
      %v1699 = vmul.f32 %v1663, %v1679
      %v1700 = vmul.f32 %v1664, %v1679
      %v1701 = vmul.f32 %v1665, %v1679
      %v1702 = vmul.f32 %v1666, %v1679
      %v1703 = vmul.f32 %v1667, %v1679
      %v1704 = vmul.f32 %v1668, %v1679
      %v1705 = vmul.f32 %v1669, %v1679
      %v1706 = vmul.f32 %v1670, %v1679
      %v1707 = vmul.f32 %v1671, %v1679
      %v1708 = vmul.f32 %v1672, %v1679
      %v1709 = vmul.f32 %v1673, %v1679
      %v1710 = vmul.f32 %v1674, %v1679
      %v1711 = vmul.f32 %v1675, %v1679
      %v1712 = vadd.f32 %v1612, %v1680
      %v1713 = vadd.f32 %v1613, %v1681
      %v1714 = vadd.f32 %v1614, %v1682
      %v1715 = vadd.f32 %v1615, %v1683
      %v1716 = vadd.f32 %v1616, %v1684
      %v1717 = vadd.f32 %v1617, %v1685
      %v1718 = vadd.f32 %v1618, %v1686
      %v1719 = vadd.f32 %v1619, %v1687
      %v1720 = vadd.f32 %v1620, %v1688
      %v1721 = vadd.f32 %v1621, %v1689
      %v1722 = vadd.f32 %v1622, %v1690
      %v1723 = vadd.f32 %v1623, %v1691
      %v1724 = vadd.f32 %v1624, %v1692
      %v1725 = vadd.f32 %v1625, %v1693
      %v1726 = vadd.f32 %v1626, %v1694
      %v1727 = vadd.f32 %v1627, %v1695
      %v1728 = vadd.f32 %v1628, %v1696
      %v1729 = vadd.f32 %v1629, %v1697
      %v1730 = vadd.f32 %v1630, %v1698
      %v1731 = vadd.f32 %v1631, %v1699
      %v1732 = vadd.f32 %v1632, %v1700
      %v1733 = vadd.f32 %v1633, %v1701
      %v1734 = vadd.f32 %v1634, %v1702
      %v1735 = vadd.f32 %v1635, %v1703
      %v1736 = vadd.f32 %v1636, %v1704
      %v1737 = vadd.f32 %v1637, %v1705
      %v1738 = vadd.f32 %v1638, %v1706
      %v1739 = vadd.f32 %v1639, %v1707
      %v1740 = vadd.f32 %v1640, %v1708
      %v1741 = vadd.f32 %v1641, %v1709
      %v1742 = vadd.f32 %v1642, %v1710
      %v1743 = vadd.f32 %v1643, %v1711
      %vm1744 = vmand %vm916, %vm948
      %vm1745 = vmand %vm917, %vm949
      %vm1746 = vmand %vm918, %vm950
      %vm1747 = vmand %vm919, %vm951
      %vm1748 = vmand %vm920, %vm952
      %vm1749 = vmand %vm921, %vm953
      %vm1750 = vmand %vm922, %vm954
      %vm1751 = vmand %vm923, %vm955
      %vm1752 = vmand %vm924, %vm956
      %vm1753 = vmand %vm925, %vm957
      %vm1754 = vmand %vm926, %vm958
      %vm1755 = vmand %vm927, %vm959
      %vm1756 = vmand %vm928, %vm960
      %vm1757 = vmand %vm929, %vm961
      %vm1758 = vmand %vm930, %vm962
      %vm1759 = vmand %vm931, %vm963
      %vm1760 = vmand %vm932, %vm964
      %vm1761 = vmand %vm933, %vm965
      %vm1762 = vmand %vm934, %vm966
      %vm1763 = vmand %vm935, %vm967
      %vm1764 = vmand %vm936, %vm968
      %vm1765 = vmand %vm937, %vm969
      %vm1766 = vmand %vm938, %vm970
      %vm1767 = vmand %vm939, %vm971
      %vm1768 = vmand %vm940, %vm972
      %vm1769 = vmand %vm941, %vm973
      %vm1770 = vmand %vm942, %vm974
      %vm1771 = vmand %vm943, %vm975
      %vm1772 = vmand %vm944, %vm976
      %vm1773 = vmand %vm945, %vm977
      %vm1774 = vmand %vm946, %vm978
      %vm1775 = vmand %vm947, %vm979
      %v1776 = vsel %vm1744, %v1112, 0.0
      %v1777 = vsel %vm1745, %v1111, 0.0
      %v1778 = vsel %vm1746, %v1110, 0.0
      %v1779 = vsel %vm1747, %v1109, 0.0
      %v1780 = vsel %vm1748, %v1108, 0.0
      %v1781 = vsel %vm1749, %v1107, 0.0
      %v1782 = vsel %vm1750, %v1106, 0.0
      %v1783 = vsel %vm1751, %v1105, 0.0
      %v1784 = vsel %vm1752, %v1104, 0.0
      %v1785 = vsel %vm1753, %v1103, 0.0
      %v1786 = vsel %vm1754, %v1102, 0.0
      %v1787 = vsel %vm1755, %v1101, 0.0
      %v1788 = vsel %vm1756, %v1100, 0.0
      %v1789 = vsel %vm1757, %v1099, 0.0
      %v1790 = vsel %vm1758, %v1098, 0.0
      %v1791 = vsel %vm1759, %v1097, 0.0
      %v1792 = vsel %vm1760, %v1096, 0.0
      %v1793 = vsel %vm1761, %v1095, 0.0
      %v1794 = vsel %vm1762, %v1094, 0.0
      %v1795 = vsel %vm1763, %v1093, 0.0
      %v1796 = vsel %vm1764, %v1092, 0.0
      %v1797 = vsel %vm1765, %v1091, 0.0
      %v1798 = vsel %vm1766, %v1090, 0.0
      %v1799 = vsel %vm1767, %v1089, 0.0
      %v1800 = vsel %vm1768, %v1088, 0.0
      %v1801 = vsel %vm1769, %v1087, 0.0
      %v1802 = vsel %vm1770, %v1086, 0.0
      %v1803 = vsel %vm1771, %v1085, 0.0
      %v1804 = vsel %vm1772, %v1084, 0.0
      %v1805 = vsel %vm1773, %v1083, 0.0
      %v1806 = vsel %vm1774, %v1114, 0.0
      %v1807 = vsel %vm1775, %v1113, 0.0
      %v1808 = vlaneseq
      %v1809 = vshrl.u32 %v1808, 7
      %v1810 = vsub.s32 6, %v1809
      %v1811 = vrot.slane %v1012, %v1810
      %v1812 = vmul.f32 %v1776, %v1811
      %v1813 = vmul.f32 %v1777, %v1811
      %v1814 = vmul.f32 %v1778, %v1811
      %v1815 = vmul.f32 %v1779, %v1811
      %v1816 = vmul.f32 %v1780, %v1811
      %v1817 = vmul.f32 %v1781, %v1811
      %v1818 = vmul.f32 %v1782, %v1811
      %v1819 = vmul.f32 %v1783, %v1811
      %v1820 = vmul.f32 %v1784, %v1811
      %v1821 = vmul.f32 %v1785, %v1811
      %v1822 = vmul.f32 %v1786, %v1811
      %v1823 = vmul.f32 %v1787, %v1811
      %v1824 = vmul.f32 %v1788, %v1811
      %v1825 = vmul.f32 %v1789, %v1811
      %v1826 = vmul.f32 %v1790, %v1811
      %v1827 = vmul.f32 %v1791, %v1811
      %v1828 = vmul.f32 %v1792, %v1811
      %v1829 = vmul.f32 %v1793, %v1811
      %v1830 = vmul.f32 %v1794, %v1811
      %v1831 = vmul.f32 %v1795, %v1811
      %v1832 = vmul.f32 %v1796, %v1811
      %v1833 = vmul.f32 %v1797, %v1811
      %v1834 = vmul.f32 %v1798, %v1811
      %v1835 = vmul.f32 %v1799, %v1811
      %v1836 = vmul.f32 %v1800, %v1811
      %v1837 = vmul.f32 %v1801, %v1811
      %v1838 = vmul.f32 %v1802, %v1811
      %v1839 = vmul.f32 %v1803, %v1811
      %v1840 = vmul.f32 %v1804, %v1811
      %v1841 = vmul.f32 %v1805, %v1811
      %v1842 = vmul.f32 %v1806, %v1811
      %v1843 = vmul.f32 %v1807, %v1811
      %v1844 = vadd.f32 %v1712, %v1812
      %v1845 = vadd.f32 %v1713, %v1813
      %v1846 = vadd.f32 %v1714, %v1814
      %v1847 = vadd.f32 %v1715, %v1815
      %v1848 = vadd.f32 %v1716, %v1816
      %v1849 = vadd.f32 %v1717, %v1817
      %v1850 = vadd.f32 %v1718, %v1818
      %v1851 = vadd.f32 %v1719, %v1819
      %v1852 = vadd.f32 %v1720, %v1820
      %v1853 = vadd.f32 %v1721, %v1821
      %v1854 = vadd.f32 %v1722, %v1822
      %v1855 = vadd.f32 %v1723, %v1823
      %v1856 = vadd.f32 %v1724, %v1824
      %v1857 = vadd.f32 %v1725, %v1825
      %v1858 = vadd.f32 %v1726, %v1826
      %v1859 = vadd.f32 %v1727, %v1827
      %v1860 = vadd.f32 %v1728, %v1828
      %v1861 = vadd.f32 %v1729, %v1829
      %v1862 = vadd.f32 %v1730, %v1830
      %v1863 = vadd.f32 %v1731, %v1831
      %v1864 = vadd.f32 %v1732, %v1832
      %v1865 = vadd.f32 %v1733, %v1833
      %v1866 = vadd.f32 %v1734, %v1834
      %v1867 = vadd.f32 %v1735, %v1835
      %v1868 = vadd.f32 %v1736, %v1836
      %v1869 = vadd.f32 %v1737, %v1837
      %v1870 = vadd.f32 %v1738, %v1838
      %v1871 = vadd.f32 %v1739, %v1839
      %v1872 = vadd.f32 %v1740, %v1840
      %v1873 = vadd.f32 %v1741, %v1841
      %v1874 = vadd.f32 %v1742, %v1842
      %v1875 = vadd.f32 %v1743, %v1843
      %v1876 = vsel %vm916, %v789, 0.0
      %v1877 = vsel %vm917, %v790, 0.0
      %v1878 = vsel %vm918, %v791, 0.0
      %v1879 = vsel %vm919, %v792, 0.0
      %v1880 = vsel %vm920, %v793, 0.0
      %v1881 = vsel %vm921, %v794, 0.0
      %v1882 = vsel %vm922, %v795, 0.0
      %v1883 = vsel %vm923, %v796, 0.0
      %v1884 = vsel %vm924, %v797, 0.0
      %v1885 = vsel %vm925, %v798, 0.0
      %v1886 = vsel %vm926, %v799, 0.0
      %v1887 = vsel %vm927, %v800, 0.0
      %v1888 = vsel %vm928, %v801, 0.0
      %v1889 = vsel %vm929, %v802, 0.0
      %v1890 = vsel %vm930, %v803, 0.0
      %v1891 = vsel %vm931, %v804, 0.0
      %v1892 = vsel %vm932, %v805, 0.0
      %v1893 = vsel %vm933, %v806, 0.0
      %v1894 = vsel %vm934, %v807, 0.0
      %v1895 = vsel %vm935, %v808, 0.0
      %v1896 = vsel %vm936, %v809, 0.0
      %v1897 = vsel %vm937, %v810, 0.0
      %v1898 = vsel %vm938, %v811, 0.0
      %v1899 = vsel %vm939, %v812, 0.0
      %v1900 = vsel %vm940, %v813, 0.0
      %v1901 = vsel %vm941, %v814, 0.0
      %v1902 = vsel %vm942, %v815, 0.0
      %v1903 = vsel %vm943, %v816, 0.0
      %v1904 = vsel %vm944, %v817, 0.0
      %v1905 = vsel %vm945, %v818, 0.0
      %v1906 = vsel %vm946, %v787, 0.0
      %v1907 = vsel %vm947, %v788, 0.0
      %v1908 = vlaneseq
      %v1909 = vshrl.u32 %v1908, 7
      %v1910 = vsub.s32 7, %v1909
      %v1911 = vrot.slane %v1012, %v1910
      %v1912 = vmul.f32 %v1876, %v1911
      %v1913 = vmul.f32 %v1877, %v1911
      %v1914 = vmul.f32 %v1878, %v1911
      %v1915 = vmul.f32 %v1879, %v1911
      %v1916 = vmul.f32 %v1880, %v1911
      %v1917 = vmul.f32 %v1881, %v1911
      %v1918 = vmul.f32 %v1882, %v1911
      %v1919 = vmul.f32 %v1883, %v1911
      %v1920 = vmul.f32 %v1884, %v1911
      %v1921 = vmul.f32 %v1885, %v1911
      %v1922 = vmul.f32 %v1886, %v1911
      %v1923 = vmul.f32 %v1887, %v1911
      %v1924 = vmul.f32 %v1888, %v1911
      %v1925 = vmul.f32 %v1889, %v1911
      %v1926 = vmul.f32 %v1890, %v1911
      %v1927 = vmul.f32 %v1891, %v1911
      %v1928 = vmul.f32 %v1892, %v1911
      %v1929 = vmul.f32 %v1893, %v1911
      %v1930 = vmul.f32 %v1894, %v1911
      %v1931 = vmul.f32 %v1895, %v1911
      %v1932 = vmul.f32 %v1896, %v1911
      %v1933 = vmul.f32 %v1897, %v1911
      %v1934 = vmul.f32 %v1898, %v1911
      %v1935 = vmul.f32 %v1899, %v1911
      %v1936 = vmul.f32 %v1900, %v1911
      %v1937 = vmul.f32 %v1901, %v1911
      %v1938 = vmul.f32 %v1902, %v1911
      %v1939 = vmul.f32 %v1903, %v1911
      %v1940 = vmul.f32 %v1904, %v1911
      %v1941 = vmul.f32 %v1905, %v1911
      %v1942 = vmul.f32 %v1906, %v1911
      %v1943 = vmul.f32 %v1907, %v1911
      %v1944 = vadd.f32 %v1844, %v1912
      %v1945 = vadd.f32 %v1845, %v1913
      %v1946 = vadd.f32 %v1846, %v1914
      %v1947 = vadd.f32 %v1847, %v1915
      %v1948 = vadd.f32 %v1848, %v1916
      %v1949 = vadd.f32 %v1849, %v1917
      %v1950 = vadd.f32 %v1850, %v1918
      %v1951 = vadd.f32 %v1851, %v1919
      %v1952 = vadd.f32 %v1852, %v1920
      %v1953 = vadd.f32 %v1853, %v1921
      %v1954 = vadd.f32 %v1854, %v1922
      %v1955 = vadd.f32 %v1855, %v1923
      %v1956 = vadd.f32 %v1856, %v1924
      %v1957 = vadd.f32 %v1857, %v1925
      %v1958 = vadd.f32 %v1858, %v1926
      %v1959 = vadd.f32 %v1859, %v1927
      %v1960 = vadd.f32 %v1860, %v1928
      %v1961 = vadd.f32 %v1861, %v1929
      %v1962 = vadd.f32 %v1862, %v1930
      %v1963 = vadd.f32 %v1863, %v1931
      %v1964 = vadd.f32 %v1864, %v1932
      %v1965 = vadd.f32 %v1865, %v1933
      %v1966 = vadd.f32 %v1866, %v1934
      %v1967 = vadd.f32 %v1867, %v1935
      %v1968 = vadd.f32 %v1868, %v1936
      %v1969 = vadd.f32 %v1869, %v1937
      %v1970 = vadd.f32 %v1870, %v1938
      %v1971 = vadd.f32 %v1871, %v1939
      %v1972 = vadd.f32 %v1872, %v1940
      %v1973 = vadd.f32 %v1873, %v1941
      %v1974 = vadd.f32 %v1874, %v1942
      %v1975 = vadd.f32 %v1875, %v1943
      %vm1976 = vmand %vm916, %vm980
      %vm1977 = vmand %vm917, %vm981
      %vm1978 = vmand %vm918, %vm982
      %vm1979 = vmand %vm919, %vm983
      %vm1980 = vmand %vm920, %vm984
      %vm1981 = vmand %vm921, %vm985
      %vm1982 = vmand %vm922, %vm986
      %vm1983 = vmand %vm923, %vm987
      %vm1984 = vmand %vm924, %vm988
      %vm1985 = vmand %vm925, %vm989
      %vm1986 = vmand %vm926, %vm990
      %vm1987 = vmand %vm927, %vm991
      %vm1988 = vmand %vm928, %vm992
      %vm1989 = vmand %vm929, %vm993
      %vm1990 = vmand %vm930, %vm994
      %vm1991 = vmand %vm931, %vm995
      %vm1992 = vmand %vm932, %vm996
      %vm1993 = vmand %vm933, %vm997
      %vm1994 = vmand %vm934, %vm998
      %vm1995 = vmand %vm935, %vm999
      %vm1996 = vmand %vm936, %vm1000
      %vm1997 = vmand %vm937, %vm1001
      %vm1998 = vmand %vm938, %vm1002
      %vm1999 = vmand %vm939, %vm1003
      %vm2000 = vmand %vm940, %vm1004
      %vm2001 = vmand %vm941, %vm1005
      %vm2002 = vmand %vm942, %vm1006
      %vm2003 = vmand %vm943, %vm1007
      %vm2004 = vmand %vm944, %vm1008
      %vm2005 = vmand %vm945, %vm1009
      %vm2006 = vmand %vm946, %vm1010
      %vm2007 = vmand %vm947, %vm1011
      %v2008 = vsel %vm1976, %v1408, 0.0
      %v2009 = vsel %vm1977, %v1407, 0.0
      %v2010 = vsel %vm1978, %v1406, 0.0
      %v2011 = vsel %vm1979, %v1405, 0.0
      %v2012 = vsel %vm1980, %v1404, 0.0
      %v2013 = vsel %vm1981, %v1403, 0.0
      %v2014 = vsel %vm1982, %v1402, 0.0
      %v2015 = vsel %vm1983, %v1401, 0.0
      %v2016 = vsel %vm1984, %v1400, 0.0
      %v2017 = vsel %vm1985, %v1399, 0.0
      %v2018 = vsel %vm1986, %v1398, 0.0
      %v2019 = vsel %vm1987, %v1397, 0.0
      %v2020 = vsel %vm1988, %v1396, 0.0
      %v2021 = vsel %vm1989, %v1395, 0.0
      %v2022 = vsel %vm1990, %v1394, 0.0
      %v2023 = vsel %vm1991, %v1393, 0.0
      %v2024 = vsel %vm1992, %v1392, 0.0
      %v2025 = vsel %vm1993, %v1391, 0.0
      %v2026 = vsel %vm1994, %v1390, 0.0
      %v2027 = vsel %vm1995, %v1389, 0.0
      %v2028 = vsel %vm1996, %v1388, 0.0
      %v2029 = vsel %vm1997, %v1387, 0.0
      %v2030 = vsel %vm1998, %v1386, 0.0
      %v2031 = vsel %vm1999, %v1385, 0.0
      %v2032 = vsel %vm2000, %v1384, 0.0
      %v2033 = vsel %vm2001, %v1383, 0.0
      %v2034 = vsel %vm2002, %v1382, 0.0
      %v2035 = vsel %vm2003, %v1381, 0.0
      %v2036 = vsel %vm2004, %v1380, 0.0
      %v2037 = vsel %vm2005, %v1411, 0.0
      %v2038 = vsel %vm2006, %v1410, 0.0
      %v2039 = vsel %vm2007, %v1409, 0.0
      %v2040 = vlaneseq
      %v2041 = vshrl.u32 %v2040, 7
      %v2042 = vsub.s32 0, %v2041
      %v2043 = vrot.slane %v1013, %v2042
      %v2044 = vmul.f32 %v2008, %v2043
      %v2045 = vmul.f32 %v2009, %v2043
      %v2046 = vmul.f32 %v2010, %v2043
      %v2047 = vmul.f32 %v2011, %v2043
      %v2048 = vmul.f32 %v2012, %v2043
      %v2049 = vmul.f32 %v2013, %v2043
      %v2050 = vmul.f32 %v2014, %v2043
      %v2051 = vmul.f32 %v2015, %v2043
      %v2052 = vmul.f32 %v2016, %v2043
      %v2053 = vmul.f32 %v2017, %v2043
      %v2054 = vmul.f32 %v2018, %v2043
      %v2055 = vmul.f32 %v2019, %v2043
      %v2056 = vmul.f32 %v2020, %v2043
      %v2057 = vmul.f32 %v2021, %v2043
      %v2058 = vmul.f32 %v2022, %v2043
      %v2059 = vmul.f32 %v2023, %v2043
      %v2060 = vmul.f32 %v2024, %v2043
      %v2061 = vmul.f32 %v2025, %v2043
      %v2062 = vmul.f32 %v2026, %v2043
      %v2063 = vmul.f32 %v2027, %v2043
      %v2064 = vmul.f32 %v2028, %v2043
      %v2065 = vmul.f32 %v2029, %v2043
      %v2066 = vmul.f32 %v2030, %v2043
      %v2067 = vmul.f32 %v2031, %v2043
      %v2068 = vmul.f32 %v2032, %v2043
      %v2069 = vmul.f32 %v2033, %v2043
      %v2070 = vmul.f32 %v2034, %v2043
      %v2071 = vmul.f32 %v2035, %v2043
      %v2072 = vmul.f32 %v2036, %v2043
      %v2073 = vmul.f32 %v2037, %v2043
      %v2074 = vmul.f32 %v2038, %v2043
      %v2075 = vmul.f32 %v2039, %v2043
      %v2076 = vadd.f32 %v1944, %v2044
      %v2077 = vadd.f32 %v1945, %v2045
      %v2078 = vadd.f32 %v1946, %v2046
      %v2079 = vadd.f32 %v1947, %v2047
      %v2080 = vadd.f32 %v1948, %v2048
      %v2081 = vadd.f32 %v1949, %v2049
      %v2082 = vadd.f32 %v1950, %v2050
      %v2083 = vadd.f32 %v1951, %v2051
      %v2084 = vadd.f32 %v1952, %v2052
      %v2085 = vadd.f32 %v1953, %v2053
      %v2086 = vadd.f32 %v1954, %v2054
      %v2087 = vadd.f32 %v1955, %v2055
      %v2088 = vadd.f32 %v1956, %v2056
      %v2089 = vadd.f32 %v1957, %v2057
      %v2090 = vadd.f32 %v1958, %v2058
      %v2091 = vadd.f32 %v1959, %v2059
      %v2092 = vadd.f32 %v1960, %v2060
      %v2093 = vadd.f32 %v1961, %v2061
      %v2094 = vadd.f32 %v1962, %v2062
      %v2095 = vadd.f32 %v1963, %v2063
      %v2096 = vadd.f32 %v1964, %v2064
      %v2097 = vadd.f32 %v1965, %v2065
      %v2098 = vadd.f32 %v1966, %v2066
      %v2099 = vadd.f32 %v1967, %v2067
      %v2100 = vadd.f32 %v1968, %v2068
      %v2101 = vadd.f32 %v1969, %v2069
      %v2102 = vadd.f32 %v1970, %v2070
      %v2103 = vadd.f32 %v1971, %v2071
      %v2104 = vadd.f32 %v1972, %v2072
      %v2105 = vadd.f32 %v1973, %v2073
      %v2106 = vadd.f32 %v1974, %v2074
      %v2107 = vadd.f32 %v1975, %v2075
      %v2108 = vld [vmem:[%s4] sm:$0x1]
      %v2110 = vlaneseq
      %v2111 = vshrl.u32 %v2110, 7
      %v2112 = vsub.s32 0, %v2111
      %v2113 = vrot.slane %v2108, %v2112
      %v2115 = vadd.f32 %v2076, %v2113
      %v2116 = vadd.f32 %v2077, %v2113
      %v2117 = vadd.f32 %v2078, %v2113
      %v2118 = vadd.f32 %v2079, %v2113
      %v2119 = vadd.f32 %v2080, %v2113
      %v2120 = vadd.f32 %v2081, %v2113
      %v2121 = vadd.f32 %v2082, %v2113
      %v2122 = vadd.f32 %v2083, %v2113
      %v2123 = vadd.f32 %v2084, %v2113
      %v2124 = vadd.f32 %v2085, %v2113
      %v2125 = vadd.f32 %v2086, %v2113
      %v2126 = vadd.f32 %v2087, %v2113
      %v2127 = vadd.f32 %v2088, %v2113
      %v2128 = vadd.f32 %v2089, %v2113
      %v2129 = vadd.f32 %v2090, %v2113
      %v2130 = vadd.f32 %v2091, %v2113
      %v2131 = vadd.f32 %v2092, %v2113
      %v2132 = vadd.f32 %v2093, %v2113
      %v2133 = vadd.f32 %v2094, %v2113
      %v2134 = vadd.f32 %v2095, %v2113
      %v2135 = vadd.f32 %v2096, %v2113
      %v2136 = vadd.f32 %v2097, %v2113
      %v2137 = vadd.f32 %v2098, %v2113
      %v2138 = vadd.f32 %v2099, %v2113
      %v2139 = vadd.f32 %v2100, %v2113
      %v2140 = vadd.f32 %v2101, %v2113
      %v2141 = vadd.f32 %v2102, %v2113
      %v2142 = vadd.f32 %v2103, %v2113
      %v2143 = vadd.f32 %v2104, %v2113
      %v2144 = vadd.f32 %v2105, %v2113
      %v2145 = vadd.f32 %v2106, %v2113
      %v2146 = vadd.f32 %v2107, %v2113
      %v2147 = vadd.f32 %v2115, 3.0
      %v2148 = vadd.f32 %v2116, 3.0
      %v2149 = vadd.f32 %v2117, 3.0
      %v2150 = vadd.f32 %v2118, 3.0
      %v2151 = vadd.f32 %v2119, 3.0
      %v2152 = vadd.f32 %v2120, 3.0
      %v2153 = vadd.f32 %v2121, 3.0
      %v2154 = vadd.f32 %v2122, 3.0
      %v2155 = vadd.f32 %v2123, 3.0
      %v2156 = vadd.f32 %v2124, 3.0
      %v2157 = vadd.f32 %v2125, 3.0
      %v2158 = vadd.f32 %v2126, 3.0
      %v2159 = vadd.f32 %v2127, 3.0
      %v2160 = vadd.f32 %v2128, 3.0
      %v2161 = vadd.f32 %v2129, 3.0
      %v2162 = vadd.f32 %v2130, 3.0
      %v2163 = vadd.f32 %v2131, 3.0
      %v2164 = vadd.f32 %v2132, 3.0
      %v2165 = vadd.f32 %v2133, 3.0
      %v2166 = vadd.f32 %v2134, 3.0
      %v2167 = vadd.f32 %v2135, 3.0
      %v2168 = vadd.f32 %v2136, 3.0
      %v2169 = vadd.f32 %v2137, 3.0
      %v2170 = vadd.f32 %v2138, 3.0
      %v2171 = vadd.f32 %v2139, 3.0
      %v2172 = vadd.f32 %v2140, 3.0
      %v2173 = vadd.f32 %v2141, 3.0
      %v2174 = vadd.f32 %v2142, 3.0
      %v2175 = vadd.f32 %v2143, 3.0
      %v2176 = vadd.f32 %v2144, 3.0
      %v2177 = vadd.f32 %v2145, 3.0
      %v2178 = vadd.f32 %v2146, 3.0
      %v2179 = vmax.f32 %v2147, 0.0
      %v2180 = vmax.f32 %v2148, 0.0
      %v2181 = vmax.f32 %v2149, 0.0
      %v2182 = vmax.f32 %v2150, 0.0
      %v2183 = vmax.f32 %v2151, 0.0
      %v2184 = vmax.f32 %v2152, 0.0
      %v2185 = vmax.f32 %v2153, 0.0
      %v2186 = vmax.f32 %v2154, 0.0
      %v2187 = vmax.f32 %v2155, 0.0
      %v2188 = vmax.f32 %v2156, 0.0
      %v2189 = vmax.f32 %v2157, 0.0
      %v2190 = vmax.f32 %v2158, 0.0
      %v2191 = vmax.f32 %v2159, 0.0
      %v2192 = vmax.f32 %v2160, 0.0
      %v2193 = vmax.f32 %v2161, 0.0
      %v2194 = vmax.f32 %v2162, 0.0
      %v2195 = vmax.f32 %v2163, 0.0
      %v2196 = vmax.f32 %v2164, 0.0
      %v2197 = vmax.f32 %v2165, 0.0
      %v2198 = vmax.f32 %v2166, 0.0
      %v2199 = vmax.f32 %v2167, 0.0
      %v2200 = vmax.f32 %v2168, 0.0
      %v2201 = vmax.f32 %v2169, 0.0
      %v2202 = vmax.f32 %v2170, 0.0
      %v2203 = vmax.f32 %v2171, 0.0
      %v2204 = vmax.f32 %v2172, 0.0
      %v2205 = vmax.f32 %v2173, 0.0
      %v2206 = vmax.f32 %v2174, 0.0
      %v2207 = vmax.f32 %v2175, 0.0
      %v2208 = vmax.f32 %v2176, 0.0
      %v2209 = vmax.f32 %v2177, 0.0
      %v2210 = vmax.f32 %v2178, 0.0
      %v2211 = vmin.f32 %v2179, 6.0
      %v2212 = vmin.f32 %v2180, 6.0
      %v2213 = vmin.f32 %v2181, 6.0
      %v2214 = vmin.f32 %v2182, 6.0
      %v2215 = vmin.f32 %v2183, 6.0
      %v2216 = vmin.f32 %v2184, 6.0
      %v2217 = vmin.f32 %v2185, 6.0
      %v2218 = vmin.f32 %v2186, 6.0
      %v2219 = vmin.f32 %v2187, 6.0
      %v2220 = vmin.f32 %v2188, 6.0
      %v2221 = vmin.f32 %v2189, 6.0
      %v2222 = vmin.f32 %v2190, 6.0
      %v2223 = vmin.f32 %v2191, 6.0
      %v2224 = vmin.f32 %v2192, 6.0
      %v2225 = vmin.f32 %v2193, 6.0
      %v2226 = vmin.f32 %v2194, 6.0
      %v2227 = vmin.f32 %v2195, 6.0
      %v2228 = vmin.f32 %v2196, 6.0
      %v2229 = vmin.f32 %v2197, 6.0
      %v2230 = vmin.f32 %v2198, 6.0
      %v2231 = vmin.f32 %v2199, 6.0
      %v2232 = vmin.f32 %v2200, 6.0
      %v2233 = vmin.f32 %v2201, 6.0
      %v2234 = vmin.f32 %v2202, 6.0
      %v2235 = vmin.f32 %v2203, 6.0
      %v2236 = vmin.f32 %v2204, 6.0
      %v2237 = vmin.f32 %v2205, 6.0
      %v2238 = vmin.f32 %v2206, 6.0
      %v2239 = vmin.f32 %v2207, 6.0
      %v2240 = vmin.f32 %v2208, 6.0
      %v2241 = vmin.f32 %v2209, 6.0
      %v2242 = vmin.f32 %v2210, 6.0
      %v2243 = vmul.f32 %v2115, %v2211
      %v2244 = vmul.f32 %v2116, %v2212
      %v2245 = vmul.f32 %v2117, %v2213
      %v2246 = vmul.f32 %v2118, %v2214
      %v2247 = vmul.f32 %v2119, %v2215
      %v2248 = vmul.f32 %v2120, %v2216
      %v2249 = vmul.f32 %v2121, %v2217
      %v2250 = vmul.f32 %v2122, %v2218
      %v2251 = vmul.f32 %v2123, %v2219
      %v2252 = vmul.f32 %v2124, %v2220
      %v2253 = vmul.f32 %v2125, %v2221
      %v2254 = vmul.f32 %v2126, %v2222
      %v2255 = vmul.f32 %v2127, %v2223
      %v2256 = vmul.f32 %v2128, %v2224
      %v2257 = vmul.f32 %v2129, %v2225
      %v2258 = vmul.f32 %v2130, %v2226
      %v2259 = vmul.f32 %v2131, %v2227
      %v2260 = vmul.f32 %v2132, %v2228
      %v2261 = vmul.f32 %v2133, %v2229
      %v2262 = vmul.f32 %v2134, %v2230
      %v2263 = vmul.f32 %v2135, %v2231
      %v2264 = vmul.f32 %v2136, %v2232
      %v2265 = vmul.f32 %v2137, %v2233
      %v2266 = vmul.f32 %v2138, %v2234
      %v2267 = vmul.f32 %v2139, %v2235
      %v2268 = vmul.f32 %v2140, %v2236
      %v2269 = vmul.f32 %v2141, %v2237
      %v2270 = vmul.f32 %v2142, %v2238
      %v2271 = vmul.f32 %v2143, %v2239
      %v2272 = vmul.f32 %v2144, %v2240
      %v2273 = vmul.f32 %v2145, %v2241
      %v2274 = vmul.f32 %v2146, %v2242
      %v2275 = vmul.f32 %v2243, %v786
      %v2276 = vmul.f32 %v2244, %v786
      %v2277 = vmul.f32 %v2245, %v786
      %v2278 = vmul.f32 %v2246, %v786
      %v2279 = vmul.f32 %v2247, %v786
      %v2280 = vmul.f32 %v2248, %v786
      %v2281 = vmul.f32 %v2249, %v786
      %v2282 = vmul.f32 %v2250, %v786
      %v2283 = vmul.f32 %v2251, %v786
      %v2284 = vmul.f32 %v2252, %v786
      %v2285 = vmul.f32 %v2253, %v786
      %v2286 = vmul.f32 %v2254, %v786
      %v2287 = vmul.f32 %v2255, %v786
      %v2288 = vmul.f32 %v2256, %v786
      %v2289 = vmul.f32 %v2257, %v786
      %v2290 = vmul.f32 %v2258, %v786
      %v2291 = vmul.f32 %v2259, %v786
      %v2292 = vmul.f32 %v2260, %v786
      %v2293 = vmul.f32 %v2261, %v786
      %v2294 = vmul.f32 %v2262, %v786
      %v2295 = vmul.f32 %v2263, %v786
      %v2296 = vmul.f32 %v2264, %v786
      %v2297 = vmul.f32 %v2265, %v786
      %v2298 = vmul.f32 %v2266, %v786
      %v2299 = vmul.f32 %v2267, %v786
      %v2300 = vmul.f32 %v2268, %v786
      %v2301 = vmul.f32 %v2269, %v786
      %v2302 = vmul.f32 %v2270, %v786
      %v2303 = vmul.f32 %v2271, %v786
      %v2304 = vmul.f32 %v2272, %v786
      %v2305 = vmul.f32 %v2273, %v786
      %v2306 = vmul.f32 %v2274, %v786
      %vm2307 = vcmask 261120
      %v2308 = vsel %vm2307, %v2275, 0.0
      %v2309 = vsel %vm2307, %v2276, 0.0
      %v2310 = vadd.f32 %v2308, %v2309
      %v2311 = vsel %vm2307, %v2277, 0.0
      %v2312 = vadd.f32 %v2310, %v2311
      %v2313 = vsel %vm2307, %v2278, 0.0
      %v2314 = vadd.f32 %v2312, %v2313
      %v2315 = vsel %vm2307, %v2279, 0.0
      %v2316 = vadd.f32 %v2314, %v2315
      %v2317 = vsel %vm2307, %v2280, 0.0
      %v2318 = vadd.f32 %v2316, %v2317
      %v2319 = vsel %vm2307, %v2281, 0.0
      %v2320 = vadd.f32 %v2318, %v2319
      %v2321 = vsel %vm2307, %v2282, 0.0
      %v2322 = vadd.f32 %v2320, %v2321
      %v2323 = vsel %vm2307, %v2283, 0.0
      %v2324 = vadd.f32 %v2322, %v2323
      %v2325 = vsel %vm2307, %v2284, 0.0
      %v2326 = vadd.f32 %v2324, %v2325
      %v2327 = vsel %vm2307, %v2285, 0.0
      %v2328 = vadd.f32 %v2326, %v2327
      %v2329 = vsel %vm2307, %v2286, 0.0
      %v2330 = vadd.f32 %v2328, %v2329
      %v2331 = vsel %vm2307, %v2287, 0.0
      %v2332 = vadd.f32 %v2330, %v2331
      %v2333 = vsel %vm2307, %v2288, 0.0
      %v2334 = vadd.f32 %v2332, %v2333
      %v2335 = vsel %vm2307, %v2289, 0.0
      %v2336 = vadd.f32 %v2334, %v2335
      %v2337 = vsel %vm2307, %v2290, 0.0
      %v2338 = vadd.f32 %v2336, %v2337
      %v2339 = vsel %vm2307, %v2291, 0.0
      %v2340 = vadd.f32 %v2338, %v2339
      %v2341 = vsel %vm2307, %v2292, 0.0
      %v2342 = vadd.f32 %v2340, %v2341
      %v2343 = vsel %vm2307, %v2293, 0.0
      %v2344 = vadd.f32 %v2342, %v2343
      %v2345 = vsel %vm2307, %v2294, 0.0
      %v2346 = vadd.f32 %v2344, %v2345
      %v2347 = vsel %vm2307, %v2295, 0.0
      %v2348 = vadd.f32 %v2346, %v2347
      %v2349 = vsel %vm2307, %v2296, 0.0
      %v2350 = vadd.f32 %v2348, %v2349
      %v2351 = vsel %vm2307, %v2297, 0.0
      %v2352 = vadd.f32 %v2350, %v2351
      %v2353 = vsel %vm2307, %v2298, 0.0
      %v2354 = vadd.f32 %v2352, %v2353
      %v2355 = vsel %vm2307, %v2299, 0.0
      %v2356 = vadd.f32 %v2354, %v2355
      %v2357 = vsel %vm2307, %v2300, 0.0
      %v2358 = vadd.f32 %v2356, %v2357
      %v2359 = vsel %vm2307, %v2301, 0.0
      %v2360 = vadd.f32 %v2358, %v2359
      %v2361 = vsel %vm2307, %v2302, 0.0
      %v2362 = vadd.f32 %v2360, %v2361
      %v2363 = vsel %vm2307, %v2303, 0.0
      %v2364 = vadd.f32 %v2362, %v2363
      %v2365 = vsel %vm2307, %v2304, 0.0
      %v2366 = vadd.f32 %v2364, %v2365
      %v2367 = vsel %vm2307, %v2305, 0.0
      %v2368 = vadd.f32 %v2366, %v2367
      %v2369 = vsel %vm2307, %v2306, 0.0
      %v2370 = vadd.f32 %v2368, %v2369
      %v2371 = vrot.slane %v2370, 4
      %v2372 = vadd.f32 %v2370, %v2371
      %v2373 = vrot.slane %v2372, 2
      %v2374 = vadd.f32 %v2372, %v2373
      %v2375 = vrot.slane %v2374, 1
      %v2376 = vadd.f32 %v2374, %v2375
      %v2377 = vrcp.pop 256.0
      %v2378 = vmul.f32 %v2376, %v2377
      %v2379 = vld [vmem:[%s5] sm:$0xff]
      %v2380 = vld [vmem:[%s5 + $0x8] sm:$0xff]
      %v2381 = vld [vmem:[%s5 + $0x10] sm:$0xff]
      %v2382 = vld [vmem:[%s5 + $0x18] sm:$0xff]
      %v2383 = vld [vmem:[%s6] sm:$0x1]
      %v2385 = vsel %vm2307, %v2378, 0
      %2387 = vmatprep.subr.mxu0 0.0
      %2388 = vmatpush1.msra.mxu0 0.0
      %2389 = vmatprep.subr.mxu0 0.0
      %2390 = vmatpush1.msra.mxu0 0.0
      %2391 = vmatprep.subr.mxu0 0.0
      %2392 = vmatpush1.msra.mxu0 0.0
      %2393 = vmatprep.subr.mxu0 0.0
      %2394 = vmatpush1.msra.mxu0 0.0
      %2395 = vmatprep.subr.mxu0 0.0
      %2396 = vmatpush1.msra.mxu0 0.0
      %2397 = vmatprep.subr.mxu0 0.0
      %2398 = vmatpush1.msra.mxu0 0.0
      %2399 = vmatprep.subr.mxu0 0.0
      %2400 = vmatpush1.msra.mxu0 0.0
      %2401 = vmatprep.subr.mxu0 0.0
      %2402 = vmatpush1.msra.mxu0 0.0
      %2403 = vmatprep.subr.mxu0 0.0
      %2404 = vmatpush1.msra.mxu0 0.0
      %2405 = vmatprep.subr.mxu0 0.0
      %2406 = vmatpush1.msra.mxu0 0.0
      %2407 = vmatprep.subr.mxu0 0.0
      %2408 = vmatpush1.msra.mxu0 0.0
      %2409 = vmatprep.subr.mxu0 0.0
      %2410 = vmatpush1.msra.mxu0 0.0
      %2411 = vmatprep.subr.mxu0 0.0
      %2412 = vmatpush1.msra.mxu0 %v2382
      %2413 = vmatprep.subr.mxu0 0.0
      %2414 = vmatpush1.msra.mxu0 %v2381
      %2415 = vmatprep.subr.mxu0 0.0
      %2416 = vmatpush1.msra.mxu0 %v2380
      %2417 = vmatprep.subr.mxu0 0.0
      %2418 = vmatpush1.msra.mxu0 %v2379
      %2419 = vmatprep.subr.mxu0 0.0
      %2420 = vmatpush2.msra.mxu0 0.0
      %2421 = vmatprep.subr.mxu0 0.0
      %2422 = vmatpush2.msra.mxu0 0.0
      %2423 = vmatprep.subr.mxu0 0.0
      %2424 = vmatpush2.msra.mxu0 0.0
      %2425 = vmatprep.subr.mxu0 0.0
      %2426 = vmatpush2.msra.mxu0 0.0
      %2427 = vmatprep.subr.mxu0 0.0
      %2428 = vmatpush2.msra.mxu0 0.0
      %2429 = vmatprep.subr.mxu0 0.0
      %2430 = vmatpush2.msra.mxu0 0.0
      %2431 = vmatprep.subr.mxu0 0.0
      %2432 = vmatpush2.msra.mxu0 0.0
      %2433 = vmatprep.subr.mxu0 0.0
      %2434 = vmatpush2.msra.mxu0 0.0
      %2435 = vmatprep.subr.mxu0 0.0
      %2436 = vmatpush2.msra.mxu0 0.0
      %2437 = vmatprep.subr.mxu0 0.0
      %2438 = vmatpush2.msra.mxu0 0.0
      %2439 = vmatprep.subr.mxu0 0.0
      %2440 = vmatpush2.msra.mxu0 0.0
      %2441 = vmatprep.subr.mxu0 0.0
      %2442 = vmatpush2.msra.mxu0 0.0
      %2443 = vmatprep.subr.mxu0 0.0
      %2444 = vmatpush2.msra.mxu0 0.0
      %2445 = vmatprep.subr.mxu0 0.0
      %2446 = vmatpush2.msra.mxu0 0.0
      %2447 = vmatprep.subr.mxu0 0.0
      %2448 = vmatpush2.msra.mxu0 0.0
      %2449 = vmatprep.subr.mxu0 0.0
      %2450 = vmatpush2.msra.mxu0 0.0
      %2451 = vmatprep.mubr.f32.mxu0 0.0
      %2452 = vmatmul.mubr.f32.gmra.mxu0 %v2385
      %v2453 = vpop.f32.mrf.mxu0
      %v2454 = vadd.f32 %v2383, %v2453
      %v2455 = vpop.f32.mrf.mxu0
      %2456 = vdwg.mxu0
      %v2457 = vmax.f32 %v2454, 0.0
      %v2458 = vld [vmem:[%s7] sm:$0xff]
      %v2459 = vld [vmem:[%s8] sm:$0x1]
      %v2461 = vsel %vm444, %v2457, 0
      %2463 = vmatprep.subr.mxu0 0.0
      %2464 = vmatpush1.msra.mxu0 0.0
      %2465 = vmatprep.subr.mxu0 0.0
      %2466 = vmatpush1.msra.mxu0 0.0
      %2467 = vmatprep.subr.mxu0 0.0
      %2468 = vmatpush1.msra.mxu0 0.0
      %2469 = vmatprep.subr.mxu0 0.0
      %2470 = vmatpush1.msra.mxu0 0.0
      %2471 = vmatprep.subr.mxu0 0.0
      %2472 = vmatpush1.msra.mxu0 0.0
      %2473 = vmatprep.subr.mxu0 0.0
      %2474 = vmatpush1.msra.mxu0 0.0
      %2475 = vmatprep.subr.mxu0 0.0
      %2476 = vmatpush1.msra.mxu0 0.0
      %2477 = vmatprep.subr.mxu0 0.0
      %2478 = vmatpush1.msra.mxu0 0.0
      %2479 = vmatprep.subr.mxu0 0.0
      %2480 = vmatpush1.msra.mxu0 0.0
      %2481 = vmatprep.subr.mxu0 0.0
      %2482 = vmatpush1.msra.mxu0 0.0
      %2483 = vmatprep.subr.mxu0 0.0
      %2484 = vmatpush1.msra.mxu0 0.0
      %2485 = vmatprep.subr.mxu0 0.0
      %2486 = vmatpush1.msra.mxu0 0.0
      %2487 = vmatprep.subr.mxu0 0.0
      %2488 = vmatpush1.msra.mxu0 0.0
      %2489 = vmatprep.subr.mxu0 0.0
      %2490 = vmatpush1.msra.mxu0 0.0
      %2491 = vmatprep.subr.mxu0 0.0
      %2492 = vmatpush1.msra.mxu0 0.0
      %2493 = vmatprep.subr.mxu0 0.0
      %2494 = vmatpush1.msra.mxu0 %v2458
      %2495 = vmatprep.subr.mxu0 0.0
      %2496 = vmatpush2.msra.mxu0 0.0
      %2497 = vmatprep.subr.mxu0 0.0
      %2498 = vmatpush2.msra.mxu0 0.0
      %2499 = vmatprep.subr.mxu0 0.0
      %2500 = vmatpush2.msra.mxu0 0.0
      %2501 = vmatprep.subr.mxu0 0.0
      %2502 = vmatpush2.msra.mxu0 0.0
      %2503 = vmatprep.subr.mxu0 0.0
      %2504 = vmatpush2.msra.mxu0 0.0
      %2505 = vmatprep.subr.mxu0 0.0
      %2506 = vmatpush2.msra.mxu0 0.0
      %2507 = vmatprep.subr.mxu0 0.0
      %2508 = vmatpush2.msra.mxu0 0.0
      %2509 = vmatprep.subr.mxu0 0.0
      %2510 = vmatpush2.msra.mxu0 0.0
      %2511 = vmatprep.subr.mxu0 0.0
      %2512 = vmatpush2.msra.mxu0 0.0
      %2513 = vmatprep.subr.mxu0 0.0
      %2514 = vmatpush2.msra.mxu0 0.0
      %2515 = vmatprep.subr.mxu0 0.0
      %2516 = vmatpush2.msra.mxu0 0.0
      %2517 = vmatprep.subr.mxu0 0.0
      %2518 = vmatpush2.msra.mxu0 0.0
      %2519 = vmatprep.subr.mxu0 0.0
      %2520 = vmatpush2.msra.mxu0 0.0
      %2521 = vmatprep.subr.mxu0 0.0
      %2522 = vmatpush2.msra.mxu0 0.0
      %2523 = vmatprep.subr.mxu0 0.0
      %2524 = vmatpush2.msra.mxu0 0.0
      %2525 = vmatprep.subr.mxu0 0.0
      %2526 = vmatpush2.msra.mxu0 0.0
      %2527 = vmatprep.mubr.f32.mxu0 0.0
      %2528 = vmatmul.mubr.f32.gmra.mxu0 %v2461
      %v2529 = vpop.f32.mrf.mxu0
      %v2530 = vadd.f32 %v2459, %v2529
      %v2531 = vpop.f32.mrf.mxu0
      %2532 = vdwg.mxu0
      %v2533 = vadd.f32 %v2530, 3.0
      %v2534 = vmax.f32 %v2533, 0.0
      %v2535 = vmin.f32 %v2534, 6.0
      %v2536 = vmul.f32 %v2535, %v786
      %v2537 = vlaneseq
      %v2538 = vshrl.u32 %v2537, 7
      %v2539 = vsub.s32 0, %v2538
      %v2540 = vrot.slane %v2536, %v2539
      %v2541 = vmul.f32 %v2275, %v2540
      %v2542 = vmul.f32 %v2276, %v2540
      %v2543 = vmul.f32 %v2277, %v2540
      %v2544 = vmul.f32 %v2278, %v2540
      %v2545 = vmul.f32 %v2279, %v2540
      %v2546 = vmul.f32 %v2280, %v2540
      %v2547 = vmul.f32 %v2281, %v2540
      %v2548 = vmul.f32 %v2282, %v2540
      %v2549 = vmul.f32 %v2283, %v2540
      %v2550 = vmul.f32 %v2284, %v2540
      %v2551 = vmul.f32 %v2285, %v2540
      %v2552 = vmul.f32 %v2286, %v2540
      %v2553 = vmul.f32 %v2287, %v2540
      %v2554 = vmul.f32 %v2288, %v2540
      %v2555 = vmul.f32 %v2289, %v2540
      %v2556 = vmul.f32 %v2290, %v2540
      %v2557 = vmul.f32 %v2291, %v2540
      %v2558 = vmul.f32 %v2292, %v2540
      %v2559 = vmul.f32 %v2293, %v2540
      %v2560 = vmul.f32 %v2294, %v2540
      %v2561 = vmul.f32 %v2295, %v2540
      %v2562 = vmul.f32 %v2296, %v2540
      %v2563 = vmul.f32 %v2297, %v2540
      %v2564 = vmul.f32 %v2298, %v2540
      %v2565 = vmul.f32 %v2299, %v2540
      %v2566 = vmul.f32 %v2300, %v2540
      %v2567 = vmul.f32 %v2301, %v2540
      %v2568 = vmul.f32 %v2302, %v2540
      %v2569 = vmul.f32 %v2303, %v2540
      %v2570 = vmul.f32 %v2304, %v2540
      %v2571 = vmul.f32 %v2305, %v2540
      %v2572 = vmul.f32 %v2306, %v2540
      %v2573 = vpack.c.bf16 %v2542, %v2541
      %v2574 = vpack.c.bf16 %v2544, %v2543
      %v2575 = vpack.c.bf16 %v2546, %v2545
      %v2576 = vpack.c.bf16 %v2548, %v2547
      %v2577 = vpack.c.bf16 %v2550, %v2549
      %v2578 = vpack.c.bf16 %v2552, %v2551
      %v2579 = vpack.c.bf16 %v2554, %v2553
      %v2580 = vpack.c.bf16 %v2556, %v2555
      %v2581 = vpack.c.bf16 %v2558, %v2557
      %v2582 = vpack.c.bf16 %v2560, %v2559
      %v2583 = vpack.c.bf16 %v2562, %v2561
      %v2584 = vpack.c.bf16 %v2564, %v2563
      %v2585 = vpack.c.bf16 %v2566, %v2565
      %v2586 = vpack.c.bf16 %v2568, %v2567
      %v2587 = vpack.c.bf16 %v2570, %v2569
      %v2588 = vpack.c.bf16 %v2572, %v2571
      %v2589 = vld [vmem:[%s9] sm:$0xf]
      %v2590 = vld [vmem:[%s9 + $0x4] sm:$0xf]
      %v2591 = vld [vmem:[%s9 + $0x8] sm:$0xf]
      %v2592 = vld [vmem:[%s9 + $0xc] sm:$0xf]
      %v2597 = vunpack.c.l.b16 %v2589
      %v2598 = vunpack.c.l.b16 %v2590
      %v2599 = vunpack.c.l.b16 %v2591
      %v2600 = vunpack.c.l.b16 %v2592
      %v2601 = vpack.c.b16 %v2598, %v2597
      %v2602 = vpack.c.b16 %v2600, %v2599
      %v2606 = vsel %vm2307, %v2573, 0
      %v2609 = vsel %vm2307, %v2574, 0
      %v2612 = vsel %vm2307, %v2575, 0
      %v2615 = vsel %vm2307, %v2576, 0
      %v2618 = vsel %vm2307, %v2577, 0
      %v2621 = vsel %vm2307, %v2578, 0
      %v2624 = vsel %vm2307, %v2579, 0
      %v2627 = vsel %vm2307, %v2580, 0
      %v2630 = vsel %vm2307, %v2581, 0
      %v2633 = vsel %vm2307, %v2582, 0
      %v2636 = vsel %vm2307, %v2583, 0
      %v2639 = vsel %vm2307, %v2584, 0
      %v2642 = vsel %vm2307, %v2585, 0
      %v2645 = vsel %vm2307, %v2586, 0
      %v2648 = vsel %vm2307, %v2587, 0
      %v2651 = vsel %vm2307, %v2588, 0
      %2653 = vmatprep.subr.bf16.mxu0 0
      %2654 = vmatpush1.bf16.msra.mxu0 0
      %2655 = vmatprep.subr.bf16.mxu0 0
      %2656 = vmatpush1.bf16.msra.mxu0 0
      %2657 = vmatprep.subr.bf16.mxu0 0
      %2658 = vmatpush1.bf16.msra.mxu0 0
      %2659 = vmatprep.subr.bf16.mxu0 0
      %2660 = vmatpush1.bf16.msra.mxu0 0
      %2661 = vmatprep.subr.bf16.mxu0 0
      %2662 = vmatpush1.bf16.msra.mxu0 0
      %2663 = vmatprep.subr.bf16.mxu0 0
      %2664 = vmatpush1.bf16.msra.mxu0 0
      %2665 = vmatprep.subr.bf16.mxu0 0
      %2666 = vmatpush1.bf16.msra.mxu0 %v2602
      %2667 = vmatprep.subr.bf16.mxu0 0
      %2668 = vmatpush1.bf16.msra.mxu0 %v2601
      %2669 = vmatprep.subr.bf16.mxu0 0
      %2670 = vmatpush2.bf16.msra.mxu0 0
      %2671 = vmatprep.subr.bf16.mxu0 0
      %2672 = vmatpush2.bf16.msra.mxu0 0
      %2673 = vmatprep.subr.bf16.mxu0 0
      %2674 = vmatpush2.bf16.msra.mxu0 0
      %2675 = vmatprep.subr.bf16.mxu0 0
      %2676 = vmatpush2.bf16.msra.mxu0 0
      %2677 = vmatprep.subr.bf16.mxu0 0
      %2678 = vmatpush2.bf16.msra.mxu0 0
      %2679 = vmatprep.subr.bf16.mxu0 0
      %2680 = vmatpush2.bf16.msra.mxu0 0
      %2681 = vmatprep.subr.bf16.mxu0 0
      %2682 = vmatpush2.bf16.msra.mxu0 0
      %2683 = vmatprep.subr.bf16.mxu0 0
      %2684 = vmatpush2.bf16.msra.mxu0 0
      %2685 = vmatprep.mubr.bf16.mxu0 0
      %2686 = vmatmul.mubr.bf16.gmra.mxu0 %v2606
      %v2687 = vpop.f32.mrf.mxu0
      %v2688 = vadd.f32 0.0, %v2687
      %v2689 = vpop.f32.mrf.mxu0
      %v2690 = vpop.f32.mrf.mxu0
      %v2691 = vadd.f32 0.0, %v2690
      %v2692 = vpop.f32.mrf.mxu0
      %2693 = vmatprep.mubr.bf16.mxu0 0
      %2694 = vmatmul.mubr.bf16.gmra.mxu0 %v2609
      %v2695 = vpop.f32.mrf.mxu0
      %v2696 = vadd.f32 0.0, %v2695
      %v2697 = vpop.f32.mrf.mxu0
      %v2698 = vpop.f32.mrf.mxu0
      %v2699 = vadd.f32 0.0, %v2698
      %v2700 = vpop.f32.mrf.mxu0
      %2701 = vmatprep.mubr.bf16.mxu0 0
      %2702 = vmatmul.mubr.bf16.gmra.mxu0 %v2612
      %v2703 = vpop.f32.mrf.mxu0
      %v2704 = vadd.f32 0.0, %v2703
      %v2705 = vpop.f32.mrf.mxu0
      %v2706 = vpop.f32.mrf.mxu0
      %v2707 = vadd.f32 0.0, %v2706
      %v2708 = vpop.f32.mrf.mxu0
      %2709 = vmatprep.mubr.bf16.mxu0 0
      %2710 = vmatmul.mubr.bf16.gmra.mxu0 %v2615
      %v2711 = vpop.f32.mrf.mxu0
      %v2712 = vadd.f32 0.0, %v2711
      %v2713 = vpop.f32.mrf.mxu0
      %v2714 = vpop.f32.mrf.mxu0
      %v2715 = vadd.f32 0.0, %v2714
      %v2716 = vpop.f32.mrf.mxu0
      %2717 = vmatprep.mubr.bf16.mxu0 0
      %2718 = vmatmul.mubr.bf16.gmra.mxu0 %v2618
      %v2719 = vpop.f32.mrf.mxu0
      %v2720 = vadd.f32 0.0, %v2719
      %v2721 = vpop.f32.mrf.mxu0
      %v2722 = vpop.f32.mrf.mxu0
      %v2723 = vadd.f32 0.0, %v2722
      %v2724 = vpop.f32.mrf.mxu0
      %2725 = vmatprep.mubr.bf16.mxu0 0
      %2726 = vmatmul.mubr.bf16.gmra.mxu0 %v2621
      %v2727 = vpop.f32.mrf.mxu0
      %v2728 = vadd.f32 0.0, %v2727
      %v2729 = vpop.f32.mrf.mxu0
      %v2730 = vpop.f32.mrf.mxu0
      %v2731 = vadd.f32 0.0, %v2730
      %v2732 = vpop.f32.mrf.mxu0
      %2733 = vmatprep.mubr.bf16.mxu0 0
      %2734 = vmatmul.mubr.bf16.gmra.mxu0 %v2624
      %v2735 = vpop.f32.mrf.mxu0
      %v2736 = vadd.f32 0.0, %v2735
      %v2737 = vpop.f32.mrf.mxu0
      %v2738 = vpop.f32.mrf.mxu0
      %v2739 = vadd.f32 0.0, %v2738
      %v2740 = vpop.f32.mrf.mxu0
      %2741 = vmatprep.mubr.bf16.mxu0 0
      %2742 = vmatmul.mubr.bf16.gmra.mxu0 %v2627
      %v2743 = vpop.f32.mrf.mxu0
      %v2744 = vadd.f32 0.0, %v2743
      %v2745 = vpop.f32.mrf.mxu0
      %v2746 = vpop.f32.mrf.mxu0
      %v2747 = vadd.f32 0.0, %v2746
      %v2748 = vpop.f32.mrf.mxu0
      %2749 = vmatprep.mubr.bf16.mxu0 0
      %2750 = vmatmul.mubr.bf16.gmra.mxu0 %v2630
      %v2751 = vpop.f32.mrf.mxu0
      %v2752 = vadd.f32 0.0, %v2751
      %v2753 = vpop.f32.mrf.mxu0
      %v2754 = vpop.f32.mrf.mxu0
      %v2755 = vadd.f32 0.0, %v2754
      %v2756 = vpop.f32.mrf.mxu0
      %2757 = vmatprep.mubr.bf16.mxu0 0
      %2758 = vmatmul.mubr.bf16.gmra.mxu0 %v2633
      %v2759 = vpop.f32.mrf.mxu0
      %v2760 = vadd.f32 0.0, %v2759
      %v2761 = vpop.f32.mrf.mxu0
      %v2762 = vpop.f32.mrf.mxu0
      %v2763 = vadd.f32 0.0, %v2762
      %v2764 = vpop.f32.mrf.mxu0
      %2765 = vmatprep.mubr.bf16.mxu0 0
      %2766 = vmatmul.mubr.bf16.gmra.mxu0 %v2636
      %v2767 = vpop.f32.mrf.mxu0
      %v2768 = vadd.f32 0.0, %v2767
      %v2769 = vpop.f32.mrf.mxu0
      %v2770 = vpop.f32.mrf.mxu0
      %v2771 = vadd.f32 0.0, %v2770
      %v2772 = vpop.f32.mrf.mxu0
      %2773 = vmatprep.mubr.bf16.mxu0 0
      %2774 = vmatmul.mubr.bf16.gmra.mxu0 %v2639
      %v2775 = vpop.f32.mrf.mxu0
      %v2776 = vadd.f32 0.0, %v2775
      %v2777 = vpop.f32.mrf.mxu0
      %v2778 = vpop.f32.mrf.mxu0
      %v2779 = vadd.f32 0.0, %v2778
      %v2780 = vpop.f32.mrf.mxu0
      %2781 = vmatprep.mubr.bf16.mxu0 0
      %2782 = vmatmul.mubr.bf16.gmra.mxu0 %v2642
      %v2783 = vpop.f32.mrf.mxu0
      %v2784 = vadd.f32 0.0, %v2783
      %v2785 = vpop.f32.mrf.mxu0
      %v2786 = vpop.f32.mrf.mxu0
      %v2787 = vadd.f32 0.0, %v2786
      %v2788 = vpop.f32.mrf.mxu0
      %2789 = vmatprep.mubr.bf16.mxu0 0
      %2790 = vmatmul.mubr.bf16.gmra.mxu0 %v2645
      %v2791 = vpop.f32.mrf.mxu0
      %v2792 = vadd.f32 0.0, %v2791
      %v2793 = vpop.f32.mrf.mxu0
      %v2794 = vpop.f32.mrf.mxu0
      %v2795 = vadd.f32 0.0, %v2794
      %v2796 = vpop.f32.mrf.mxu0
      %2797 = vmatprep.mubr.bf16.mxu0 0
      %2798 = vmatmul.mubr.bf16.gmra.mxu0 %v2648
      %v2799 = vpop.f32.mrf.mxu0
      %v2800 = vadd.f32 0.0, %v2799
      %v2801 = vpop.f32.mrf.mxu0
      %v2802 = vpop.f32.mrf.mxu0
      %v2803 = vadd.f32 0.0, %v2802
      %v2804 = vpop.f32.mrf.mxu0
      %2805 = vmatprep.mubr.bf16.mxu0 0
      %2806 = vmatmul.mubr.bf16.gmra.mxu0 %v2651
      %v2807 = vpop.f32.mrf.mxu0
      %v2808 = vadd.f32 0.0, %v2807
      %v2809 = vpop.f32.mrf.mxu0
      %v2810 = vpop.f32.mrf.mxu0
      %v2811 = vadd.f32 0.0, %v2810
      %v2812 = vpop.f32.mrf.mxu0
      %2813 = vdwg.mxu0
      %v2814 = vadd.f32 %v388, %v2688
      %v2815 = vadd.f32 %v389, %v2691
      %v2816 = vadd.f32 %v390, %v2696
      %v2817 = vadd.f32 %v391, %v2699
      %v2818 = vadd.f32 %v392, %v2704
      %v2819 = vadd.f32 %v393, %v2707
      %v2820 = vadd.f32 %v394, %v2712
      %v2821 = vadd.f32 %v395, %v2715
      %v2822 = vadd.f32 %v396, %v2720
      %v2823 = vadd.f32 %v397, %v2723
      %v2824 = vadd.f32 %v398, %v2728
      %v2825 = vadd.f32 %v399, %v2731
      %v2826 = vadd.f32 %v400, %v2736
      %v2827 = vadd.f32 %v401, %v2739
      %v2828 = vadd.f32 %v402, %v2744
      %v2829 = vadd.f32 %v403, %v2747
      %v2830 = vadd.f32 %v404, %v2752
      %v2831 = vadd.f32 %v405, %v2755
      %v2832 = vadd.f32 %v406, %v2760
      %v2833 = vadd.f32 %v407, %v2763
      %v2834 = vadd.f32 %v408, %v2768
      %v2835 = vadd.f32 %v409, %v2771
      %v2836 = vadd.f32 %v410, %v2776
      %v2837 = vadd.f32 %v411, %v2779
      %v2838 = vadd.f32 %v412, %v2784
      %v2839 = vadd.f32 %v413, %v2787
      %v2840 = vadd.f32 %v414, %v2792
      %v2841 = vadd.f32 %v415, %v2795
      %v2842 = vadd.f32 %v416, %v2800
      %v2843 = vadd.f32 %v417, %v2803
      %v2844 = vadd.f32 %v418, %v2808
      %v2845 = vadd.f32 %v419, %v2811
      %v2846 = vld [vmem:[%s10] sm:$0x1]
      %v2848 = vlaneseq
      %v2849 = vshrl.u32 %v2848, 7
      %v2850 = vsub.s32 0, %v2849
      %v2851 = vrot.slane %v2846, %v2850
      %v2853 = vadd.f32 %v2814, %v2851
      %v2854 = vadd.f32 %v2815, %v2851
      %v2855 = vadd.f32 %v2816, %v2851
      %v2856 = vadd.f32 %v2817, %v2851
      %v2857 = vadd.f32 %v2818, %v2851
      %v2858 = vadd.f32 %v2819, %v2851
      %v2859 = vadd.f32 %v2820, %v2851
      %v2860 = vadd.f32 %v2821, %v2851
      %v2861 = vadd.f32 %v2822, %v2851
      %v2862 = vadd.f32 %v2823, %v2851
      %v2863 = vadd.f32 %v2824, %v2851
      %v2864 = vadd.f32 %v2825, %v2851
      %v2865 = vadd.f32 %v2826, %v2851
      %v2866 = vadd.f32 %v2827, %v2851
      %v2867 = vadd.f32 %v2828, %v2851
      %v2868 = vadd.f32 %v2829, %v2851
      %v2869 = vadd.f32 %v2830, %v2851
      %v2870 = vadd.f32 %v2831, %v2851
      %v2871 = vadd.f32 %v2832, %v2851
      %v2872 = vadd.f32 %v2833, %v2851
      %v2873 = vadd.f32 %v2834, %v2851
      %v2874 = vadd.f32 %v2835, %v2851
      %v2875 = vadd.f32 %v2836, %v2851
      %v2876 = vadd.f32 %v2837, %v2851
      %v2877 = vadd.f32 %v2838, %v2851
      %v2878 = vadd.f32 %v2839, %v2851
      %v2879 = vadd.f32 %v2840, %v2851
      %v2880 = vadd.f32 %v2841, %v2851
      %v2881 = vadd.f32 %v2842, %v2851
      %v2882 = vadd.f32 %v2843, %v2851
      %v2883 = vadd.f32 %v2844, %v2851
      %v2884 = vadd.f32 %v2845, %v2851
      %2885 = vst.msk [vmem:[%s386] sm:$0xff] %vm444, %v2853
      %2886 = vst.msk [vmem:[%s386 + $0x8] sm:$0xff] %vm444, %v2854
      %2887 = vst.msk [vmem:[%s386 + $0x10] sm:$0xff] %vm444, %v2855
      %2888 = vst.msk [vmem:[%s386 + $0x18] sm:$0xff] %vm444, %v2856
      %2889 = vst.msk [vmem:[%s386 + $0x20] sm:$0xff] %vm444, %v2857
      %2890 = vst.msk [vmem:[%s386 + $0x28] sm:$0xff] %vm444, %v2858
      %2891 = vst.msk [vmem:[%s386 + $0x30] sm:$0xff] %vm444, %v2859
      %2892 = vst.msk [vmem:[%s386 + $0x38] sm:$0xff] %vm444, %v2860
      %2893 = vst.msk [vmem:[%s386 + $0x40] sm:$0xff] %vm444, %v2861
      %2894 = vst.msk [vmem:[%s386 + $0x48] sm:$0xff] %vm444, %v2862
      %2895 = vst.msk [vmem:[%s386 + $0x50] sm:$0xff] %vm444, %v2863
      %2896 = vst.msk [vmem:[%s386 + $0x58] sm:$0xff] %vm444, %v2864
      %2897 = vst.msk [vmem:[%s386 + $0x60] sm:$0xff] %vm444, %v2865
      %2898 = vst.msk [vmem:[%s386 + $0x68] sm:$0xff] %vm444, %v2866
      %2899 = vst.msk [vmem:[%s386 + $0x70] sm:$0xff] %vm444, %v2867
      %2900 = vst.msk [vmem:[%s386 + $0x78] sm:$0xff] %vm444, %v2868
      %2901 = vst.msk [vmem:[%s386 + $0x80] sm:$0xff] %vm444, %v2869
      %2902 = vst.msk [vmem:[%s386 + $0x88] sm:$0xff] %vm444, %v2870
      %2903 = vst.msk [vmem:[%s386 + $0x90] sm:$0xff] %vm444, %v2871
      %2904 = vst.msk [vmem:[%s386 + $0x98] sm:$0xff] %vm444, %v2872
      %2905 = vst.msk [vmem:[%s386 + $0xa0] sm:$0xff] %vm444, %v2873
      %2906 = vst.msk [vmem:[%s386 + $0xa8] sm:$0xff] %vm444, %v2874
      %2907 = vst.msk [vmem:[%s386 + $0xb0] sm:$0xff] %vm444, %v2875
      %2908 = vst.msk [vmem:[%s386 + $0xb8] sm:$0xff] %vm444, %v2876
      %2909 = vst.msk [vmem:[%s386 + $0xc0] sm:$0xff] %vm444, %v2877
      %2910 = vst.msk [vmem:[%s386 + $0xc8] sm:$0xff] %vm444, %v2878
      %2911 = vst.msk [vmem:[%s386 + $0xd0] sm:$0xff] %vm444, %v2879
      %2912 = vst.msk [vmem:[%s386 + $0xd8] sm:$0xff] %vm444, %v2880
      %2913 = vst.msk [vmem:[%s386 + $0xe0] sm:$0xff] %vm444, %v2881
      %2914 = vst.msk [vmem:[%s386 + $0xe8] sm:$0xff] %vm444, %v2882
      %2915 = vst.msk [vmem:[%s386 + $0xf0] sm:$0xff] %vm444, %v2883
      %2916 = vst.msk [vmem:[%s386 + $0xf8] sm:$0xff] %vm444, %v2884
      %p2917 = scmp.lt.s32.totalorder %s22, 1
      %s2918 = scalar_select %p2917, %s22, 1
      %s2919 = smul.addr %s2918, 32
      %s2920 = smul.addr %s2919, 8
      %s2921 = scalar_lea.vmem %s11, %s2920
      // Predicated region
      $region65: #{tpu_custom_call.1} parent=63 // pred_check
        %p2922 = pneg %p276
      $region66: #{tpu_custom_call.1} parent=63 // pred_check_branch
        %2924 = sbr.rel (%p2922) target = $region68
      $region67: #{tpu_custom_call.1} parent=63 // pred_region
        _
      $region68: #{tpu_custom_call.1} parent=63 // pred_fallthru
        _
    $region64: #{tpu_custom_call.1} parent=5 // pred_fallthru
      _
    %p2925 = scmp.le.s32.totalorder 2, %s17
    // Predicated region
    $region69: #{tpu_custom_call.1} parent=5 // pred_check
      %p2926 = pneg %p2925
    $region70: #{tpu_custom_call.1} parent=5 // pred_check_branch
      %2928 = sbr.rel (%p2926) target = $region72
    $region71: #{tpu_custom_call.1} parent=5 // pred_region
      %s2929 = ssub.s32 %s17, 2
      // Predicated region
      $region73: #{tpu_custom_call.1} parent=71 // pred_check
        %p2930 = pneg %p282
      $region74: #{tpu_custom_call.1} parent=71 // pred_check_branch
        %2932 = sbr.rel (%p2930) target = $region76
      $region75: #{tpu_custom_call.1} parent=71 // pred_region
        %p2933 = scmp.lt.s32.totalorder %s23, 1
        %s2934 = scalar_select %p2933, %s23, 1
        %s2935 = smul.addr %s2934, 32
        %s2936 = smul.addr %s2935, 8
        %s2937 = scalar_lea.vmem %s11, %s2936
      $region76: #{tpu_custom_call.1} parent=71 // pred_fallthru
        _
    $region72: #{tpu_custom_call.1} parent=5 // pred_fallthru
      _
  $region6: #{tpu_custom_call.1} parent=0 // loop_footer
    %s21 = sadd.s32 1, %s17
  $region7: #{tpu_custom_call.1} parent=0 // loop_footer_branch
    %16 = sbr.rel target = $region3
  $region8: #{tpu_custom_call.1} parent=0 // loop_exit
    _

</llo_original>
